<compile_context>
chip_gen: v7x
topology: tpu7x:2x2x1
jax: 0.10.0
libtpu: 0.0.40
codegen_flags: <defaults>
</compile_context>

<pallas_src>
import functools
import math

import jax
import jax.numpy as jnp
from jax.experimental import pallas as pl
from jax.experimental.pallas import tpu as pltpu


# ----------------------------------------------------------------------------
# Fused Pallas kernel: fc1 -> depthwise 3x3 -> GELU -> fc2 (one batch element)
# ----------------------------------------------------------------------------
def _mlp_kernel(x_ref, w1_ref, b1_ref, wdw_ref, bdw_ref, w2_ref, b2_ref,
                o_ref, hpad_ref, *, H, W, C_hidden):
    """Shapes seen by the kernel:

    x_ref   : (1, N, C_in)        bf16   N = H*W, rows in (h, w) row-major order
    w1_ref  : (C_in, C_hidden)    bf16   fc1 weight (pre-transposed)
    b1_ref  : (1, C_hidden)       f32
    wdw_ref : (9, C_hidden)       f32    depthwise 3x3 taps, row index = di*3+dj
    bdw_ref : (1, C_hidden)       f32
    w2_ref  : (C_hidden, C_out)   bf16   fc2 weight (pre-transposed)
    b2_ref  : (1, C_out)          f32
    o_ref   : (1, N, C_out)       f32
    hpad_ref: (H+2, W+16, C_hidden) f32  zero-padded hidden image (VMEM scratch)
    """
    # ---- fc1: MXU matmul, bf16 operands, f32 accumulation -------------------
    h = jnp.dot(x_ref[0], w1_ref[...], preferred_element_type=jnp.float32)
    h = h + b1_ref[...]                                   # (N, C_hidden) f32

    # ---- depthwise 3x3 conv: zero-pad in VMEM, accumulate 9 shifted taps ----
    # The image lives at rows [1, H] and sublane-aligned columns [8, 8 + W).
    hpad_ref[...] = jnp.zeros_like(hpad_ref)
    hpad_ref[pl.ds(1, H), pl.ds(8, W), :] = h.reshape(H, W, C_hidden)

    dw = None
    for di in range(3):
        for dj in range(3):
            tap = wdw_ref[pl.ds(di * 3 + dj, 1), :].reshape(1, 1, C_hidden)
            win = hpad_ref[pl.ds(di, H), pl.ds(7 + dj, W), :]     # (H, W, C)
            contrib = win * tap
            dw = contrib if dw is None else dw + contrib

    # ---- GELU(h + dwconv + dw_bias) in f32 (tanh approximation -> EUP) ------
    a = h + dw.reshape(H * W, C_hidden) + bdw_ref[...]
    c0 = math.sqrt(2.0 / math.pi)
    g = 0.5 * a * (1.0 + jnp.tanh(c0 * (a + 0.044715 * (a * a * a))))

    # ---- fc2: MXU matmul, bf16 operands, f32 accumulation -------------------
    out = jnp.dot(g.astype(jnp.bfloat16), w2_ref[...],
                  preferred_element_type=jnp.float32)
    o_ref[0] = out + b2_ref[...]


# ----------------------------------------------------------------------------
# Wrapper
# ----------------------------------------------------------------------------
@functools.partial(jax.jit, static_argnames=("H", "W"))
def mlp_forward(params, x, H, W):
    """Mlp forward.  x: (B, N, C_in) float32 with N == H * W."""
    B, N, C_in = x.shape
    assert N == H * W and W % 8 == 0, "requires N == H*W and W % 8 == 0"
    C_hidden = params["w1"].shape[0]
    C_out = params["w2"].shape[0]

    # torch.nn.Linear computes x @ W.T + b -> pre-transpose + bf16-cast weights.
    w1 = jnp.transpose(params["w1"]).astype(jnp.bfloat16)          # (C_in, C_hidden)
    w2 = jnp.transpose(params["w2"]).astype(jnp.bfloat16)          # (C_hidden, C_out)
    b1 = params["b1"].reshape(1, C_hidden).astype(jnp.float32)
    b2 = params["b2"].reshape(1, C_out).astype(jnp.float32)
    # Depthwise Conv2d weight (C_hidden, 1, 3, 3) -> (9, C_hidden), row = di*3+dj.
    wdw = jnp.transpose(params["w_dw"].reshape(C_hidden, 9)).astype(jnp.float32)
    bdw = params["b_dw"].reshape(1, C_hidden).astype(jnp.float32)

    kernel = functools.partial(_mlp_kernel, H=H, W=W, C_hidden=C_hidden)
    return pl.pallas_call(
        kernel,
        out_shape=jax.ShapeDtypeStruct((B, N, C_out), jnp.float32),
        grid=(B,),
        in_specs=[
            pl.BlockSpec((1, N, C_in), lambda b: (b, 0, 0)),       # activations
            pl.BlockSpec((C_in, C_hidden), lambda b: (0, 0)),      # fc1 weight
            pl.BlockSpec((1, C_hidden), lambda b: (0, 0)),         # fc1 bias
            pl.BlockSpec((9, C_hidden), lambda b: (0, 0)),         # dwconv taps
            pl.BlockSpec((1, C_hidden), lambda b: (0, 0)),         # dwconv bias
            pl.BlockSpec((C_hidden, C_out), lambda b: (0, 0)),     # fc2 weight
            pl.BlockSpec((1, C_out), lambda b: (0, 0)),            # fc2 bias
        ],
        out_specs=pl.BlockSpec((1, N, C_out), lambda b: (b, 0, 0)),
        scratch_shapes=[pltpu.VMEM((H + 2, W + 16, C_hidden), jnp.float32)],
        compiler_params=pltpu.CompilerParams(dimension_semantics=("parallel",)),
    )(x.astype(jnp.bfloat16), w1, b1, wdw, bdw, w2, b2)


# ----------------------------------------------------------------------------
# Parameter init (PyTorch-shaped) and pure-JAX reference
# ----------------------------------------------------------------------------
def init_mlp_params(key, c_in, c_hidden, c_out):
    """Parameter shapes match the PyTorch module.  Biases are made nonzero so
    the bias paths are actually exercised (the module inits them to 0)."""
    ks = jax.random.split(key, 6)
    std_lin = 0.02                       # trunc_normal_(std=0.02) for Linear
    std_dw = math.sqrt(2.0 / 9.0)        # fan_out // groups = 3*3 = 9
    return {
        "w1": jax.random.normal(ks[0], (c_hidden, c_in), jnp.float32) * std_lin,
        "b1": jax.random.normal(ks[1], (c_hidden,), jnp.float32) * 0.02,
        "w_dw": jax.random.normal(ks[2], (c_hidden, 1, 3, 3), jnp.float32) * std_dw,
        "b_dw": jax.random.normal(ks[3], (c_hidden,), jnp.float32) * 0.02,
        "w2": jax.random.normal(ks[4], (c_out, c_hidden), jnp.float32) * std_lin,
        "b2": jax.random.normal(ks[5], (c_out,), jnp.float32) * 0.02,
    }


def ref_forward(params, x, H, W):
    """Pure-JAX f32 reference with exact (erf) GELU — PyTorch semantics."""
    B, N, _ = x.shape
    c_hidden = params["w1"].shape[0]
    h = x @ params["w1"].T + params["b1"]                          # fc1
    himg = jnp.transpose(h, (0, 2, 1)).reshape(B, c_hidden, H, W)  # (B,C,H,W)
    dw = jax.lax.conv_general_dilated(
        himg, params["w_dw"], window_strides=(1, 1),
        padding=[(1, 1), (1, 1)],
        dimension_numbers=("NCHW", "OIHW", "NCHW"),
        feature_group_count=c_hidden)
    dw = dw + params["b_dw"][None, :, None, None]
    dw = jnp.transpose(dw.reshape(B, c_hidden, N), (0, 2, 1))      # (B,N,C)
    a = jax.nn.gelu(h + dw, approximate=False)                     # exact GELU
    return a @ params["w2"].T + params["b2"]                       # fc2


# ----------------------------------------------------------------------------
if __name__ == "__main__":
    B, H, W = 2, 16, 16
    C_in, C_hidden = 64, 256            # Mlp(in_features=64, hidden_features=256)
    C_out = C_in                        # out_features defaults to in_features
    N = H * W

    key = jax.random.PRNGKey(0)
    k_param, k_x = jax.random.split(key)
    params = init_mlp_params(k_param, C_in, C_hidden, C_out)
    x = jax.random.normal(k_x, (B, N, C_in), jnp.float32)

    out = jax.block_until_ready(mlp_forward(params, x, H, W))
    assert out.shape == (B, N, C_out), out.shape

    ref = ref_forward(params, x, H, W)
    err = float(jnp.max(jnp.abs(out - ref)))
    assert err < 2e-2, f"max abs err {err}"
    print("KERNEL_OK")
</pallas_src>

<mosaic_0001>
module attributes {stable_mosaic.version = 11 : i64} {
  func.func @_mlp_kernel(%arg0: i32, %arg1: memref<1x256x64xbf16, #tpu.memory_space<vmem>>, %arg2: memref<64x256xbf16, #tpu.memory_space<vmem>>, %arg3: memref<1x256xf32, #tpu.memory_space<vmem>>, %arg4: memref<9x256xf32, #tpu.memory_space<vmem>>, %arg5: memref<1x256xf32, #tpu.memory_space<vmem>>, %arg6: memref<256x64xbf16, #tpu.memory_space<vmem>>, %arg7: memref<1x64xf32, #tpu.memory_space<vmem>>, %arg8: memref<1x256x64xf32, #tpu.memory_space<vmem>>, %arg9: memref<18x32x256xf32, #tpu.memory_space<vmem>>) attributes {dimension_semantics = [#tpu.dimension_semantics<parallel>], iteration_bounds = array<i64: 2>, scalar_prefetch = 0 : i64, scratch_operands = 1 : i64, tpu.core_type = #tpu.core_type<tc>, window_params = [{transform_indices = @transform_0, window_bounds = array<i64: 1, 256, 64>}, {pipeline_mode = #tpu.pipeline_mode<synchronous>, transform_indices = @transform_1, window_bounds = array<i64: 64, 256>}, {pipeline_mode = #tpu.pipeline_mode<synchronous>, transform_indices = @transform_2, window_bounds = array<i64: 1, 256>}, {pipeline_mode = #tpu.pipeline_mode<synchronous>, transform_indices = @transform_3, window_bounds = array<i64: 9, 256>}, {pipeline_mode = #tpu.pipeline_mode<synchronous>, transform_indices = @transform_4, window_bounds = array<i64: 1, 256>}, {pipeline_mode = #tpu.pipeline_mode<synchronous>, transform_indices = @transform_5, window_bounds = array<i64: 256, 64>}, {pipeline_mode = #tpu.pipeline_mode<synchronous>, transform_indices = @transform_6, window_bounds = array<i64: 1, 64>}, {transform_indices = @transform_7, window_bounds = array<i64: 1, 256, 64>}]} {
    %c0 = arith.constant 0 : index
    %c0_0 = arith.constant 0 : index
    %c0_1 = arith.constant 0 : index
    %0 = vector.load %arg1[%c0, %c0_0, %c0_1] : memref<1x256x64xbf16, #tpu.memory_space<vmem>>, vector<1x256x64xbf16>
    %1 = vector.shape_cast %0 : vector<1x256x64xbf16> to vector<256x64xbf16>
    %c0_2 = arith.constant 0 : index
    %c0_3 = arith.constant 0 : index
    %2 = vector.load %arg2[%c0_2, %c0_3] : memref<64x256xbf16, #tpu.memory_space<vmem>>, vector<64x256xbf16>
    %cst = arith.constant dense<0.000000e+00> : vector<256x256xf32>
    %3 = tpu.matmul %1, %2, %cst {dimension_numbers = #tpu.dot_dimension_numbers<[1], [0], [0], [1], [0, 0, 1, 1], [], []>} : vector<256x64xbf16>, vector<64x256xbf16>, vector<256x256xf32> -> vector<256x256xf32>
    %c0_4 = arith.constant 0 : index
    %c0_5 = arith.constant 0 : index
    %4 = vector.load %arg3[%c0_4, %c0_5] : memref<1x256xf32, #tpu.memory_space<vmem>>, vector<1x256xf32>
    %5 = vector.broadcast %4 : vector<1x256xf32> to vector<256x256xf32>
    %6 = arith.addf %3, %5 : vector<256x256xf32>
    %cst_6 = arith.constant 0.000000e+00 : f32
    %7 = vector.broadcast %cst_6 : f32 to vector<18x32x256xf32>
    %c0_7 = arith.constant 0 : index
    %c0_8 = arith.constant 0 : index
    %c0_9 = arith.constant 0 : index
    %8 = vector.load %arg9[%c0_7, %c0_8, %c0_9] : memref<18x32x256xf32, #tpu.memory_space<vmem>>, vector<18x32x256xf32>
    tpu.vector_store %arg9[%c0_7, %c0_8, %c0_9], %7 {strides = array<i32>} : memref<18x32x256xf32, #tpu.memory_space<vmem>>, vector<18x32x256xf32>,
    %9 = vector.shape_cast %6 : vector<256x256xf32> to vector<16x16x256xf32>
    %c1 = arith.constant 1 : index
    %c8 = arith.constant 8 : index
    %c0_10 = arith.constant 0 : index
    %10 = vector.load %arg9[%c1, %c8, %c0_10] : memref<18x32x256xf32, #tpu.memory_space<vmem>>, vector<16x16x256xf32>
    tpu.vector_store %arg9[%c1, %c8, %c0_10], %9 {strides = array<i32>} : memref<18x32x256xf32, #tpu.memory_space<vmem>>, vector<16x16x256xf32>,
    %c0_11 = arith.constant 0 : index
    %c0_12 = arith.constant 0 : index
    %11 = vector.load %arg4[%c0_11, %c0_12] : memref<9x256xf32, #tpu.memory_space<vmem>>, vector<1x256xf32>
    %12 = vector.shape_cast %11 : vector<1x256xf32> to vector<1x1x256xf32>
    %c0_13 = arith.constant 0 : index
    %c7 = arith.constant 7 : index
    %c0_14 = arith.constant 0 : index
    %13 = vector.load %arg9[%c0_13, %c7, %c0_14] : memref<18x32x256xf32, #tpu.memory_space<vmem>>, vector<16x16x256xf32>
    %14 = vector.broadcast %12 : vector<1x1x256xf32> to vector<16x16x256xf32>
    %15 = arith.mulf %13, %14 : vector<16x16x256xf32>
    %c1_15 = arith.constant 1 : index
    %c0_16 = arith.constant 0 : index
    %16 = vector.load %arg4[%c1_15, %c0_16] : memref<9x256xf32, #tpu.memory_space<vmem>>, vector<1x256xf32>
    %17 = vector.shape_cast %16 : vector<1x256xf32> to vector<1x1x256xf32>
    %c0_17 = arith.constant 0 : index
    %c8_18 = arith.constant 8 : index
    %c0_19 = arith.constant 0 : index
    %18 = vector.load %arg9[%c0_17, %c8_18, %c0_19] : memref<18x32x256xf32, #tpu.memory_space<vmem>>, vector<16x16x256xf32>
    %19 = vector.broadcast %17 : vector<1x1x256xf32> to vector<16x16x256xf32>
    %20 = arith.mulf %18, %19 : vector<16x16x256xf32>
    %21 = arith.addf %15, %20 : vector<16x16x256xf32>
    %c2 = arith.constant 2 : index
    %c0_20 = arith.constant 0 : index
    %22 = vector.load %arg4[%c2, %c0_20] : memref<9x256xf32, #tpu.memory_space<vmem>>, vector<1x256xf32>
    %23 = vector.shape_cast %22 : vector<1x256xf32> to vector<1x1x256xf32>
    %c0_21 = arith.constant 0 : index
    %c9 = arith.constant 9 : index
    %c0_22 = arith.constant 0 : index
    %24 = vector.load %arg9[%c0_21, %c9, %c0_22] : memref<18x32x256xf32, #tpu.memory_space<vmem>>, vector<16x16x256xf32>
    %25 = vector.broadcast %23 : vector<1x1x256xf32> to vector<16x16x256xf32>
    %26 = arith.mulf %24, %25 : vector<16x16x256xf32>
    %27 = arith.addf %21, %26 : vector<16x16x256xf32>
    %c3 = arith.constant 3 : index
    %c0_23 = arith.constant 0 : index
    %28 = vector.load %arg4[%c3, %c0_23] : memref<9x256xf32, #tpu.memory_space<vmem>>, vector<1x256xf32>
    %29 = vector.shape_cast %28 : vector<1x256xf32> to vector<1x1x256xf32>
    %c1_24 = arith.constant 1 : index
    %c7_25 = arith.constant 7 : index
    %c0_26 = arith.constant 0 : index
    %30 = vector.load %arg9[%c1_24, %c7_25, %c0_26] : memref<18x32x256xf32, #tpu.memory_space<vmem>>, vector<16x16x256xf32>
    %31 = vector.broadcast %29 : vector<1x1x256xf32> to vector<16x16x256xf32>
    %32 = arith.mulf %30, %31 : vector<16x16x256xf32>
    %33 = arith.addf %27, %32 : vector<16x16x256xf32>
    %c4 = arith.constant 4 : index
    %c0_27 = arith.constant 0 : index
    %34 = vector.load %arg4[%c4, %c0_27] : memref<9x256xf32, #tpu.memory_space<vmem>>, vector<1x256xf32>
    %35 = vector.shape_cast %34 : vector<1x256xf32> to vector<1x1x256xf32>
    %c1_28 = arith.constant 1 : index
    %c8_29 = arith.constant 8 : index
    %c0_30 = arith.constant 0 : index
    %36 = vector.load %arg9[%c1_28, %c8_29, %c0_30] : memref<18x32x256xf32, #tpu.memory_space<vmem>>, vector<16x16x256xf32>
    %37 = vector.broadcast %35 : vector<1x1x256xf32> to vector<16x16x256xf32>
    %38 = arith.mulf %36, %37 : vector<16x16x256xf32>
    %39 = arith.addf %33, %38 : vector<16x16x256xf32>
    %c5 = arith.constant 5 : index
    %c0_31 = arith.constant 0 : index
    %40 = vector.load %arg4[%c5, %c0_31] : memref<9x256xf32, #tpu.memory_space<vmem>>, vector<1x256xf32>
    %41 = vector.shape_cast %40 : vector<1x256xf32> to vector<1x1x256xf32>
    %c1_32 = arith.constant 1 : index
    %c9_33 = arith.constant 9 : index
    %c0_34 = arith.constant 0 : index
    %42 = vector.load %arg9[%c1_32, %c9_33, %c0_34] : memref<18x32x256xf32, #tpu.memory_space<vmem>>, vector<16x16x256xf32>
    %43 = vector.broadcast %41 : vector<1x1x256xf32> to vector<16x16x256xf32>
    %44 = arith.mulf %42, %43 : vector<16x16x256xf32>
    %45 = arith.addf %39, %44 : vector<16x16x256xf32>
    %c6 = arith.constant 6 : index
    %c0_35 = arith.constant 0 : index
    %46 = vector.load %arg4[%c6, %c0_35] : memref<9x256xf32, #tpu.memory_space<vmem>>, vector<1x256xf32>
    %47 = vector.shape_cast %46 : vector<1x256xf32> to vector<1x1x256xf32>
    %c2_36 = arith.constant 2 : index
    %c7_37 = arith.constant 7 : index
    %c0_38 = arith.constant 0 : index
    %48 = vector.load %arg9[%c2_36, %c7_37, %c0_38] : memref<18x32x256xf32, #tpu.memory_space<vmem>>, vector<16x16x256xf32>
    %49 = vector.broadcast %47 : vector<1x1x256xf32> to vector<16x16x256xf32>
    %50 = arith.mulf %48, %49 : vector<16x16x256xf32>
    %51 = arith.addf %45, %50 : vector<16x16x256xf32>
    %c7_39 = arith.constant 7 : index
    %c0_40 = arith.constant 0 : index
    %52 = vector.load %arg4[%c7_39, %c0_40] : memref<9x256xf32, #tpu.memory_space<vmem>>, vector<1x256xf32>
    %53 = vector.shape_cast %52 : vector<1x256xf32> to vector<1x1x256xf32>
    %c2_41 = arith.constant 2 : index
    %c8_42 = arith.constant 8 : index
    %c0_43 = arith.constant 0 : index
    %54 = vector.load %arg9[%c2_41, %c8_42, %c0_43] : memref<18x32x256xf32, #tpu.memory_space<vmem>>, vector<16x16x256xf32>
    %55 = vector.broadcast %53 : vector<1x1x256xf32> to vector<16x16x256xf32>
    %56 = arith.mulf %54, %55 : vector<16x16x256xf32>
    %57 = arith.addf %51, %56 : vector<16x16x256xf32>
    %c8_44 = arith.constant 8 : index
    %c0_45 = arith.constant 0 : index
    %58 = vector.load %arg4[%c8_44, %c0_45] : memref<9x256xf32, #tpu.memory_space<vmem>>, vector<1x256xf32>
    %59 = vector.shape_cast %58 : vector<1x256xf32> to vector<1x1x256xf32>
    %c2_46 = arith.constant 2 : index
    %c9_47 = arith.constant 9 : index
    %c0_48 = arith.constant 0 : index
    %60 = vector.load %arg9[%c2_46, %c9_47, %c0_48] : memref<18x32x256xf32, #tpu.memory_space<vmem>>, vector<16x16x256xf32>
    %61 = vector.broadcast %59 : vector<1x1x256xf32> to vector<16x16x256xf32>
    %62 = arith.mulf %60, %61 : vector<16x16x256xf32>
    %63 = arith.addf %57, %62 : vector<16x16x256xf32>
    %64 = vector.shape_cast %63 : vector<16x16x256xf32> to vector<256x256xf32>
    %65 = arith.addf %6, %64 : vector<256x256xf32>
    %c0_49 = arith.constant 0 : index
    %c0_50 = arith.constant 0 : index
    %66 = vector.load %arg5[%c0_49, %c0_50] : memref<1x256xf32, #tpu.memory_space<vmem>>, vector<1x256xf32>
    %67 = vector.broadcast %66 : vector<1x256xf32> to vector<256x256xf32>
    %68 = arith.addf %65, %67 : vector<256x256xf32>
    %cst_51 = arith.constant 5.000000e-01 : f32
    %69 = vector.broadcast %cst_51 : f32 to vector<256x256xf32>
    %70 = arith.mulf %69, %68 : vector<256x256xf32>
    %71 = arith.mulf %68, %68 : vector<256x256xf32>
    %72 = arith.mulf %71, %68 : vector<256x256xf32>
    %cst_52 = arith.constant 4.471500e-02 : f32
    %73 = vector.broadcast %cst_52 : f32 to vector<256x256xf32>
    %74 = arith.mulf %73, %72 : vector<256x256xf32>
    %75 = arith.addf %68, %74 : vector<256x256xf32>
    %cst_53 = arith.constant 0.797884583 : f32
    %76 = vector.broadcast %cst_53 : f32 to vector<256x256xf32>
    %77 = arith.mulf %76, %75 : vector<256x256xf32>
    %78 = math.tanh %77 : vector<256x256xf32>
    %cst_54 = arith.constant 1.000000e+00 : f32
    %79 = vector.broadcast %cst_54 : f32 to vector<256x256xf32>
    %80 = arith.addf %79, %78 : vector<256x256xf32>
    %81 = arith.mulf %70, %80 : vector<256x256xf32>
    %82 = arith.truncf %81 : vector<256x256xf32> to vector<256x256xbf16>
    %c0_55 = arith.constant 0 : index
    %c0_56 = arith.constant 0 : index
    %83 = vector.load %arg6[%c0_55, %c0_56] : memref<256x64xbf16, #tpu.memory_space<vmem>>, vector<256x64xbf16>
    %cst_57 = arith.constant dense<0.000000e+00> : vector<256x64xf32>
    %84 = tpu.matmul %82, %83, %cst_57 {dimension_numbers = #tpu.dot_dimension_numbers<[1], [0], [0], [1], [0, 0, 1, 1], [], []>} : vector<256x256xbf16>, vector<256x64xbf16>, vector<256x64xf32> -> vector<256x64xf32>
    %c0_58 = arith.constant 0 : index
    %c0_59 = arith.constant 0 : index
    %85 = vector.load %arg7[%c0_58, %c0_59] : memref<1x64xf32, #tpu.memory_space<vmem>>, vector<1x64xf32>
    %86 = vector.broadcast %85 : vector<1x64xf32> to vector<256x64xf32>
    %87 = arith.addf %84, %86 : vector<256x64xf32>
    %c0_60 = arith.constant 0 : index
    %c0_61 = arith.constant 0 : index
    %c0_62 = arith.constant 0 : index
    %88 = vector.load %arg8[%c0_60, %c0_61, %c0_62] : memref<1x256x64xf32, #tpu.memory_space<vmem>>, vector<1x256x64xf32>
    %89 = vector.shape_cast %88 : vector<1x256x64xf32> to vector<256x64xf32>
    %90 = vector.shape_cast %87 : vector<256x64xf32> to vector<1x256x64xf32>
    tpu.vector_store %arg8[%c0_60, %c0_61, %c0_62], %90 {strides = array<i32>} : memref<1x256x64xf32, #tpu.memory_space<vmem>>, vector<1x256x64xf32>,
    return
  }
  func.func @transform_0(%arg0: i32) -> (i32, i32, i32) {
    %c0_i32 = arith.constant 0 : i32
    %c0_i32_0 = arith.constant 0 : i32
    %c0_i32_1 = arith.constant 0 : i32
    return %arg0, %c0_i32, %c0_i32_0 : i32, i32, i32
  }
  func.func @transform_1(%arg0: i32) -> (i32, i32) {
    %c0_i32 = arith.constant 0 : i32
    %c0_i32_0 = arith.constant 0 : i32
    %c0_i32_1 = arith.constant 0 : i32
    return %c0_i32, %c0_i32_0 : i32, i32
  }
  func.func @transform_2(%arg0: i32) -> (i32, i32) {
    %c0_i32 = arith.constant 0 : i32
    %c0_i32_0 = arith.constant 0 : i32
    %c0_i32_1 = arith.constant 0 : i32
    return %c0_i32, %c0_i32_0 : i32, i32
  }
  func.func @transform_3(%arg0: i32) -> (i32, i32) {
    %c0_i32 = arith.constant 0 : i32
    %c0_i32_0 = arith.constant 0 : i32
    %c0_i32_1 = arith.constant 0 : i32
    return %c0_i32, %c0_i32_0 : i32, i32
  }
  func.func @transform_4(%arg0: i32) -> (i32, i32) {
    %c0_i32 = arith.constant 0 : i32
    %c0_i32_0 = arith.constant 0 : i32
    %c0_i32_1 = arith.constant 0 : i32
    return %c0_i32, %c0_i32_0 : i32, i32
  }
  func.func @transform_5(%arg0: i32) -> (i32, i32) {
    %c0_i32 = arith.constant 0 : i32
    %c0_i32_0 = arith.constant 0 : i32
    %c0_i32_1 = arith.constant 0 : i32
    return %c0_i32, %c0_i32_0 : i32, i32
  }
  func.func @transform_6(%arg0: i32) -> (i32, i32) {
    %c0_i32 = arith.constant 0 : i32
    %c0_i32_0 = arith.constant 0 : i32
    %c0_i32_1 = arith.constant 0 : i32
    return %c0_i32, %c0_i32_0 : i32, i32
  }
  func.func @transform_7(%arg0: i32) -> (i32, i32, i32) {
    %c0_i32 = arith.constant 0 : i32
    %c0_i32_0 = arith.constant 0 : i32
    %c0_i32_1 = arith.constant 0 : i32
    return %arg0, %c0_i32, %c0_i32_0 : i32, i32, i32
  }
}

</mosaic_0001>

<llo_original>
// kernel: mlp_forward.1
$region0: #{mlp_forward.1}
  #allocation0 [shape = 'u32[]', space=smem, size = 0x4, offset = 0x4, fixed_abs, tag = 'smem constant byte address 0x4 - core index']
  #allocation1 [shape = 'u32[144,128]{1,0:T(1,128)}', space=vmem, size = 0x12000, scoped, tag = 'internal scratch']
  #allocation2 [shape = 'f32[18,32,256]{2,1,0:T(8,128)}', space=vmem, size = 0x90000, scoped, tag = 'scratch operand']
  %s0 = inlined_call_operand.vmem [shape: bf16[2,256,64], index: 0, kind: input, shape index: {}]
  %s1 = inlined_call_operand.vmem [shape: bf16[64,256], index: 1, kind: input, shape index: {}]
  %s2 = inlined_call_operand.vmem [shape: f32[1,256], index: 2, kind: input, shape index: {}]
  %s3 = inlined_call_operand.vmem [shape: f32[9,256], index: 3, kind: input, shape index: {}]
  %s4 = inlined_call_operand.vmem [shape: f32[1,256], index: 4, kind: input, shape index: {}]
  %s5 = inlined_call_operand.vmem [shape: bf16[256,64], index: 5, kind: input, shape index: {}]
  %s6 = inlined_call_operand.vmem [shape: f32[1,64], index: 6, kind: input, shape index: {}]
  %s7 = inlined_call_operand.vmem [shape: f32[2,256,64], index: 7, kind: output, shape index: {}]
  %s8 = sld [smem:[#allocation0]]
  $region61: #{mlp_forward.1} parent=0
    _
  %s10 = ssub.s32 1, %s8
  %s11 = scalar_select 0, %s10, %s8
  loop: start=0, step=1, limit=4
  $region2: #{mlp_forward.1} parent=0 // loop_pre_header
    _
  $region3: #{mlp_forward.1} parent=0 // loop_header
    %s13 = sphi 0, %s17
    %p14 = scmp.ge.s32.totalorder %s13, 4
    %s23 = sphi 0, %s25
    %s26 = sphi 0, %s23
    %s27 = sphi 0, %s26
    %s43 = sphi 0, %s27
    %s47 = sphi 0, %s47
    %s49 = sphi 0, %s47
    %s50 = sphi 0, %s49
    %s64 = sphi 0, %s50
    %s68 = sphi 0, %s68
    %s70 = sphi 0, %s68
    %s71 = sphi 0, %s70
    %s85 = sphi 0, %s71
    %s89 = sphi 0, %s89
    %s91 = sphi 0, %s89
    %s92 = sphi 0, %s91
    %s106 = sphi 0, %s92
    %s110 = sphi 0, %s110
    %s112 = sphi 0, %s110
    %s113 = sphi 0, %s112
    %s127 = sphi 0, %s113
    %s131 = sphi 0, %s131
    %s133 = sphi 0, %s131
    %s134 = sphi 0, %s133
    %s148 = sphi 0, %s134
    %s152 = sphi 0, %s152
    %s154 = sphi 0, %s152
    %s155 = sphi 0, %s154
    %s169 = sphi 0, %s155
    %s175 = sphi 0, %s177
    %s178 = sphi 0, %s175
    %s179 = sphi 0, %s178
    %s195 = sphi 0, %s179
  $region4: #{mlp_forward.1} parent=0 // loop_header_branch
    %16 = sbr.rel (%p14) target = $region8
  $region5: #{mlp_forward.1} parent=0 // loop_body
    %s18 = ssub.s32 %s13, 1
    %s19 = ssub.s32 %s13, 2
    %s20 = sadd.s32 %s13, 1
    %s21 = ssub.s32 %s13, %s20
    %p22 = scmp.eq.s32.totalorder %s21, 0
    %s24 = sadd.s32 %s23, 1
    %s25 = scalar_select %p22, %s23, %s24
    %p28 = pneg %p22
    %p29 = scmp.eq.s32.totalorder %s13, 1
    %p30 = por %p28, %p29
    %p31 = scmp.ne.s32.totalorder %s23, %s26
    %p32 = scmp.eq.s32.totalorder %s13, 0
    %p33 = por %p31, %p32
    %p34 = scmp.ne.s32.totalorder %s23, %s26
    %p35 = scmp.eq.s32.totalorder %s18, 1
    %p36 = por %p34, %p35
    %p37 = scmp.ne.s32.totalorder %s26, %s27
    %p38 = scmp.eq.s32.totalorder %s18, 0
    %p39 = por %p37, %p38
    %p40 = scmp.ne.s32.totalorder %s26, %s27
    %p41 = scmp.eq.s32.totalorder %s19, 1
    %p42 = por %p40, %p41
    %p44 = scmp.ne.s32.totalorder %s27, %s43
    %p45 = scmp.eq.s32.totalorder %s19, 0
    %p46 = por %p44, %p45
    %s48 = sadd.s32 %s47, 1
    %p51 = scmp.eq.s32.totalorder %s13, 1
    %p52 = scmp.ne.s32.totalorder %s47, %s49
    %p53 = scmp.eq.s32.totalorder %s13, 0
    %p54 = por %p52, %p53
    %p55 = scmp.ne.s32.totalorder %s47, %s49
    %p56 = scmp.eq.s32.totalorder %s18, 1
    %p57 = por %p55, %p56
    %p58 = scmp.ne.s32.totalorder %s49, %s50
    %p59 = scmp.eq.s32.totalorder %s18, 0
    %p60 = por %p58, %p59
    %p61 = scmp.ne.s32.totalorder %s49, %s50
    %p62 = scmp.eq.s32.totalorder %s19, 1
    %p63 = por %p61, %p62
    %p65 = scmp.ne.s32.totalorder %s50, %s64
    %p66 = scmp.eq.s32.totalorder %s19, 0
    %p67 = por %p65, %p66
    %s69 = sadd.s32 %s68, 1
    %p72 = scmp.eq.s32.totalorder %s13, 1
    %p73 = scmp.ne.s32.totalorder %s68, %s70
    %p74 = scmp.eq.s32.totalorder %s13, 0
    %p75 = por %p73, %p74
    %p76 = scmp.ne.s32.totalorder %s68, %s70
    %p77 = scmp.eq.s32.totalorder %s18, 1
    %p78 = por %p76, %p77
    %p79 = scmp.ne.s32.totalorder %s70, %s71
    %p80 = scmp.eq.s32.totalorder %s18, 0
    %p81 = por %p79, %p80
    %p82 = scmp.ne.s32.totalorder %s70, %s71
    %p83 = scmp.eq.s32.totalorder %s19, 1
    %p84 = por %p82, %p83
    %p86 = scmp.ne.s32.totalorder %s71, %s85
    %p87 = scmp.eq.s32.totalorder %s19, 0
    %p88 = por %p86, %p87
    %s90 = sadd.s32 %s89, 1
    %p93 = scmp.eq.s32.totalorder %s13, 1
    %p94 = scmp.ne.s32.totalorder %s89, %s91
    %p95 = scmp.eq.s32.totalorder %s13, 0
    %p96 = por %p94, %p95
    %p97 = scmp.ne.s32.totalorder %s89, %s91
    %p98 = scmp.eq.s32.totalorder %s18, 1
    %p99 = por %p97, %p98
    %p100 = scmp.ne.s32.totalorder %s91, %s92
    %p101 = scmp.eq.s32.totalorder %s18, 0
    %p102 = por %p100, %p101
    %p103 = scmp.ne.s32.totalorder %s91, %s92
    %p104 = scmp.eq.s32.totalorder %s19, 1
    %p105 = por %p103, %p104
    %p107 = scmp.ne.s32.totalorder %s92, %s106
    %p108 = scmp.eq.s32.totalorder %s19, 0
    %p109 = por %p107, %p108
    %s111 = sadd.s32 %s110, 1
    %p114 = scmp.eq.s32.totalorder %s13, 1
    %p115 = scmp.ne.s32.totalorder %s110, %s112
    %p116 = scmp.eq.s32.totalorder %s13, 0
    %p117 = por %p115, %p116
    %p118 = scmp.ne.s32.totalorder %s110, %s112
    %p119 = scmp.eq.s32.totalorder %s18, 1
    %p120 = por %p118, %p119
    %p121 = scmp.ne.s32.totalorder %s112, %s113
    %p122 = scmp.eq.s32.totalorder %s18, 0
    %p123 = por %p121, %p122
    %p124 = scmp.ne.s32.totalorder %s112, %s113
    %p125 = scmp.eq.s32.totalorder %s19, 1
    %p126 = por %p124, %p125
    %p128 = scmp.ne.s32.totalorder %s113, %s127
    %p129 = scmp.eq.s32.totalorder %s19, 0
    %p130 = por %p128, %p129
    %s132 = sadd.s32 %s131, 1
    %p135 = scmp.eq.s32.totalorder %s13, 1
    %p136 = scmp.ne.s32.totalorder %s131, %s133
    %p137 = scmp.eq.s32.totalorder %s13, 0
    %p138 = por %p136, %p137
    %p139 = scmp.ne.s32.totalorder %s131, %s133
    %p140 = scmp.eq.s32.totalorder %s18, 1
    %p141 = por %p139, %p140
    %p142 = scmp.ne.s32.totalorder %s133, %s134
    %p143 = scmp.eq.s32.totalorder %s18, 0
    %p144 = por %p142, %p143
    %p145 = scmp.ne.s32.totalorder %s133, %s134
    %p146 = scmp.eq.s32.totalorder %s19, 1
    %p147 = por %p145, %p146
    %p149 = scmp.ne.s32.totalorder %s134, %s148
    %p150 = scmp.eq.s32.totalorder %s19, 0
    %p151 = por %p149, %p150
    %s153 = sadd.s32 %s152, 1
    %p156 = scmp.eq.s32.totalorder %s13, 1
    %p157 = scmp.ne.s32.totalorder %s152, %s154
    %p158 = scmp.eq.s32.totalorder %s13, 0
    %p159 = por %p157, %p158
    %p160 = scmp.ne.s32.totalorder %s152, %s154
    %p161 = scmp.eq.s32.totalorder %s18, 1
    %p162 = por %p160, %p161
    %p163 = scmp.ne.s32.totalorder %s154, %s155
    %p164 = scmp.eq.s32.totalorder %s18, 0
    %p165 = por %p163, %p164
    %p166 = scmp.ne.s32.totalorder %s154, %s155
    %p167 = scmp.eq.s32.totalorder %s19, 1
    %p168 = por %p166, %p167
    %p170 = scmp.ne.s32.totalorder %s155, %s169
    %p171 = scmp.eq.s32.totalorder %s19, 0
    %p172 = por %p170, %p171
    %s173 = ssub.s32 %s13, %s20
    %p174 = scmp.eq.s32.totalorder %s173, 0
    %s176 = sadd.s32 %s175, 1
    %s177 = scalar_select %p174, %s175, %s176
    %p180 = pneg %p174
    %p181 = scmp.eq.s32.totalorder %s13, 1
    %p182 = por %p180, %p181
    %p183 = scmp.ne.s32.totalorder %s175, %s178
    %p184 = scmp.eq.s32.totalorder %s13, 0
    %p185 = por %p183, %p184
    %p186 = scmp.ne.s32.totalorder %s175, %s178
    %p187 = scmp.eq.s32.totalorder %s18, 1
    %p188 = por %p186, %p187
    %p189 = scmp.ne.s32.totalorder %s178, %s179
    %p190 = scmp.eq.s32.totalorder %s18, 0
    %p191 = por %p189, %p190
    %p192 = scmp.ne.s32.totalorder %s178, %s179
    %p193 = scmp.eq.s32.totalorder %s19, 1
    %p194 = por %p192, %p193
    %p196 = scmp.ne.s32.totalorder %s179, %s195
    %p197 = scmp.eq.s32.totalorder %s19, 0
    %p198 = por %p196, %p197
    %p199 = scmp.le.s32.totalorder 1, %s13
    %p200 = scmp.lt.s32.totalorder %s13, 3
    %p201 = pnand %p199, %p200
    %p202 = pneg %p201
    // Predicated region
    $region9: #{mlp_forward.1} parent=5 // pred_check
      _
    $region10: #{mlp_forward.1} parent=5 // pred_check_branch
      %204 = sbr.rel (%p201) target = $region12
    $region11: #{mlp_forward.1} parent=5 // pred_region
      %s205 = ssub.s32 %s13, 1
      // Predicated region
      $region13: #{mlp_forward.1} parent=11 // pred_check
        %p206 = pneg %p60
      $region14: #{mlp_forward.1} parent=11 // pred_check_branch
        %208 = sbr.rel (%p206) target = $region16
      $region15: #{mlp_forward.1} parent=11 // pred_region
        _
      $region16: #{mlp_forward.1} parent=11 // pred_fallthru
        _
      // Predicated region
      $region17: #{mlp_forward.1} parent=11 // pred_check
        %p209 = pneg %p81
      $region18: #{mlp_forward.1} parent=11 // pred_check_branch
        %211 = sbr.rel (%p209) target = $region20
      $region19: #{mlp_forward.1} parent=11 // pred_region
        _
      $region20: #{mlp_forward.1} parent=11 // pred_fallthru
        _
      // Predicated region
      $region21: #{mlp_forward.1} parent=11 // pred_check
        %p212 = pneg %p102
      $region22: #{mlp_forward.1} parent=11 // pred_check_branch
        %214 = sbr.rel (%p212) target = $region24
      $region23: #{mlp_forward.1} parent=11 // pred_region
        _
      $region24: #{mlp_forward.1} parent=11 // pred_fallthru
        _
      // Predicated region
      $region25: #{mlp_forward.1} parent=11 // pred_check
        %p215 = pneg %p123
      $region26: #{mlp_forward.1} parent=11 // pred_check_branch
        %217 = sbr.rel (%p215) target = $region28
      $region27: #{mlp_forward.1} parent=11 // pred_region
        _
      $region28: #{mlp_forward.1} parent=11 // pred_fallthru
        _
      // Predicated region
      $region29: #{mlp_forward.1} parent=11 // pred_check
        %p218 = pneg %p144
      $region30: #{mlp_forward.1} parent=11 // pred_check_branch
        %220 = sbr.rel (%p218) target = $region32
      $region31: #{mlp_forward.1} parent=11 // pred_region
        _
      $region32: #{mlp_forward.1} parent=11 // pred_fallthru
        _
      // Predicated region
      $region33: #{mlp_forward.1} parent=11 // pred_check
        %p221 = pneg %p165
      $region34: #{mlp_forward.1} parent=11 // pred_check_branch
        %223 = sbr.rel (%p221) target = $region36
      $region35: #{mlp_forward.1} parent=11 // pred_region
        _
      $region36: #{mlp_forward.1} parent=11 // pred_fallthru
        _
    $region12: #{mlp_forward.1} parent=5 // pred_fallthru
      _
    %p224 = scmp.lt.s32.totalorder %s13, 2
    // Predicated region
    $region37: #{mlp_forward.1} parent=5 // pred_check
      %p225 = pneg %p224
    $region38: #{mlp_forward.1} parent=5 // pred_check_branch
      %227 = sbr.rel (%p225) target = $region40
    $region39: #{mlp_forward.1} parent=5 // pred_region
      // Predicated region
      $region41: #{mlp_forward.1} parent=39 // pred_check
        %p228 = pneg %p33
      $region42: #{mlp_forward.1} parent=39 // pred_check_branch
        %230 = sbr.rel (%p228) target = $region44
      $region43: #{mlp_forward.1} parent=39 // pred_region
        %p231 = scmp.lt.s32.totalorder %s13, 1
        %s232 = scalar_select %p231, %s13, 1
        %s233 = smul.addr %s232, 32
        %s234 = smul.addr %s233, 4
        %s235 = scalar_lea.vmem %s0, %s234
      $region44: #{mlp_forward.1} parent=39 // pred_fallthru
        _
    $region40: #{mlp_forward.1} parent=5 // pred_fallthru
      _
    %p236 = scmp.le.s32.totalorder 1, %s13
    %p237 = scmp.lt.s32.totalorder %s13, 3
    %p238 = pnand %p236, %p237
    %p239 = pneg %p238
    // Predicated region
    $region45: #{mlp_forward.1} parent=5 // pred_check
      _
    $region46: #{mlp_forward.1} parent=5 // pred_check_branch
      %241 = sbr.rel (%p238) target = $region48
    $region47: #{mlp_forward.1} parent=5 // pred_region
      %s242 = ssub.s32 %s13, 1
      %p243 = scmp.lt.s32.totalorder %s18, 1
      %s244 = scalar_select %p243, %s18, 1
      %s245 = smul.addr %s244, 32
      %s246 = smul.addr %s245, 4
      %s247 = scalar_lea.vmem %s0, %s246
      %p248 = pneg %p39
      %p249 = pneg %p36
      %p250 = pneg %p60
      %p251 = pneg %p57
      %p252 = pneg %p81
      %p253 = pneg %p78
      %p254 = pneg %p102
      %p255 = pneg %p99
      %p256 = pneg %p123
      %p257 = pneg %p120
      %p258 = pneg %p144
      %p259 = pneg %p141
      %p260 = pneg %p165
      %p261 = pneg %p162
      %p262 = pneg %p191
      %p263 = pneg %p188
      %p264 = scmp.lt.s32.totalorder %s18, 1
      %s265 = scalar_select %p264, %s18, 1
      %s266 = smul.addr %s265, 32
      %s267 = smul.addr %s266, 8
      %s268 = scalar_lea.vmem %s7, %s267
      %p269 = scmp.lt.s32.totalorder %s18, 1
      %s270 = scalar_select %p269, %s18, 1
      %s271 = smul.addr %s270, 32
      %s272 = smul.addr %s271, 4
      %s273 = scalar_lea.vmem %s0, %s272
      %p274 = scmp.lt.s32.totalorder %s18, 1
      %s275 = scalar_select %p274, %s18, 1
      %s276 = smul.addr %s275, 32
      %s277 = smul.addr %s276, 8
      %s278 = scalar_lea.vmem %s7, %s277
      %v280 = vld [vmem:[%s273] sm:$0xf]
      %v281 = vld [vmem:[%s273 + $0x4] sm:$0xf]
      %v282 = vld [vmem:[%s273 + $0x8] sm:$0xf]
      %v283 = vld [vmem:[%s273 + $0xc] sm:$0xf]
      %v284 = vld [vmem:[%s273 + $0x10] sm:$0xf]
      %v285 = vld [vmem:[%s273 + $0x14] sm:$0xf]
      %v286 = vld [vmem:[%s273 + $0x18] sm:$0xf]
      %v287 = vld [vmem:[%s273 + $0x1c] sm:$0xf]
      %v288 = vld [vmem:[%s273 + $0x20] sm:$0xf]
      %v289 = vld [vmem:[%s273 + $0x24] sm:$0xf]
      %v290 = vld [vmem:[%s273 + $0x28] sm:$0xf]
      %v291 = vld [vmem:[%s273 + $0x2c] sm:$0xf]
      %v292 = vld [vmem:[%s273 + $0x30] sm:$0xf]
      %v293 = vld [vmem:[%s273 + $0x34] sm:$0xf]
      %v294 = vld [vmem:[%s273 + $0x38] sm:$0xf]
      %v295 = vld [vmem:[%s273 + $0x3c] sm:$0xf]
      %v296 = vld [vmem:[%s273 + $0x40] sm:$0xf]
      %v297 = vld [vmem:[%s273 + $0x44] sm:$0xf]
      %v298 = vld [vmem:[%s273 + $0x48] sm:$0xf]
      %v299 = vld [vmem:[%s273 + $0x4c] sm:$0xf]
      %v300 = vld [vmem:[%s273 + $0x50] sm:$0xf]
      %v301 = vld [vmem:[%s273 + $0x54] sm:$0xf]
      %v302 = vld [vmem:[%s273 + $0x58] sm:$0xf]
      %v303 = vld [vmem:[%s273 + $0x5c] sm:$0xf]
      %v304 = vld [vmem:[%s273 + $0x60] sm:$0xf]
      %v305 = vld [vmem:[%s273 + $0x64] sm:$0xf]
      %v306 = vld [vmem:[%s273 + $0x68] sm:$0xf]
      %v307 = vld [vmem:[%s273 + $0x6c] sm:$0xf]
      %v308 = vld [vmem:[%s273 + $0x70] sm:$0xf]
      %v309 = vld [vmem:[%s273 + $0x74] sm:$0xf]
      %v310 = vld [vmem:[%s273 + $0x78] sm:$0xf]
      %v311 = vld [vmem:[%s273 + $0x7c] sm:$0xf]
      %v312 = vld [vmem:[%s1] sm:$0xff]
      %v313 = vld [vmem:[%s1 + $0x8] sm:$0xff]
      %v314 = vld [vmem:[%s1 + $0x10] sm:$0xff]
      %v315 = vld [vmem:[%s1 + $0x18] sm:$0xff]
      %v316 = vld [vmem:[%s1 + $0x20] sm:$0xff]
      %v317 = vld [vmem:[%s1 + $0x28] sm:$0xff]
      %v318 = vld [vmem:[%s1 + $0x30] sm:$0xff]
      %v319 = vld [vmem:[%s1 + $0x38] sm:$0xff]
      %v320 = vld [vmem:[%s2] sm:$0x3]
      %v322 = vlaneseq
      %v323 = vshrl.u32 %v322, 7
      %v324 = vsub.s32 0, %v323
      %v325 = vrot.slane %v320, %v324
      %v326 = vlaneseq
      %v327 = vshrl.u32 %v326, 7
      %v328 = vsub.s32 1, %v327
      %v329 = vrot.slane %v320, %v328
      %v364 = vunpack.c.l.b16 %v280
      %v365 = vunpack.c.l.b16 %v281
      %v366 = vunpack.c.l.b16 %v282
      %v367 = vunpack.c.l.b16 %v283
      %v368 = vunpack.c.l.b16 %v284
      %v369 = vunpack.c.l.b16 %v285
      %v370 = vunpack.c.l.b16 %v286
      %v371 = vunpack.c.l.b16 %v287
      %v372 = vunpack.c.l.b16 %v288
      %v373 = vunpack.c.l.b16 %v289
      %v374 = vunpack.c.l.b16 %v290
      %v375 = vunpack.c.l.b16 %v291
      %v376 = vunpack.c.l.b16 %v292
      %v377 = vunpack.c.l.b16 %v293
      %v378 = vunpack.c.l.b16 %v294
      %v379 = vunpack.c.l.b16 %v295
      %v380 = vunpack.c.l.b16 %v296
      %v381 = vunpack.c.l.b16 %v297
      %v382 = vunpack.c.l.b16 %v298
      %v383 = vunpack.c.l.b16 %v299
      %v384 = vunpack.c.l.b16 %v300
      %v385 = vunpack.c.l.b16 %v301
      %v386 = vunpack.c.l.b16 %v302
      %v387 = vunpack.c.l.b16 %v303
      %v388 = vunpack.c.l.b16 %v304
      %v389 = vunpack.c.l.b16 %v305
      %v390 = vunpack.c.l.b16 %v306
      %v391 = vunpack.c.l.b16 %v307
      %v392 = vunpack.c.l.b16 %v308
      %v393 = vunpack.c.l.b16 %v309
      %v394 = vunpack.c.l.b16 %v310
      %v395 = vunpack.c.l.b16 %v311
      %v396 = vpack.c.b16 %v365, %v364
      %v397 = vpack.c.b16 %v367, %v366
      %v398 = vpack.c.b16 %v369, %v368
      %v399 = vpack.c.b16 %v371, %v370
      %v400 = vpack.c.b16 %v373, %v372
      %v401 = vpack.c.b16 %v375, %v374
      %v402 = vpack.c.b16 %v377, %v376
      %v403 = vpack.c.b16 %v379, %v378
      %v404 = vpack.c.b16 %v381, %v380
      %v405 = vpack.c.b16 %v383, %v382
      %v406 = vpack.c.b16 %v385, %v384
      %v407 = vpack.c.b16 %v387, %v386
      %v408 = vpack.c.b16 %v389, %v388
      %v409 = vpack.c.b16 %v391, %v390
      %v410 = vpack.c.b16 %v393, %v392
      %v411 = vpack.c.b16 %v395, %v394
      %v420 = vunpack.c.l.b16 %v312
      %v421 = vunpack.c.h.b16 %v312
      %v422 = vunpack.c.l.b16 %v313
      %v423 = vunpack.c.h.b16 %v313
      %v424 = vunpack.c.l.b16 %v314
      %v425 = vunpack.c.h.b16 %v314
      %v426 = vunpack.c.l.b16 %v315
      %v427 = vunpack.c.h.b16 %v315
      %v428 = vunpack.c.l.b16 %v316
      %v429 = vunpack.c.h.b16 %v316
      %v430 = vunpack.c.l.b16 %v317
      %v431 = vunpack.c.h.b16 %v317
      %v432 = vunpack.c.l.b16 %v318
      %v433 = vunpack.c.h.b16 %v318
      %v434 = vunpack.c.l.b16 %v319
      %v435 = vunpack.c.h.b16 %v319
      %v436 = vpack.c.b16 %v422, %v420
      %v437 = vpack.c.b16 %v423, %v421
      %v438 = vpack.c.b16 %v426, %v424
      %v439 = vpack.c.b16 %v427, %v425
      %v440 = vpack.c.b16 %v430, %v428
      %v441 = vpack.c.b16 %v431, %v429
      %v442 = vpack.c.b16 %v434, %v432
      %v443 = vpack.c.b16 %v435, %v433
      %vm452 = vcmask 523264
      %v454 = vsel %vm452, %v396, 0
      %v457 = vsel %vm452, %v397, 0
      %v460 = vsel %vm452, %v398, 0
      %v463 = vsel %vm452, %v399, 0
      %v466 = vsel %vm452, %v400, 0
      %v469 = vsel %vm452, %v401, 0
      %v472 = vsel %vm452, %v402, 0
      %v475 = vsel %vm452, %v403, 0
      %v478 = vsel %vm452, %v404, 0
      %v481 = vsel %vm452, %v405, 0
      %v484 = vsel %vm452, %v406, 0
      %v487 = vsel %vm452, %v407, 0
      %v490 = vsel %vm452, %v408, 0
      %v493 = vsel %vm452, %v409, 0
      %v496 = vsel %vm452, %v410, 0
      %v499 = vsel %vm452, %v411, 0
      %501 = vmatprep.subr.bf16.mxu0 %v437
      %502 = vmatpush1.bf16.msra.mxu0 %v436
      %503 = vmatprep.subr.bf16.mxu0 %v439
      %504 = vmatpush1.bf16.msra.mxu0 %v438
      %505 = vmatprep.subr.bf16.mxu0 %v441
      %506 = vmatpush1.bf16.msra.mxu0 %v440
      %507 = vmatprep.subr.bf16.mxu0 %v443
      %508 = vmatpush1.bf16.msra.mxu0 %v442
      %509 = vmatprep.subr.bf16.mxu0 0
      %510 = vmatpush1.bf16.msra.mxu0 0
      %511 = vmatprep.subr.bf16.mxu0 0
      %512 = vmatpush1.bf16.msra.mxu0 0
      %513 = vmatprep.subr.bf16.mxu0 0
      %514 = vmatpush1.bf16.msra.mxu0 0
      %515 = vmatprep.subr.bf16.mxu0 0
      %516 = vmatpush1.bf16.msra.mxu0 0
      %517 = vmatprep.subr.bf16.mxu0 0
      %518 = vmatpush1.bf16.msra.mxu0 0
      %519 = vmatprep.subr.bf16.mxu0 0
      %520 = vmatpush1.bf16.msra.mxu0 0
      %521 = vmatprep.subr.bf16.mxu0 0
      %522 = vmatpush1.bf16.msra.mxu0 0
      %523 = vmatprep.subr.bf16.mxu0 0
      %524 = vmatpush1.bf16.msra.mxu0 0
      %525 = vmatprep.subr.bf16.mxu0 0
      %526 = vmatpush1.bf16.msra.mxu0 0
      %527 = vmatprep.subr.bf16.mxu0 0
      %528 = vmatpush1.bf16.msra.mxu0 0
      %529 = vmatprep.subr.bf16.mxu0 0
      %530 = vmatpush1.bf16.msra.mxu0 0
      %531 = vmatprep.subr.bf16.mxu0 0
      %532 = vmatpush1.bf16.msra.mxu0 0
      %533 = vmatprep.mubr.bf16.mxu0 0
      %534 = vmatmul.mubr.bf16.gmra.mrb[0].mxu0 %v454
      %v535 = vpop.f32.mrb[0].mxu0
      %v536 = vadd.f32 %v325, %v535
      %v537 = vpop.f32.mrb[0].mxu0
      %v538 = vadd.f32 %v329, %v537
      %v539 = vpop.f32.mrb[0].mxu0
      %v540 = vadd.f32 %v325, %v539
      %v541 = vpop.f32.mrb[0].mxu0
      %v542 = vadd.f32 %v329, %v541
      %543 = vmatprep.mubr.bf16.mxu0 0
      %544 = vmatmul.mubr.bf16.gmra.mrb[0].mxu0 %v457
      %v545 = vpop.f32.mrb[0].mxu0
      %v546 = vadd.f32 %v325, %v545
      %v547 = vpop.f32.mrb[0].mxu0
      %v548 = vadd.f32 %v329, %v547
      %v549 = vpop.f32.mrb[0].mxu0
      %v550 = vadd.f32 %v325, %v549
      %v551 = vpop.f32.mrb[0].mxu0
      %v552 = vadd.f32 %v329, %v551
      %553 = vmatprep.mubr.bf16.mxu0 0
      %554 = vmatmul.mubr.bf16.gmra.mrb[0].mxu0 %v460
      %v555 = vpop.f32.mrb[0].mxu0
      %v556 = vadd.f32 %v325, %v555
      %v557 = vpop.f32.mrb[0].mxu0
      %v558 = vadd.f32 %v329, %v557
      %v559 = vpop.f32.mrb[0].mxu0
      %v560 = vadd.f32 %v325, %v559
      %v561 = vpop.f32.mrb[0].mxu0
      %v562 = vadd.f32 %v329, %v561
      %563 = vmatprep.mubr.bf16.mxu0 0
      %564 = vmatmul.mubr.bf16.gmra.mrb[0].mxu0 %v463
      %v565 = vpop.f32.mrb[0].mxu0
      %v566 = vadd.f32 %v325, %v565
      %v567 = vpop.f32.mrb[0].mxu0
      %v568 = vadd.f32 %v329, %v567
      %v569 = vpop.f32.mrb[0].mxu0
      %v570 = vadd.f32 %v325, %v569
      %v571 = vpop.f32.mrb[0].mxu0
      %v572 = vadd.f32 %v329, %v571
      %573 = vmatprep.mubr.bf16.mxu0 0
      %574 = vmatmul.mubr.bf16.gmra.mrb[0].mxu0 %v466
      %v575 = vpop.f32.mrb[0].mxu0
      %v576 = vadd.f32 %v325, %v575
      %v577 = vpop.f32.mrb[0].mxu0
      %v578 = vadd.f32 %v329, %v577
      %v579 = vpop.f32.mrb[0].mxu0
      %v580 = vadd.f32 %v325, %v579
      %v581 = vpop.f32.mrb[0].mxu0
      %v582 = vadd.f32 %v329, %v581
      %583 = vmatprep.mubr.bf16.mxu0 0
      %584 = vmatmul.mubr.bf16.gmra.mrb[0].mxu0 %v469
      %v585 = vpop.f32.mrb[0].mxu0
      %v586 = vadd.f32 %v325, %v585
      %v587 = vpop.f32.mrb[0].mxu0
      %v588 = vadd.f32 %v329, %v587
      %v589 = vpop.f32.mrb[0].mxu0
      %v590 = vadd.f32 %v325, %v589
      %v591 = vpop.f32.mrb[0].mxu0
      %v592 = vadd.f32 %v329, %v591
      %593 = vmatprep.mubr.bf16.mxu0 0
      %594 = vmatmul.mubr.bf16.gmra.mrb[0].mxu0 %v472
      %v595 = vpop.f32.mrb[0].mxu0
      %v596 = vadd.f32 %v325, %v595
      %v597 = vpop.f32.mrb[0].mxu0
      %v598 = vadd.f32 %v329, %v597
      %v599 = vpop.f32.mrb[0].mxu0
      %v600 = vadd.f32 %v325, %v599
      %v601 = vpop.f32.mrb[0].mxu0
      %v602 = vadd.f32 %v329, %v601
      %603 = vmatprep.mubr.bf16.mxu0 0
      %604 = vmatmul.mubr.bf16.gmra.mrb[0].mxu0 %v475
      %v605 = vpop.f32.mrb[0].mxu0
      %v606 = vadd.f32 %v325, %v605
      %v607 = vpop.f32.mrb[0].mxu0
      %v608 = vadd.f32 %v329, %v607
      %v609 = vpop.f32.mrb[0].mxu0
      %v610 = vadd.f32 %v325, %v609
      %v611 = vpop.f32.mrb[0].mxu0
      %v612 = vadd.f32 %v329, %v611
      %613 = vmatprep.mubr.bf16.mxu0 0
      %614 = vmatmul.mubr.bf16.gmra.mrb[0].mxu0 %v478
      %v615 = vpop.f32.mrb[0].mxu0
      %v616 = vadd.f32 %v325, %v615
      %v617 = vpop.f32.mrb[0].mxu0
      %v618 = vadd.f32 %v329, %v617
      %v619 = vpop.f32.mrb[0].mxu0
      %v620 = vadd.f32 %v325, %v619
      %v621 = vpop.f32.mrb[0].mxu0
      %v622 = vadd.f32 %v329, %v621
      %623 = vmatprep.mubr.bf16.mxu0 0
      %624 = vmatmul.mubr.bf16.gmra.mrb[0].mxu0 %v481
      %v625 = vpop.f32.mrb[0].mxu0
      %v626 = vadd.f32 %v325, %v625
      %v627 = vpop.f32.mrb[0].mxu0
      %v628 = vadd.f32 %v329, %v627
      %v629 = vpop.f32.mrb[0].mxu0
      %v630 = vadd.f32 %v325, %v629
      %v631 = vpop.f32.mrb[0].mxu0
      %v632 = vadd.f32 %v329, %v631
      %633 = vmatprep.mubr.bf16.mxu0 0
      %634 = vmatmul.mubr.bf16.gmra.mrb[0].mxu0 %v484
      %v635 = vpop.f32.mrb[0].mxu0
      %v636 = vadd.f32 %v325, %v635
      %v637 = vpop.f32.mrb[0].mxu0
      %v638 = vadd.f32 %v329, %v637
      %v639 = vpop.f32.mrb[0].mxu0
      %v640 = vadd.f32 %v325, %v639
      %v641 = vpop.f32.mrb[0].mxu0
      %v642 = vadd.f32 %v329, %v641
      %643 = vmatprep.mubr.bf16.mxu0 0
      %644 = vmatmul.mubr.bf16.gmra.mrb[0].mxu0 %v487
      %v645 = vpop.f32.mrb[0].mxu0
      %v646 = vadd.f32 %v325, %v645
      %v647 = vpop.f32.mrb[0].mxu0
      %v648 = vadd.f32 %v329, %v647
      %v649 = vpop.f32.mrb[0].mxu0
      %v650 = vadd.f32 %v325, %v649
      %v651 = vpop.f32.mrb[0].mxu0
      %v652 = vadd.f32 %v329, %v651
      %653 = vmatprep.mubr.bf16.mxu0 0
      %654 = vmatmul.mubr.bf16.gmra.mrb[0].mxu0 %v490
      %v655 = vpop.f32.mrb[0].mxu0
      %v656 = vadd.f32 %v325, %v655
      %v657 = vpop.f32.mrb[0].mxu0
      %v658 = vadd.f32 %v329, %v657
      %v659 = vpop.f32.mrb[0].mxu0
      %v660 = vadd.f32 %v325, %v659
      %v661 = vpop.f32.mrb[0].mxu0
      %v662 = vadd.f32 %v329, %v661
      %663 = vmatprep.mubr.bf16.mxu0 0
      %664 = vmatmul.mubr.bf16.gmra.mrb[0].mxu0 %v493
      %v665 = vpop.f32.mrb[0].mxu0
      %v666 = vadd.f32 %v325, %v665
      %v667 = vpop.f32.mrb[0].mxu0
      %v668 = vadd.f32 %v329, %v667
      %v669 = vpop.f32.mrb[0].mxu0
      %v670 = vadd.f32 %v325, %v669
      %v671 = vpop.f32.mrb[0].mxu0
      %v672 = vadd.f32 %v329, %v671
      %673 = vmatprep.mubr.bf16.mxu0 0
      %674 = vmatmul.mubr.bf16.gmra.mrb[0].mxu0 %v496
      %v675 = vpop.f32.mrb[0].mxu0
      %v676 = vadd.f32 %v325, %v675
      %v677 = vpop.f32.mrb[0].mxu0
      %v678 = vadd.f32 %v329, %v677
      %v679 = vpop.f32.mrb[0].mxu0
      %v680 = vadd.f32 %v325, %v679
      %v681 = vpop.f32.mrb[0].mxu0
      %v682 = vadd.f32 %v329, %v681
      %683 = vmatprep.mubr.bf16.mxu0 0
      %684 = vmatmul.mubr.bf16.gmra.mrb[0].mxu0 %v499
      %v685 = vpop.f32.mrb[0].mxu0
      %v686 = vadd.f32 %v325, %v685
      %v687 = vpop.f32.mrb[0].mxu0
      %v688 = vadd.f32 %v329, %v687
      %v689 = vpop.f32.mrb[0].mxu0
      %v690 = vadd.f32 %v325, %v689
      %v691 = vpop.f32.mrb[0].mxu0
      %v692 = vadd.f32 %v329, %v691
      %693 = vdwg.mxu0
      %694 = vst [vmem:[#allocation2] sm:$0xff] 0.0
      %695 = vst [vmem:[#allocation2 + $0x8] sm:$0xff] 0.0
      %696 = vst [vmem:[#allocation2 + $0x10] sm:$0xff] 0.0
      %697 = vst [vmem:[#allocation2 + $0x18] sm:$0xff] 0.0
      %698 = vst [vmem:[#allocation2 + $0x20] sm:$0xff] 0.0
      %699 = vst [vmem:[#allocation2 + $0x28] sm:$0xff] 0.0
      %700 = vst [vmem:[#allocation2 + $0x30] sm:$0xff] 0.0
      %701 = vst [vmem:[#allocation2 + $0x38] sm:$0xff] 0.0
      %702 = vst [vmem:[#allocation2 + $0x40] sm:$0xff] 0.0
      %703 = vst [vmem:[#allocation2 + $0x48] sm:$0xff] 0.0
      %704 = vst [vmem:[#allocation2 + $0x50] sm:$0xff] 0.0
      %705 = vst [vmem:[#allocation2 + $0x58] sm:$0xff] 0.0
      %706 = vst [vmem:[#allocation2 + $0x60] sm:$0xff] 0.0
      %707 = vst [vmem:[#allocation2 + $0x68] sm:$0xff] 0.0
      %708 = vst [vmem:[#allocation2 + $0x70] sm:$0xff] 0.0
      %709 = vst [vmem:[#allocation2 + $0x78] sm:$0xff] 0.0
      %710 = vst [vmem:[#allocation2 + $0x80] sm:$0xff] 0.0
      %711 = vst [vmem:[#allocation2 + $0x88] sm:$0xff] 0.0
      %712 = vst [vmem:[#allocation2 + $0x90] sm:$0xff] 0.0
      %713 = vst [vmem:[#allocation2 + $0x98] sm:$0xff] 0.0
      %714 = vst [vmem:[#allocation2 + $0xa0] sm:$0xff] 0.0
      %715 = vst [vmem:[#allocation2 + $0xa8] sm:$0xff] 0.0
      %716 = vst [vmem:[#allocation2 + $0xb0] sm:$0xff] 0.0
      %717 = vst [vmem:[#allocation2 + $0xb8] sm:$0xff] 0.0
      %718 = vst [vmem:[#allocation2 + $0xc0] sm:$0xff] 0.0
      %719 = vst [vmem:[#allocation2 + $0xc8] sm:$0xff] 0.0
      %720 = vst [vmem:[#allocation2 + $0xd0] sm:$0xff] 0.0
      %721 = vst [vmem:[#allocation2 + $0xd8] sm:$0xff] 0.0
      %722 = vst [vmem:[#allocation2 + $0xe0] sm:$0xff] 0.0
      %723 = vst [vmem:[#allocation2 + $0xe8] sm:$0xff] 0.0
      %724 = vst [vmem:[#allocation2 + $0xf0] sm:$0xff] 0.0
      %725 = vst [vmem:[#allocation2 + $0xf8] sm:$0xff] 0.0
      %726 = vst [vmem:[#allocation2 + $0x100] sm:$0xff] 0.0
      %727 = vst [vmem:[#allocation2 + $0x108] sm:$0xff] 0.0
      %728 = vst [vmem:[#allocation2 + $0x110] sm:$0xff] 0.0
      %729 = vst [vmem:[#allocation2 + $0x118] sm:$0xff] 0.0
      %730 = vst [vmem:[#allocation2 + $0x120] sm:$0xff] 0.0
      %731 = vst [vmem:[#allocation2 + $0x128] sm:$0xff] 0.0
      %732 = vst [vmem:[#allocation2 + $0x130] sm:$0xff] 0.0
      %733 = vst [vmem:[#allocation2 + $0x138] sm:$0xff] 0.0
      %734 = vst [vmem:[#allocation2 + $0x140] sm:$0xff] 0.0
      %735 = vst [vmem:[#allocation2 + $0x148] sm:$0xff] 0.0
      %736 = vst [vmem:[#allocation2 + $0x150] sm:$0xff] 0.0
      %737 = vst [vmem:[#allocation2 + $0x158] sm:$0xff] 0.0
      %738 = vst [vmem:[#allocation2 + $0x160] sm:$0xff] 0.0
      %739 = vst [vmem:[#allocation2 + $0x168] sm:$0xff] 0.0
      %740 = vst [vmem:[#allocation2 + $0x170] sm:$0xff] 0.0
      %741 = vst [vmem:[#allocation2 + $0x178] sm:$0xff] 0.0
      %742 = vst [vmem:[#allocation2 + $0x180] sm:$0xff] 0.0
      %743 = vst [vmem:[#allocation2 + $0x188] sm:$0xff] 0.0
      %744 = vst [vmem:[#allocation2 + $0x190] sm:$0xff] 0.0
      %745 = vst [vmem:[#allocation2 + $0x198] sm:$0xff] 0.0
      %746 = vst [vmem:[#allocation2 + $0x1a0] sm:$0xff] 0.0
      %747 = vst [vmem:[#allocation2 + $0x1a8] sm:$0xff] 0.0
      %748 = vst [vmem:[#allocation2 + $0x1b0] sm:$0xff] 0.0
      %749 = vst [vmem:[#allocation2 + $0x1b8] sm:$0xff] 0.0
      %750 = vst [vmem:[#allocation2 + $0x1c0] sm:$0xff] 0.0
      %751 = vst [vmem:[#allocation2 + $0x1c8] sm:$0xff] 0.0
      %752 = vst [vmem:[#allocation2 + $0x1d0] sm:$0xff] 0.0
      %753 = vst [vmem:[#allocation2 + $0x1d8] sm:$0xff] 0.0
      %754 = vst [vmem:[#allocation2 + $0x1e0] sm:$0xff] 0.0
      %755 = vst [vmem:[#allocation2 + $0x1e8] sm:$0xff] 0.0
      %756 = vst [vmem:[#allocation2 + $0x1f0] sm:$0xff] 0.0
      %757 = vst [vmem:[#allocation2 + $0x1f8] sm:$0xff] 0.0
      %758 = vst [vmem:[#allocation2 + $0x200] sm:$0xff] 0.0
      %759 = vst [vmem:[#allocation2 + $0x208] sm:$0xff] 0.0
      %760 = vst [vmem:[#allocation2 + $0x210] sm:$0xff] 0.0
      %761 = vst [vmem:[#allocation2 + $0x218] sm:$0xff] 0.0
      %762 = vst [vmem:[#allocation2 + $0x220] sm:$0xff] 0.0
      %763 = vst [vmem:[#allocation2 + $0x228] sm:$0xff] 0.0
      %764 = vst [vmem:[#allocation2 + $0x230] sm:$0xff] 0.0
      %765 = vst [vmem:[#allocation2 + $0x238] sm:$0xff] 0.0
      %766 = vst [vmem:[#allocation2 + $0x240] sm:$0xff] 0.0
      %767 = vst [vmem:[#allocation2 + $0x248] sm:$0xff] 0.0
      %768 = vst [vmem:[#allocation2 + $0x250] sm:$0xff] 0.0
      %769 = vst [vmem:[#allocation2 + $0x258] sm:$0xff] 0.0
      %770 = vst [vmem:[#allocation2 + $0x260] sm:$0xff] 0.0
      %771 = vst [vmem:[#allocation2 + $0x268] sm:$0xff] 0.0
      %772 = vst [vmem:[#allocation2 + $0x270] sm:$0xff] 0.0
      %773 = vst [vmem:[#allocation2 + $0x278] sm:$0xff] 0.0
      %774 = vst [vmem:[#allocation2 + $0x280] sm:$0xff] 0.0
      %775 = vst [vmem:[#allocation2 + $0x288] sm:$0xff] 0.0
      %776 = vst [vmem:[#allocation2 + $0x290] sm:$0xff] 0.0
      %777 = vst [vmem:[#allocation2 + $0x298] sm:$0xff] 0.0
      %778 = vst [vmem:[#allocation2 + $0x2a0] sm:$0xff] 0.0
      %779 = vst [vmem:[#allocation2 + $0x2a8] sm:$0xff] 0.0
      %780 = vst [vmem:[#allocation2 + $0x2b0] sm:$0xff] 0.0
      %781 = vst [vmem:[#allocation2 + $0x2b8] sm:$0xff] 0.0
      %782 = vst [vmem:[#allocation2 + $0x2c0] sm:$0xff] 0.0
      %783 = vst [vmem:[#allocation2 + $0x2c8] sm:$0xff] 0.0
      %784 = vst [vmem:[#allocation2 + $0x2d0] sm:$0xff] 0.0
      %785 = vst [vmem:[#allocation2 + $0x2d8] sm:$0xff] 0.0
      %786 = vst [vmem:[#allocation2 + $0x2e0] sm:$0xff] 0.0
      %787 = vst [vmem:[#allocation2 + $0x2e8] sm:$0xff] 0.0
      %788 = vst [vmem:[#allocation2 + $0x2f0] sm:$0xff] 0.0
      %789 = vst [vmem:[#allocation2 + $0x2f8] sm:$0xff] 0.0
      %790 = vst [vmem:[#allocation2 + $0x300] sm:$0xff] 0.0
      %791 = vst [vmem:[#allocation2 + $0x308] sm:$0xff] 0.0
      %792 = vst [vmem:[#allocation2 + $0x310] sm:$0xff] 0.0
      %793 = vst [vmem:[#allocation2 + $0x318] sm:$0xff] 0.0
      %794 = vst [vmem:[#allocation2 + $0x320] sm:$0xff] 0.0
      %795 = vst [vmem:[#allocation2 + $0x328] sm:$0xff] 0.0
      %796 = vst [vmem:[#allocation2 + $0x330] sm:$0xff] 0.0
      %797 = vst [vmem:[#allocation2 + $0x338] sm:$0xff] 0.0
      %798 = vst [vmem:[#allocation2 + $0x340] sm:$0xff] 0.0
      %799 = vst [vmem:[#allocation2 + $0x348] sm:$0xff] 0.0
      %800 = vst [vmem:[#allocation2 + $0x350] sm:$0xff] 0.0
      %801 = vst [vmem:[#allocation2 + $0x358] sm:$0xff] 0.0
      %802 = vst [vmem:[#allocation2 + $0x360] sm:$0xff] 0.0
      %803 = vst [vmem:[#allocation2 + $0x368] sm:$0xff] 0.0
      %804 = vst [vmem:[#allocation2 + $0x370] sm:$0xff] 0.0
      %805 = vst [vmem:[#allocation2 + $0x378] sm:$0xff] 0.0
      %806 = vst [vmem:[#allocation2 + $0x380] sm:$0xff] 0.0
      %807 = vst [vmem:[#allocation2 + $0x388] sm:$0xff] 0.0
      %808 = vst [vmem:[#allocation2 + $0x390] sm:$0xff] 0.0
      %809 = vst [vmem:[#allocation2 + $0x398] sm:$0xff] 0.0
      %810 = vst [vmem:[#allocation2 + $0x3a0] sm:$0xff] 0.0
      %811 = vst [vmem:[#allocation2 + $0x3a8] sm:$0xff] 0.0
      %812 = vst [vmem:[#allocation2 + $0x3b0] sm:$0xff] 0.0
      %813 = vst [vmem:[#allocation2 + $0x3b8] sm:$0xff] 0.0
      %814 = vst [vmem:[#allocation2 + $0x3c0] sm:$0xff] 0.0
      %815 = vst [vmem:[#allocation2 + $0x3c8] sm:$0xff] 0.0
      %816 = vst [vmem:[#allocation2 + $0x3d0] sm:$0xff] 0.0
      %817 = vst [vmem:[#allocation2 + $0x3d8] sm:$0xff] 0.0
      %818 = vst [vmem:[#allocation2 + $0x3e0] sm:$0xff] 0.0
      %819 = vst [vmem:[#allocation2 + $0x3e8] sm:$0xff] 0.0
      %820 = vst [vmem:[#allocation2 + $0x3f0] sm:$0xff] 0.0
      %821 = vst [vmem:[#allocation2 + $0x3f8] sm:$0xff] 0.0
      %822 = vst [vmem:[#allocation2 + $0x400] sm:$0xff] 0.0
      %823 = vst [vmem:[#allocation2 + $0x408] sm:$0xff] 0.0
      %824 = vst [vmem:[#allocation2 + $0x410] sm:$0xff] 0.0
      %825 = vst [vmem:[#allocation2 + $0x418] sm:$0xff] 0.0
      %826 = vst [vmem:[#allocation2 + $0x420] sm:$0xff] 0.0
      %827 = vst [vmem:[#allocation2 + $0x428] sm:$0xff] 0.0
      %828 = vst [vmem:[#allocation2 + $0x430] sm:$0xff] 0.0
      %829 = vst [vmem:[#allocation2 + $0x438] sm:$0xff] 0.0
      %830 = vst [vmem:[#allocation2 + $0x440] sm:$0xff] 0.0
      %831 = vst [vmem:[#allocation2 + $0x448] sm:$0xff] 0.0
      %832 = vst [vmem:[#allocation2 + $0x450] sm:$0xff] 0.0
      %833 = vst [vmem:[#allocation2 + $0x458] sm:$0xff] 0.0
      %834 = vst [vmem:[#allocation2 + $0x460] sm:$0xff] 0.0
      %835 = vst [vmem:[#allocation2 + $0x468] sm:$0xff] 0.0
      %836 = vst [vmem:[#allocation2 + $0x470] sm:$0xff] 0.0
      %837 = vst [vmem:[#allocation2 + $0x478] sm:$0xff] 0.0
      %s838 = scalar_lea.vmem [#allocation2], 64
      %839 = vst [vmem:[%s838 + $0x10] sm:$0xff] %v536
      %840 = vst [vmem:[%s838 + $0x18] sm:$0xff] %v538
      %841 = vst [vmem:[%s838 + $0x20] sm:$0xff] %v540
      %842 = vst [vmem:[%s838 + $0x28] sm:$0xff] %v542
      %843 = vst [vmem:[%s838 + $0x50] sm:$0xff] %v546
      %844 = vst [vmem:[%s838 + $0x58] sm:$0xff] %v548
      %845 = vst [vmem:[%s838 + $0x60] sm:$0xff] %v550
      %846 = vst [vmem:[%s838 + $0x68] sm:$0xff] %v552
      %847 = vst [vmem:[%s838 + $0x90] sm:$0xff] %v556
      %848 = vst [vmem:[%s838 + $0x98] sm:$0xff] %v558
      %849 = vst [vmem:[%s838 + $0xa0] sm:$0xff] %v560
      %850 = vst [vmem:[%s838 + $0xa8] sm:$0xff] %v562
      %851 = vst [vmem:[%s838 + $0xd0] sm:$0xff] %v566
      %852 = vst [vmem:[%s838 + $0xd8] sm:$0xff] %v568
      %853 = vst [vmem:[%s838 + $0xe0] sm:$0xff] %v570
      %854 = vst [vmem:[%s838 + $0xe8] sm:$0xff] %v572
      %855 = vst [vmem:[%s838 + $0x110] sm:$0xff] %v576
      %856 = vst [vmem:[%s838 + $0x118] sm:$0xff] %v578
      %857 = vst [vmem:[%s838 + $0x120] sm:$0xff] %v580
      %858 = vst [vmem:[%s838 + $0x128] sm:$0xff] %v582
      %859 = vst [vmem:[%s838 + $0x150] sm:$0xff] %v586
      %860 = vst [vmem:[%s838 + $0x158] sm:$0xff] %v588
      %861 = vst [vmem:[%s838 + $0x160] sm:$0xff] %v590
      %862 = vst [vmem:[%s838 + $0x168] sm:$0xff] %v592
      %863 = vst [vmem:[%s838 + $0x190] sm:$0xff] %v596
      %864 = vst [vmem:[%s838 + $0x198] sm:$0xff] %v598
      %865 = vst [vmem:[%s838 + $0x1a0] sm:$0xff] %v600
      %866 = vst [vmem:[%s838 + $0x1a8] sm:$0xff] %v602
      %867 = vst [vmem:[%s838 + $0x1d0] sm:$0xff] %v606
      %868 = vst [vmem:[%s838 + $0x1d8] sm:$0xff] %v608
      %869 = vst [vmem:[%s838 + $0x1e0] sm:$0xff] %v610
      %870 = vst [vmem:[%s838 + $0x1e8] sm:$0xff] %v612
      %871 = vst [vmem:[%s838 + $0x210] sm:$0xff] %v616
      %872 = vst [vmem:[%s838 + $0x218] sm:$0xff] %v618
      %873 = vst [vmem:[%s838 + $0x220] sm:$0xff] %v620
      %874 = vst [vmem:[%s838 + $0x228] sm:$0xff] %v622
      %875 = vst [vmem:[%s838 + $0x250] sm:$0xff] %v626
      %876 = vst [vmem:[%s838 + $0x258] sm:$0xff] %v628
      %877 = vst [vmem:[%s838 + $0x260] sm:$0xff] %v630
      %878 = vst [vmem:[%s838 + $0x268] sm:$0xff] %v632
      %879 = vst [vmem:[%s838 + $0x290] sm:$0xff] %v636
      %880 = vst [vmem:[%s838 + $0x298] sm:$0xff] %v638
      %881 = vst [vmem:[%s838 + $0x2a0] sm:$0xff] %v640
      %882 = vst [vmem:[%s838 + $0x2a8] sm:$0xff] %v642
      %883 = vst [vmem:[%s838 + $0x2d0] sm:$0xff] %v646
      %884 = vst [vmem:[%s838 + $0x2d8] sm:$0xff] %v648
      %885 = vst [vmem:[%s838 + $0x2e0] sm:$0xff] %v650
      %886 = vst [vmem:[%s838 + $0x2e8] sm:$0xff] %v652
      %887 = vst [vmem:[%s838 + $0x310] sm:$0xff] %v656
      %888 = vst [vmem:[%s838 + $0x318] sm:$0xff] %v658
      %889 = vst [vmem:[%s838 + $0x320] sm:$0xff] %v660
      %890 = vst [vmem:[%s838 + $0x328] sm:$0xff] %v662
      %891 = vst [vmem:[%s838 + $0x350] sm:$0xff] %v666
      %892 = vst [vmem:[%s838 + $0x358] sm:$0xff] %v668
      %893 = vst [vmem:[%s838 + $0x360] sm:$0xff] %v670
      %894 = vst [vmem:[%s838 + $0x368] sm:$0xff] %v672
      %895 = vst [vmem:[%s838 + $0x390] sm:$0xff] %v676
      %896 = vst [vmem:[%s838 + $0x398] sm:$0xff] %v678
      %897 = vst [vmem:[%s838 + $0x3a0] sm:$0xff] %v680
      %898 = vst [vmem:[%s838 + $0x3a8] sm:$0xff] %v682
      %899 = vst [vmem:[%s838 + $0x3d0] sm:$0xff] %v686
      %900 = vst [vmem:[%s838 + $0x3d8] sm:$0xff] %v688
      %901 = vst [vmem:[%s838 + $0x3e0] sm:$0xff] %v690
      %902 = vst [vmem:[%s838 + $0x3e8] sm:$0xff] %v692
      %v903 = vld [vmem:[%s3] ss:$8 sm:$0x3]
      %v904 = vld [vmem:[#allocation2] sm:$0x80]
      %v905 = vld [vmem:[#allocation2 + $0x8] sm:$0x80]
      %v906 = vld [vmem:[#allocation2 + $0x10] sm:$0xff]
      %v907 = vld [vmem:[#allocation2 + $0x18] sm:$0xff]
      %v908 = vld [vmem:[#allocation2 + $0x20] sm:$0x7f]
      %v909 = vld [vmem:[#allocation2 + $0x28] sm:$0x7f]
      %v910 = vld [vmem:[#allocation2 + $0x40] sm:$0x80]
      %v911 = vld [vmem:[#allocation2 + $0x48] sm:$0x80]
      %v912 = vld [vmem:[#allocation2 + $0x50] sm:$0xff]
      %v913 = vld [vmem:[#allocation2 + $0x58] sm:$0xff]
      %v914 = vld [vmem:[#allocation2 + $0x60] sm:$0x7f]
      %v915 = vld [vmem:[#allocation2 + $0x68] sm:$0x7f]
      %v916 = vld [vmem:[#allocation2 + $0x80] sm:$0x80]
      %v917 = vld [vmem:[#allocation2 + $0x88] sm:$0x80]
      %v918 = vld [vmem:[#allocation2 + $0x90] sm:$0xff]
      %v919 = vld [vmem:[#allocation2 + $0x98] sm:$0xff]
      %v920 = vld [vmem:[#allocation2 + $0xa0] sm:$0x7f]
      %v921 = vld [vmem:[#allocation2 + $0xa8] sm:$0x7f]
      %v922 = vld [vmem:[#allocation2 + $0xc0] sm:$0x80]
      %v923 = vld [vmem:[#allocation2 + $0xc8] sm:$0x80]
      %v924 = vld [vmem:[#allocation2 + $0xd0] sm:$0xff]
      %v925 = vld [vmem:[#allocation2 + $0xd8] sm:$0xff]
      %v926 = vld [vmem:[#allocation2 + $0xe0] sm:$0x7f]
      %v927 = vld [vmem:[#allocation2 + $0xe8] sm:$0x7f]
      %v928 = vld [vmem:[#allocation2 + $0x100] sm:$0x80]
      %v929 = vld [vmem:[#allocation2 + $0x108] sm:$0x80]
      %v930 = vld [vmem:[#allocation2 + $0x110] sm:$0xff]
      %v931 = vld [vmem:[#allocation2 + $0x118] sm:$0xff]
      %v932 = vld [vmem:[#allocation2 + $0x120] sm:$0x7f]
      %v933 = vld [vmem:[#allocation2 + $0x128] sm:$0x7f]
      %v934 = vld [vmem:[#allocation2 + $0x140] sm:$0x80]
      %v935 = vld [vmem:[#allocation2 + $0x148] sm:$0x80]
      %v936 = vld [vmem:[#allocation2 + $0x150] sm:$0xff]
      %v937 = vld [vmem:[#allocation2 + $0x158] sm:$0xff]
      %v938 = vld [vmem:[#allocation2 + $0x160] sm:$0x7f]
      %v939 = vld [vmem:[#allocation2 + $0x168] sm:$0x7f]
      %v940 = vld [vmem:[#allocation2 + $0x180] sm:$0x80]
      %v941 = vld [vmem:[#allocation2 + $0x188] sm:$0x80]
      %v942 = vld [vmem:[#allocation2 + $0x190] sm:$0xff]
      %v943 = vld [vmem:[#allocation2 + $0x198] sm:$0xff]
      %v944 = vld [vmem:[#allocation2 + $0x1a0] sm:$0x7f]
      %v945 = vld [vmem:[#allocation2 + $0x1a8] sm:$0x7f]
      %v946 = vld [vmem:[#allocation2 + $0x1c0] sm:$0x80]
      %v947 = vld [vmem:[#allocation2 + $0x1c8] sm:$0x80]
      %v948 = vld [vmem:[#allocation2 + $0x1d0] sm:$0xff]
      %v949 = vld [vmem:[#allocation2 + $0x1d8] sm:$0xff]
      %v950 = vld [vmem:[#allocation2 + $0x1e0] sm:$0x7f]
      %v951 = vld [vmem:[#allocation2 + $0x1e8] sm:$0x7f]
      %v952 = vld [vmem:[#allocation2 + $0x200] sm:$0x80]
      %v953 = vld [vmem:[#allocation2 + $0x208] sm:$0x80]
      %v954 = vld [vmem:[#allocation2 + $0x210] sm:$0xff]
      %v955 = vld [vmem:[#allocation2 + $0x218] sm:$0xff]
      %v956 = vld [vmem:[#allocation2 + $0x220] sm:$0x7f]
      %v957 = vld [vmem:[#allocation2 + $0x228] sm:$0x7f]
      %v958 = vld [vmem:[#allocation2 + $0x240] sm:$0x80]
      %v959 = vld [vmem:[#allocation2 + $0x248] sm:$0x80]
      %v960 = vld [vmem:[#allocation2 + $0x250] sm:$0xff]
      %v961 = vld [vmem:[#allocation2 + $0x258] sm:$0xff]
      %v962 = vld [vmem:[#allocation2 + $0x260] sm:$0x7f]
      %v963 = vld [vmem:[#allocation2 + $0x268] sm:$0x7f]
      %v964 = vld [vmem:[#allocation2 + $0x280] sm:$0x80]
      %v965 = vld [vmem:[#allocation2 + $0x288] sm:$0x80]
      %v966 = vld [vmem:[#allocation2 + $0x290] sm:$0xff]
      %v967 = vld [vmem:[#allocation2 + $0x298] sm:$0xff]
      %v968 = vld [vmem:[#allocation2 + $0x2a0] sm:$0x7f]
      %v969 = vld [vmem:[#allocation2 + $0x2a8] sm:$0x7f]
      %v970 = vld [vmem:[#allocation2 + $0x2c0] sm:$0x80]
      %v971 = vld [vmem:[#allocation2 + $0x2c8] sm:$0x80]
      %v972 = vld [vmem:[#allocation2 + $0x2d0] sm:$0xff]
      %v973 = vld [vmem:[#allocation2 + $0x2d8] sm:$0xff]
      %v974 = vld [vmem:[#allocation2 + $0x2e0] sm:$0x7f]
      %v975 = vld [vmem:[#allocation2 + $0x2e8] sm:$0x7f]
      %v976 = vld [vmem:[#allocation2 + $0x300] sm:$0x80]
      %v977 = vld [vmem:[#allocation2 + $0x308] sm:$0x80]
      %v978 = vld [vmem:[#allocation2 + $0x310] sm:$0xff]
      %v979 = vld [vmem:[#allocation2 + $0x318] sm:$0xff]
      %v980 = vld [vmem:[#allocation2 + $0x320] sm:$0x7f]
      %v981 = vld [vmem:[#allocation2 + $0x328] sm:$0x7f]
      %v982 = vld [vmem:[#allocation2 + $0x340] sm:$0x80]
      %v983 = vld [vmem:[#allocation2 + $0x348] sm:$0x80]
      %v984 = vld [vmem:[#allocation2 + $0x350] sm:$0xff]
      %v985 = vld [vmem:[#allocation2 + $0x358] sm:$0xff]
      %v986 = vld [vmem:[#allocation2 + $0x360] sm:$0x7f]
      %v987 = vld [vmem:[#allocation2 + $0x368] sm:$0x7f]
      %v988 = vld [vmem:[#allocation2 + $0x380] sm:$0x80]
      %v989 = vld [vmem:[#allocation2 + $0x388] sm:$0x80]
      %v990 = vld [vmem:[#allocation2 + $0x390] sm:$0xff]
      %v991 = vld [vmem:[#allocation2 + $0x398] sm:$0xff]
      %v992 = vld [vmem:[#allocation2 + $0x3a0] sm:$0x7f]
      %v993 = vld [vmem:[#allocation2 + $0x3a8] sm:$0x7f]
      %v994 = vld [vmem:[#allocation2 + $0x3c0] sm:$0x80]
      %v995 = vld [vmem:[#allocation2 + $0x3c8] sm:$0x80]
      %v996 = vld [vmem:[#allocation2 + $0x3d0] sm:$0xff]
      %v997 = vld [vmem:[#allocation2 + $0x3d8] sm:$0xff]
      %v998 = vld [vmem:[#allocation2 + $0x3e0] sm:$0x7f]
      %v999 = vld [vmem:[#allocation2 + $0x3e8] sm:$0x7f]
      %v1001 = vlaneseq
      %v1002 = vshrl.u32 %v1001, 7
      %v1003 = vsub.s32 0, %v1002
      %v1004 = vrot.slane %v903, %v1003
      %v1005 = vlaneseq
      %v1006 = vshrl.u32 %v1005, 7
      %v1007 = vsub.s32 1, %v1006
      %v1008 = vrot.slane %v903, %v1007
      %v1011 = vmul.f32 %v904, %v1004
      %v1012 = vmul.f32 %v905, %v1008
      %v1013 = vmul.f32 %v906, %v1004
      %v1014 = vmul.f32 %v907, %v1008
      %v1015 = vmul.f32 %v908, %v1004
      %v1016 = vmul.f32 %v909, %v1008
      %v1017 = vmul.f32 %v910, %v1004
      %v1018 = vmul.f32 %v911, %v1008
      %v1019 = vmul.f32 %v912, %v1004
      %v1020 = vmul.f32 %v913, %v1008
      %v1021 = vmul.f32 %v914, %v1004
      %v1022 = vmul.f32 %v915, %v1008
      %v1023 = vmul.f32 %v916, %v1004
      %v1024 = vmul.f32 %v917, %v1008
      %v1025 = vmul.f32 %v918, %v1004
      %v1026 = vmul.f32 %v919, %v1008
      %v1027 = vmul.f32 %v920, %v1004
      %v1028 = vmul.f32 %v921, %v1008
      %v1029 = vmul.f32 %v922, %v1004
      %v1030 = vmul.f32 %v923, %v1008
      %v1031 = vmul.f32 %v924, %v1004
      %v1032 = vmul.f32 %v925, %v1008
      %v1033 = vmul.f32 %v926, %v1004
      %v1034 = vmul.f32 %v927, %v1008
      %v1035 = vmul.f32 %v928, %v1004
      %v1036 = vmul.f32 %v929, %v1008
      %v1037 = vmul.f32 %v930, %v1004
      %v1038 = vmul.f32 %v931, %v1008
      %v1039 = vmul.f32 %v932, %v1004
      %v1040 = vmul.f32 %v933, %v1008
      %v1041 = vmul.f32 %v934, %v1004
      %v1042 = vmul.f32 %v935, %v1008
      %v1043 = vmul.f32 %v936, %v1004
      %v1044 = vmul.f32 %v937, %v1008
      %v1045 = vmul.f32 %v938, %v1004
      %v1046 = vmul.f32 %v939, %v1008
      %v1047 = vmul.f32 %v940, %v1004
      %v1048 = vmul.f32 %v941, %v1008
      %v1049 = vmul.f32 %v942, %v1004
      %v1050 = vmul.f32 %v943, %v1008
      %v1051 = vmul.f32 %v944, %v1004
      %v1052 = vmul.f32 %v945, %v1008
      %v1053 = vmul.f32 %v946, %v1004
      %v1054 = vmul.f32 %v947, %v1008
      %v1055 = vmul.f32 %v948, %v1004
      %v1056 = vmul.f32 %v949, %v1008
      %v1057 = vmul.f32 %v950, %v1004
      %v1058 = vmul.f32 %v951, %v1008
      %v1059 = vmul.f32 %v952, %v1004
      %v1060 = vmul.f32 %v953, %v1008
      %v1061 = vmul.f32 %v954, %v1004
      %v1062 = vmul.f32 %v955, %v1008
      %v1063 = vmul.f32 %v956, %v1004
      %v1064 = vmul.f32 %v957, %v1008
      %v1065 = vmul.f32 %v958, %v1004
      %v1066 = vmul.f32 %v959, %v1008
      %v1067 = vmul.f32 %v960, %v1004
      %v1068 = vmul.f32 %v961, %v1008
      %v1069 = vmul.f32 %v962, %v1004
      %v1070 = vmul.f32 %v963, %v1008
      %v1071 = vmul.f32 %v964, %v1004
      %v1072 = vmul.f32 %v965, %v1008
      %v1073 = vmul.f32 %v966, %v1004
      %v1074 = vmul.f32 %v967, %v1008
      %v1075 = vmul.f32 %v968, %v1004
      %v1076 = vmul.f32 %v969, %v1008
      %v1077 = vmul.f32 %v970, %v1004
      %v1078 = vmul.f32 %v971, %v1008
      %v1079 = vmul.f32 %v972, %v1004
      %v1080 = vmul.f32 %v973, %v1008
      %v1081 = vmul.f32 %v974, %v1004
      %v1082 = vmul.f32 %v975, %v1008
      %v1083 = vmul.f32 %v976, %v1004
      %v1084 = vmul.f32 %v977, %v1008
      %v1085 = vmul.f32 %v978, %v1004
      %v1086 = vmul.f32 %v979, %v1008
      %v1087 = vmul.f32 %v980, %v1004
      %v1088 = vmul.f32 %v981, %v1008
      %v1089 = vmul.f32 %v982, %v1004
      %v1090 = vmul.f32 %v983, %v1008
      %v1091 = vmul.f32 %v984, %v1004
      %v1092 = vmul.f32 %v985, %v1008
      %v1093 = vmul.f32 %v986, %v1004
      %v1094 = vmul.f32 %v987, %v1008
      %v1095 = vmul.f32 %v988, %v1004
      %v1096 = vmul.f32 %v989, %v1008
      %v1097 = vmul.f32 %v990, %v1004
      %v1098 = vmul.f32 %v991, %v1008
      %v1099 = vmul.f32 %v992, %v1004
      %v1100 = vmul.f32 %v993, %v1008
      %v1101 = vmul.f32 %v994, %v1004
      %v1102 = vmul.f32 %v995, %v1008
      %v1103 = vmul.f32 %v996, %v1004
      %v1104 = vmul.f32 %v997, %v1008
      %v1105 = vmul.f32 %v998, %v1004
      %v1106 = vmul.f32 %v999, %v1008
      %s1107 = scalar_lea.vmem %s3, 1
      %v1108 = vld [vmem:[%s1107] ss:$8 sm:$0x3]
      %v1109 = vld [vmem:[#allocation2 + $0x20] sm:$0xff]
      %v1110 = vld [vmem:[#allocation2 + $0x28] sm:$0xff]
      %v1111 = vld [vmem:[#allocation2 + $0x60] sm:$0xff]
      %v1112 = vld [vmem:[#allocation2 + $0x68] sm:$0xff]
      %v1113 = vld [vmem:[#allocation2 + $0xa0] sm:$0xff]
      %v1114 = vld [vmem:[#allocation2 + $0xa8] sm:$0xff]
      %v1115 = vld [vmem:[#allocation2 + $0xe0] sm:$0xff]
      %v1116 = vld [vmem:[#allocation2 + $0xe8] sm:$0xff]
      %v1117 = vld [vmem:[#allocation2 + $0x120] sm:$0xff]
      %v1118 = vld [vmem:[#allocation2 + $0x128] sm:$0xff]
      %v1119 = vld [vmem:[#allocation2 + $0x160] sm:$0xff]
      %v1120 = vld [vmem:[#allocation2 + $0x168] sm:$0xff]
      %v1121 = vld [vmem:[#allocation2 + $0x1a0] sm:$0xff]
      %v1122 = vld [vmem:[#allocation2 + $0x1a8] sm:$0xff]
      %v1123 = vld [vmem:[#allocation2 + $0x1e0] sm:$0xff]
      %v1124 = vld [vmem:[#allocation2 + $0x1e8] sm:$0xff]
      %v1125 = vld [vmem:[#allocation2 + $0x220] sm:$0xff]
      %v1126 = vld [vmem:[#allocation2 + $0x228] sm:$0xff]
      %v1127 = vld [vmem:[#allocation2 + $0x260] sm:$0xff]
      %v1128 = vld [vmem:[#allocation2 + $0x268] sm:$0xff]
      %v1129 = vld [vmem:[#allocation2 + $0x2a0] sm:$0xff]
      %v1130 = vld [vmem:[#allocation2 + $0x2a8] sm:$0xff]
      %v1131 = vld [vmem:[#allocation2 + $0x2e0] sm:$0xff]
      %v1132 = vld [vmem:[#allocation2 + $0x2e8] sm:$0xff]
      %v1133 = vld [vmem:[#allocation2 + $0x320] sm:$0xff]
      %v1134 = vld [vmem:[#allocation2 + $0x328] sm:$0xff]
      %v1135 = vld [vmem:[#allocation2 + $0x360] sm:$0xff]
      %v1136 = vld [vmem:[#allocation2 + $0x368] sm:$0xff]
      %v1137 = vld [vmem:[#allocation2 + $0x3a0] sm:$0xff]
      %v1138 = vld [vmem:[#allocation2 + $0x3a8] sm:$0xff]
      %v1139 = vld [vmem:[#allocation2 + $0x3e0] sm:$0xff]
      %v1140 = vld [vmem:[#allocation2 + $0x3e8] sm:$0xff]
      %v1142 = vlaneseq
      %v1143 = vshrl.u32 %v1142, 7
      %v1144 = vsub.s32 0, %v1143
      %v1145 = vrot.slane %v1108, %v1144
      %v1146 = vlaneseq
      %v1147 = vshrl.u32 %v1146, 7
      %v1148 = vsub.s32 1, %v1147
      %v1149 = vrot.slane %v1108, %v1148
      %v1152 = vmul.f32 %v906, %v1145
      %v1153 = vmul.f32 %v907, %v1149
      %v1154 = vmul.f32 %v1109, %v1145
      %v1155 = vmul.f32 %v1110, %v1149
      %v1156 = vmul.f32 %v912, %v1145
      %v1157 = vmul.f32 %v913, %v1149
      %v1158 = vmul.f32 %v1111, %v1145
      %v1159 = vmul.f32 %v1112, %v1149
      %v1160 = vmul.f32 %v918, %v1145
      %v1161 = vmul.f32 %v919, %v1149
      %v1162 = vmul.f32 %v1113, %v1145
      %v1163 = vmul.f32 %v1114, %v1149
      %v1164 = vmul.f32 %v924, %v1145
      %v1165 = vmul.f32 %v925, %v1149
      %v1166 = vmul.f32 %v1115, %v1145
      %v1167 = vmul.f32 %v1116, %v1149
      %v1168 = vmul.f32 %v930, %v1145
      %v1169 = vmul.f32 %v931, %v1149
      %v1170 = vmul.f32 %v1117, %v1145
      %v1171 = vmul.f32 %v1118, %v1149
      %v1172 = vmul.f32 %v936, %v1145
      %v1173 = vmul.f32 %v937, %v1149
      %v1174 = vmul.f32 %v1119, %v1145
      %v1175 = vmul.f32 %v1120, %v1149
      %v1176 = vmul.f32 %v942, %v1145
      %v1177 = vmul.f32 %v943, %v1149
      %v1178 = vmul.f32 %v1121, %v1145
      %v1179 = vmul.f32 %v1122, %v1149
      %v1180 = vmul.f32 %v948, %v1145
      %v1181 = vmul.f32 %v949, %v1149
      %v1182 = vmul.f32 %v1123, %v1145
      %v1183 = vmul.f32 %v1124, %v1149
      %v1184 = vmul.f32 %v954, %v1145
      %v1185 = vmul.f32 %v955, %v1149
      %v1186 = vmul.f32 %v1125, %v1145
      %v1187 = vmul.f32 %v1126, %v1149
      %v1188 = vmul.f32 %v960, %v1145
      %v1189 = vmul.f32 %v961, %v1149
      %v1190 = vmul.f32 %v1127, %v1145
      %v1191 = vmul.f32 %v1128, %v1149
      %v1192 = vmul.f32 %v966, %v1145
      %v1193 = vmul.f32 %v967, %v1149
      %v1194 = vmul.f32 %v1129, %v1145
      %v1195 = vmul.f32 %v1130, %v1149
      %v1196 = vmul.f32 %v972, %v1145
      %v1197 = vmul.f32 %v973, %v1149
      %v1198 = vmul.f32 %v1131, %v1145
      %v1199 = vmul.f32 %v1132, %v1149
      %v1200 = vmul.f32 %v978, %v1145
      %v1201 = vmul.f32 %v979, %v1149
      %v1202 = vmul.f32 %v1133, %v1145
      %v1203 = vmul.f32 %v1134, %v1149
      %v1204 = vmul.f32 %v984, %v1145
      %v1205 = vmul.f32 %v985, %v1149
      %v1206 = vmul.f32 %v1135, %v1145
      %v1207 = vmul.f32 %v1136, %v1149
      %v1208 = vmul.f32 %v990, %v1145
      %v1209 = vmul.f32 %v991, %v1149
      %v1210 = vmul.f32 %v1137, %v1145
      %v1211 = vmul.f32 %v1138, %v1149
      %v1212 = vmul.f32 %v996, %v1145
      %v1213 = vmul.f32 %v997, %v1149
      %v1214 = vmul.f32 %v1139, %v1145
      %v1215 = vmul.f32 %v1140, %v1149
      %vm1280 = vcmask 1046528
      %v1281 = vrot.slane %v1152, 1
      %v1282 = vrot.slane %v1153, 1
      %v1283 = vrot.slane %v1154, 1
      %v1284 = vsel %vm1280, %v1281, %v1283
      %v1285 = vrot.slane %v1155, 1
      %v1286 = vsel %vm1280, %v1282, %v1285
      %v1287 = vrot.slane %v1156, 1
      %v1288 = vrot.slane %v1157, 1
      %v1289 = vrot.slane %v1158, 1
      %v1290 = vsel %vm1280, %v1287, %v1289
      %v1291 = vrot.slane %v1159, 1
      %v1292 = vsel %vm1280, %v1288, %v1291
      %v1293 = vrot.slane %v1160, 1
      %v1294 = vrot.slane %v1161, 1
      %v1295 = vrot.slane %v1162, 1
      %v1296 = vsel %vm1280, %v1293, %v1295
      %v1297 = vrot.slane %v1163, 1
      %v1298 = vsel %vm1280, %v1294, %v1297
      %v1299 = vrot.slane %v1164, 1
      %v1300 = vrot.slane %v1165, 1
      %v1301 = vrot.slane %v1166, 1
      %v1302 = vsel %vm1280, %v1299, %v1301
      %v1303 = vrot.slane %v1167, 1
      %v1304 = vsel %vm1280, %v1300, %v1303
      %v1305 = vrot.slane %v1168, 1
      %v1306 = vrot.slane %v1169, 1
      %v1307 = vrot.slane %v1170, 1
      %v1308 = vsel %vm1280, %v1305, %v1307
      %v1309 = vrot.slane %v1171, 1
      %v1310 = vsel %vm1280, %v1306, %v1309
      %v1311 = vrot.slane %v1172, 1
      %v1312 = vrot.slane %v1173, 1
      %v1313 = vrot.slane %v1174, 1
      %v1314 = vsel %vm1280, %v1311, %v1313
      %v1315 = vrot.slane %v1175, 1
      %v1316 = vsel %vm1280, %v1312, %v1315
      %v1317 = vrot.slane %v1176, 1
      %v1318 = vrot.slane %v1177, 1
      %v1319 = vrot.slane %v1178, 1
      %v1320 = vsel %vm1280, %v1317, %v1319
      %v1321 = vrot.slane %v1179, 1
      %v1322 = vsel %vm1280, %v1318, %v1321
      %v1323 = vrot.slane %v1180, 1
      %v1324 = vrot.slane %v1181, 1
      %v1325 = vrot.slane %v1182, 1
      %v1326 = vsel %vm1280, %v1323, %v1325
      %v1327 = vrot.slane %v1183, 1
      %v1328 = vsel %vm1280, %v1324, %v1327
      %v1329 = vrot.slane %v1184, 1
      %v1330 = vrot.slane %v1185, 1
      %v1331 = vrot.slane %v1186, 1
      %v1332 = vsel %vm1280, %v1329, %v1331
      %v1333 = vrot.slane %v1187, 1
      %v1334 = vsel %vm1280, %v1330, %v1333
      %v1335 = vrot.slane %v1188, 1
      %v1336 = vrot.slane %v1189, 1
      %v1337 = vrot.slane %v1190, 1
      %v1338 = vsel %vm1280, %v1335, %v1337
      %v1339 = vrot.slane %v1191, 1
      %v1340 = vsel %vm1280, %v1336, %v1339
      %v1341 = vrot.slane %v1192, 1
      %v1342 = vrot.slane %v1193, 1
      %v1343 = vrot.slane %v1194, 1
      %v1344 = vsel %vm1280, %v1341, %v1343
      %v1345 = vrot.slane %v1195, 1
      %v1346 = vsel %vm1280, %v1342, %v1345
      %v1347 = vrot.slane %v1196, 1
      %v1348 = vrot.slane %v1197, 1
      %v1349 = vrot.slane %v1198, 1
      %v1350 = vsel %vm1280, %v1347, %v1349
      %v1351 = vrot.slane %v1199, 1
      %v1352 = vsel %vm1280, %v1348, %v1351
      %v1353 = vrot.slane %v1200, 1
      %v1354 = vrot.slane %v1201, 1
      %v1355 = vrot.slane %v1202, 1
      %v1356 = vsel %vm1280, %v1353, %v1355
      %v1357 = vrot.slane %v1203, 1
      %v1358 = vsel %vm1280, %v1354, %v1357
      %v1359 = vrot.slane %v1204, 1
      %v1360 = vrot.slane %v1205, 1
      %v1361 = vrot.slane %v1206, 1
      %v1362 = vsel %vm1280, %v1359, %v1361
      %v1363 = vrot.slane %v1207, 1
      %v1364 = vsel %vm1280, %v1360, %v1363
      %v1365 = vrot.slane %v1208, 1
      %v1366 = vrot.slane %v1209, 1
      %v1367 = vrot.slane %v1210, 1
      %v1368 = vsel %vm1280, %v1365, %v1367
      %v1369 = vrot.slane %v1211, 1
      %v1370 = vsel %vm1280, %v1366, %v1369
      %v1371 = vrot.slane %v1212, 1
      %v1372 = vrot.slane %v1213, 1
      %v1373 = vrot.slane %v1214, 1
      %v1374 = vsel %vm1280, %v1371, %v1373
      %v1375 = vrot.slane %v1215, 1
      %v1376 = vsel %vm1280, %v1372, %v1375
      %v1473 = vadd.f32 %v1011, %v1281
      %v1474 = vadd.f32 %v1012, %v1282
      %v1475 = vadd.f32 %v1013, %v1284
      %v1476 = vadd.f32 %v1014, %v1286
      %v1477 = vadd.f32 %v1015, %v1283
      %v1478 = vadd.f32 %v1016, %v1285
      %v1479 = vadd.f32 %v1017, %v1287
      %v1480 = vadd.f32 %v1018, %v1288
      %v1481 = vadd.f32 %v1019, %v1290
      %v1482 = vadd.f32 %v1020, %v1292
      %v1483 = vadd.f32 %v1021, %v1289
      %v1484 = vadd.f32 %v1022, %v1291
      %v1485 = vadd.f32 %v1023, %v1293
      %v1486 = vadd.f32 %v1024, %v1294
      %v1487 = vadd.f32 %v1025, %v1296
      %v1488 = vadd.f32 %v1026, %v1298
      %v1489 = vadd.f32 %v1027, %v1295
      %v1490 = vadd.f32 %v1028, %v1297
      %v1491 = vadd.f32 %v1029, %v1299
      %v1492 = vadd.f32 %v1030, %v1300
      %v1493 = vadd.f32 %v1031, %v1302
      %v1494 = vadd.f32 %v1032, %v1304
      %v1495 = vadd.f32 %v1033, %v1301
      %v1496 = vadd.f32 %v1034, %v1303
      %v1497 = vadd.f32 %v1035, %v1305
      %v1498 = vadd.f32 %v1036, %v1306
      %v1499 = vadd.f32 %v1037, %v1308
      %v1500 = vadd.f32 %v1038, %v1310
      %v1501 = vadd.f32 %v1039, %v1307
      %v1502 = vadd.f32 %v1040, %v1309
      %v1503 = vadd.f32 %v1041, %v1311
      %v1504 = vadd.f32 %v1042, %v1312
      %v1505 = vadd.f32 %v1043, %v1314
      %v1506 = vadd.f32 %v1044, %v1316
      %v1507 = vadd.f32 %v1045, %v1313
      %v1508 = vadd.f32 %v1046, %v1315
      %v1509 = vadd.f32 %v1047, %v1317
      %v1510 = vadd.f32 %v1048, %v1318
      %v1511 = vadd.f32 %v1049, %v1320
      %v1512 = vadd.f32 %v1050, %v1322
      %v1513 = vadd.f32 %v1051, %v1319
      %v1514 = vadd.f32 %v1052, %v1321
      %v1515 = vadd.f32 %v1053, %v1323
      %v1516 = vadd.f32 %v1054, %v1324
      %v1517 = vadd.f32 %v1055, %v1326
      %v1518 = vadd.f32 %v1056, %v1328
      %v1519 = vadd.f32 %v1057, %v1325
      %v1520 = vadd.f32 %v1058, %v1327
      %v1521 = vadd.f32 %v1059, %v1329
      %v1522 = vadd.f32 %v1060, %v1330
      %v1523 = vadd.f32 %v1061, %v1332
      %v1524 = vadd.f32 %v1062, %v1334
      %v1525 = vadd.f32 %v1063, %v1331
      %v1526 = vadd.f32 %v1064, %v1333
      %v1527 = vadd.f32 %v1065, %v1335
      %v1528 = vadd.f32 %v1066, %v1336
      %v1529 = vadd.f32 %v1067, %v1338
      %v1530 = vadd.f32 %v1068, %v1340
      %v1531 = vadd.f32 %v1069, %v1337
      %v1532 = vadd.f32 %v1070, %v1339
      %v1533 = vadd.f32 %v1071, %v1341
      %v1534 = vadd.f32 %v1072, %v1342
      %v1535 = vadd.f32 %v1073, %v1344
      %v1536 = vadd.f32 %v1074, %v1346
      %v1537 = vadd.f32 %v1075, %v1343
      %v1538 = vadd.f32 %v1076, %v1345
      %v1539 = vadd.f32 %v1077, %v1347
      %v1540 = vadd.f32 %v1078, %v1348
      %v1541 = vadd.f32 %v1079, %v1350
      %v1542 = vadd.f32 %v1080, %v1352
      %v1543 = vadd.f32 %v1081, %v1349
      %v1544 = vadd.f32 %v1082, %v1351
      %v1545 = vadd.f32 %v1083, %v1353
      %v1546 = vadd.f32 %v1084, %v1354
      %v1547 = vadd.f32 %v1085, %v1356
      %v1548 = vadd.f32 %v1086, %v1358
      %v1549 = vadd.f32 %v1087, %v1355
      %v1550 = vadd.f32 %v1088, %v1357
      %v1551 = vadd.f32 %v1089, %v1359
      %v1552 = vadd.f32 %v1090, %v1360
      %v1553 = vadd.f32 %v1091, %v1362
      %v1554 = vadd.f32 %v1092, %v1364
      %v1555 = vadd.f32 %v1093, %v1361
      %v1556 = vadd.f32 %v1094, %v1363
      %v1557 = vadd.f32 %v1095, %v1365
      %v1558 = vadd.f32 %v1096, %v1366
      %v1559 = vadd.f32 %v1097, %v1368
      %v1560 = vadd.f32 %v1098, %v1370
      %v1561 = vadd.f32 %v1099, %v1367
      %v1562 = vadd.f32 %v1100, %v1369
      %v1563 = vadd.f32 %v1101, %v1371
      %v1564 = vadd.f32 %v1102, %v1372
      %v1565 = vadd.f32 %v1103, %v1374
      %v1566 = vadd.f32 %v1104, %v1376
      %v1567 = vadd.f32 %v1105, %v1373
      %v1568 = vadd.f32 %v1106, %v1375
      %s1569 = scalar_lea.vmem %s3, 2
      %v1570 = vld [vmem:[%s1569] ss:$8 sm:$0x3]
      %v1571 = vld [vmem:[#allocation2 + $0x10] sm:$0xfe]
      %v1572 = vld [vmem:[#allocation2 + $0x18] sm:$0xfe]
      %v1573 = vld [vmem:[#allocation2 + $0x30] sm:$0x1]
      %v1574 = vld [vmem:[#allocation2 + $0x38] sm:$0x1]
      %v1575 = vld [vmem:[#allocation2 + $0x50] sm:$0xfe]
      %v1576 = vld [vmem:[#allocation2 + $0x58] sm:$0xfe]
      %v1577 = vld [vmem:[#allocation2 + $0x70] sm:$0x1]
      %v1578 = vld [vmem:[#allocation2 + $0x78] sm:$0x1]
      %v1579 = vld [vmem:[#allocation2 + $0x90] sm:$0xfe]
      %v1580 = vld [vmem:[#allocation2 + $0x98] sm:$0xfe]
      %v1581 = vld [vmem:[#allocation2 + $0xb0] sm:$0x1]
      %v1582 = vld [vmem:[#allocation2 + $0xb8] sm:$0x1]
      %v1583 = vld [vmem:[#allocation2 + $0xd0] sm:$0xfe]
      %v1584 = vld [vmem:[#allocation2 + $0xd8] sm:$0xfe]
      %v1585 = vld [vmem:[#allocation2 + $0xf0] sm:$0x1]
      %v1586 = vld [vmem:[#allocation2 + $0xf8] sm:$0x1]
      %v1587 = vld [vmem:[#allocation2 + $0x110] sm:$0xfe]
      %v1588 = vld [vmem:[#allocation2 + $0x118] sm:$0xfe]
      %v1589 = vld [vmem:[#allocation2 + $0x130] sm:$0x1]
      %v1590 = vld [vmem:[#allocation2 + $0x138] sm:$0x1]
      %v1591 = vld [vmem:[#allocation2 + $0x150] sm:$0xfe]
      %v1592 = vld [vmem:[#allocation2 + $0x158] sm:$0xfe]
      %v1593 = vld [vmem:[#allocation2 + $0x170] sm:$0x1]
      %v1594 = vld [vmem:[#allocation2 + $0x178] sm:$0x1]
      %v1595 = vld [vmem:[#allocation2 + $0x190] sm:$0xfe]
      %v1596 = vld [vmem:[#allocation2 + $0x198] sm:$0xfe]
      %v1597 = vld [vmem:[#allocation2 + $0x1b0] sm:$0x1]
      %v1598 = vld [vmem:[#allocation2 + $0x1b8] sm:$0x1]
      %v1599 = vld [vmem:[#allocation2 + $0x1d0] sm:$0xfe]
      %v1600 = vld [vmem:[#allocation2 + $0x1d8] sm:$0xfe]
      %v1601 = vld [vmem:[#allocation2 + $0x1f0] sm:$0x1]
      %v1602 = vld [vmem:[#allocation2 + $0x1f8] sm:$0x1]
      %v1603 = vld [vmem:[#allocation2 + $0x210] sm:$0xfe]
      %v1604 = vld [vmem:[#allocation2 + $0x218] sm:$0xfe]
      %v1605 = vld [vmem:[#allocation2 + $0x230] sm:$0x1]
      %v1606 = vld [vmem:[#allocation2 + $0x238] sm:$0x1]
      %v1607 = vld [vmem:[#allocation2 + $0x250] sm:$0xfe]
      %v1608 = vld [vmem:[#allocation2 + $0x258] sm:$0xfe]
      %v1609 = vld [vmem:[#allocation2 + $0x270] sm:$0x1]
      %v1610 = vld [vmem:[#allocation2 + $0x278] sm:$0x1]
      %v1611 = vld [vmem:[#allocation2 + $0x290] sm:$0xfe]
      %v1612 = vld [vmem:[#allocation2 + $0x298] sm:$0xfe]
      %v1613 = vld [vmem:[#allocation2 + $0x2b0] sm:$0x1]
      %v1614 = vld [vmem:[#allocation2 + $0x2b8] sm:$0x1]
      %v1615 = vld [vmem:[#allocation2 + $0x2d0] sm:$0xfe]
      %v1616 = vld [vmem:[#allocation2 + $0x2d8] sm:$0xfe]
      %v1617 = vld [vmem:[#allocation2 + $0x2f0] sm:$0x1]
      %v1618 = vld [vmem:[#allocation2 + $0x2f8] sm:$0x1]
      %v1619 = vld [vmem:[#allocation2 + $0x310] sm:$0xfe]
      %v1620 = vld [vmem:[#allocation2 + $0x318] sm:$0xfe]
      %v1621 = vld [vmem:[#allocation2 + $0x330] sm:$0x1]
      %v1622 = vld [vmem:[#allocation2 + $0x338] sm:$0x1]
      %v1623 = vld [vmem:[#allocation2 + $0x350] sm:$0xfe]
      %v1624 = vld [vmem:[#allocation2 + $0x358] sm:$0xfe]
      %v1625 = vld [vmem:[#allocation2 + $0x370] sm:$0x1]
      %v1626 = vld [vmem:[#allocation2 + $0x378] sm:$0x1]
      %v1627 = vld [vmem:[#allocation2 + $0x390] sm:$0xfe]
      %v1628 = vld [vmem:[#allocation2 + $0x398] sm:$0xfe]
      %v1629 = vld [vmem:[#allocation2 + $0x3b0] sm:$0x1]
      %v1630 = vld [vmem:[#allocation2 + $0x3b8] sm:$0x1]
      %v1631 = vld [vmem:[#allocation2 + $0x3d0] sm:$0xfe]
      %v1632 = vld [vmem:[#allocation2 + $0x3d8] sm:$0xfe]
      %v1633 = vld [vmem:[#allocation2 + $0x3f0] sm:$0x1]
      %v1634 = vld [vmem:[#allocation2 + $0x3f8] sm:$0x1]
      %v1636 = vlaneseq
      %v1637 = vshrl.u32 %v1636, 7
      %v1638 = vsub.s32 0, %v1637
      %v1639 = vrot.slane %v1570, %v1638
      %v1640 = vlaneseq
      %v1641 = vshrl.u32 %v1640, 7
      %v1642 = vsub.s32 1, %v1641
      %v1643 = vrot.slane %v1570, %v1642
      %v1646 = vmul.f32 %v1571, %v1639
      %v1647 = vmul.f32 %v1572, %v1643
      %v1648 = vmul.f32 %v1109, %v1639
      %v1649 = vmul.f32 %v1110, %v1643
      %v1650 = vmul.f32 %v1573, %v1639
      %v1651 = vmul.f32 %v1574, %v1643
      %v1652 = vmul.f32 %v1575, %v1639
      %v1653 = vmul.f32 %v1576, %v1643
      %v1654 = vmul.f32 %v1111, %v1639
      %v1655 = vmul.f32 %v1112, %v1643
      %v1656 = vmul.f32 %v1577, %v1639
      %v1657 = vmul.f32 %v1578, %v1643
      %v1658 = vmul.f32 %v1579, %v1639
      %v1659 = vmul.f32 %v1580, %v1643
      %v1660 = vmul.f32 %v1113, %v1639
      %v1661 = vmul.f32 %v1114, %v1643
      %v1662 = vmul.f32 %v1581, %v1639
      %v1663 = vmul.f32 %v1582, %v1643
      %v1664 = vmul.f32 %v1583, %v1639
      %v1665 = vmul.f32 %v1584, %v1643
      %v1666 = vmul.f32 %v1115, %v1639
      %v1667 = vmul.f32 %v1116, %v1643
      %v1668 = vmul.f32 %v1585, %v1639
      %v1669 = vmul.f32 %v1586, %v1643
      %v1670 = vmul.f32 %v1587, %v1639
      %v1671 = vmul.f32 %v1588, %v1643
      %v1672 = vmul.f32 %v1117, %v1639
      %v1673 = vmul.f32 %v1118, %v1643
      %v1674 = vmul.f32 %v1589, %v1639
      %v1675 = vmul.f32 %v1590, %v1643
      %v1676 = vmul.f32 %v1591, %v1639
      %v1677 = vmul.f32 %v1592, %v1643
      %v1678 = vmul.f32 %v1119, %v1639
      %v1679 = vmul.f32 %v1120, %v1643
      %v1680 = vmul.f32 %v1593, %v1639
      %v1681 = vmul.f32 %v1594, %v1643
      %v1682 = vmul.f32 %v1595, %v1639
      %v1683 = vmul.f32 %v1596, %v1643
      %v1684 = vmul.f32 %v1121, %v1639
      %v1685 = vmul.f32 %v1122, %v1643
      %v1686 = vmul.f32 %v1597, %v1639
      %v1687 = vmul.f32 %v1598, %v1643
      %v1688 = vmul.f32 %v1599, %v1639
      %v1689 = vmul.f32 %v1600, %v1643
      %v1690 = vmul.f32 %v1123, %v1639
      %v1691 = vmul.f32 %v1124, %v1643
      %v1692 = vmul.f32 %v1601, %v1639
      %v1693 = vmul.f32 %v1602, %v1643
      %v1694 = vmul.f32 %v1603, %v1639
      %v1695 = vmul.f32 %v1604, %v1643
      %v1696 = vmul.f32 %v1125, %v1639
      %v1697 = vmul.f32 %v1126, %v1643
      %v1698 = vmul.f32 %v1605, %v1639
      %v1699 = vmul.f32 %v1606, %v1643
      %v1700 = vmul.f32 %v1607, %v1639
      %v1701 = vmul.f32 %v1608, %v1643
      %v1702 = vmul.f32 %v1127, %v1639
      %v1703 = vmul.f32 %v1128, %v1643
      %v1704 = vmul.f32 %v1609, %v1639
      %v1705 = vmul.f32 %v1610, %v1643
      %v1706 = vmul.f32 %v1611, %v1639
      %v1707 = vmul.f32 %v1612, %v1643
      %v1708 = vmul.f32 %v1129, %v1639
      %v1709 = vmul.f32 %v1130, %v1643
      %v1710 = vmul.f32 %v1613, %v1639
      %v1711 = vmul.f32 %v1614, %v1643
      %v1712 = vmul.f32 %v1615, %v1639
      %v1713 = vmul.f32 %v1616, %v1643
      %v1714 = vmul.f32 %v1131, %v1639
      %v1715 = vmul.f32 %v1132, %v1643
      %v1716 = vmul.f32 %v1617, %v1639
      %v1717 = vmul.f32 %v1618, %v1643
      %v1718 = vmul.f32 %v1619, %v1639
      %v1719 = vmul.f32 %v1620, %v1643
      %v1720 = vmul.f32 %v1133, %v1639
      %v1721 = vmul.f32 %v1134, %v1643
      %v1722 = vmul.f32 %v1621, %v1639
      %v1723 = vmul.f32 %v1622, %v1643
      %v1724 = vmul.f32 %v1623, %v1639
      %v1725 = vmul.f32 %v1624, %v1643
      %v1726 = vmul.f32 %v1135, %v1639
      %v1727 = vmul.f32 %v1136, %v1643
      %v1728 = vmul.f32 %v1625, %v1639
      %v1729 = vmul.f32 %v1626, %v1643
      %v1730 = vmul.f32 %v1627, %v1639
      %v1731 = vmul.f32 %v1628, %v1643
      %v1732 = vmul.f32 %v1137, %v1639
      %v1733 = vmul.f32 %v1138, %v1643
      %v1734 = vmul.f32 %v1629, %v1639
      %v1735 = vmul.f32 %v1630, %v1643
      %v1736 = vmul.f32 %v1631, %v1639
      %v1737 = vmul.f32 %v1632, %v1643
      %v1738 = vmul.f32 %v1139, %v1639
      %v1739 = vmul.f32 %v1140, %v1643
      %v1740 = vmul.f32 %v1633, %v1639
      %v1741 = vmul.f32 %v1634, %v1643
      %vm1838 = vcmask 1045504
      %v1839 = vrot.slane %v1646, 2
      %v1840 = vrot.slane %v1647, 2
      %v1841 = vrot.slane %v1648, 2
      %v1842 = vsel %vm1838, %v1839, %v1841
      %v1843 = vrot.slane %v1649, 2
      %v1844 = vsel %vm1838, %v1840, %v1843
      %v1845 = vrot.slane %v1650, 2
      %v1846 = vsel %vm1838, %v1841, %v1845
      %v1847 = vrot.slane %v1651, 2
      %v1848 = vsel %vm1838, %v1843, %v1847
      %v1849 = vrot.slane %v1652, 2
      %v1850 = vrot.slane %v1653, 2
      %v1851 = vrot.slane %v1654, 2
      %v1852 = vsel %vm1838, %v1849, %v1851
      %v1853 = vrot.slane %v1655, 2
      %v1854 = vsel %vm1838, %v1850, %v1853
      %v1855 = vrot.slane %v1656, 2
      %v1856 = vsel %vm1838, %v1851, %v1855
      %v1857 = vrot.slane %v1657, 2
      %v1858 = vsel %vm1838, %v1853, %v1857
      %v1859 = vrot.slane %v1658, 2
      %v1860 = vrot.slane %v1659, 2
      %v1861 = vrot.slane %v1660, 2
      %v1862 = vsel %vm1838, %v1859, %v1861
      %v1863 = vrot.slane %v1661, 2
      %v1864 = vsel %vm1838, %v1860, %v1863
      %v1865 = vrot.slane %v1662, 2
      %v1866 = vsel %vm1838, %v1861, %v1865
      %v1867 = vrot.slane %v1663, 2
      %v1868 = vsel %vm1838, %v1863, %v1867
      %v1869 = vrot.slane %v1664, 2
      %v1870 = vrot.slane %v1665, 2
      %v1871 = vrot.slane %v1666, 2
      %v1872 = vsel %vm1838, %v1869, %v1871
      %v1873 = vrot.slane %v1667, 2
      %v1874 = vsel %vm1838, %v1870, %v1873
      %v1875 = vrot.slane %v1668, 2
      %v1876 = vsel %vm1838, %v1871, %v1875
      %v1877 = vrot.slane %v1669, 2
      %v1878 = vsel %vm1838, %v1873, %v1877
      %v1879 = vrot.slane %v1670, 2
      %v1880 = vrot.slane %v1671, 2
      %v1881 = vrot.slane %v1672, 2
      %v1882 = vsel %vm1838, %v1879, %v1881
      %v1883 = vrot.slane %v1673, 2
      %v1884 = vsel %vm1838, %v1880, %v1883
      %v1885 = vrot.slane %v1674, 2
      %v1886 = vsel %vm1838, %v1881, %v1885
      %v1887 = vrot.slane %v1675, 2
      %v1888 = vsel %vm1838, %v1883, %v1887
      %v1889 = vrot.slane %v1676, 2
      %v1890 = vrot.slane %v1677, 2
      %v1891 = vrot.slane %v1678, 2
      %v1892 = vsel %vm1838, %v1889, %v1891
      %v1893 = vrot.slane %v1679, 2
      %v1894 = vsel %vm1838, %v1890, %v1893
      %v1895 = vrot.slane %v1680, 2
      %v1896 = vsel %vm1838, %v1891, %v1895
      %v1897 = vrot.slane %v1681, 2
      %v1898 = vsel %vm1838, %v1893, %v1897
      %v1899 = vrot.slane %v1682, 2
      %v1900 = vrot.slane %v1683, 2
      %v1901 = vrot.slane %v1684, 2
      %v1902 = vsel %vm1838, %v1899, %v1901
      %v1903 = vrot.slane %v1685, 2
      %v1904 = vsel %vm1838, %v1900, %v1903
      %v1905 = vrot.slane %v1686, 2
      %v1906 = vsel %vm1838, %v1901, %v1905
      %v1907 = vrot.slane %v1687, 2
      %v1908 = vsel %vm1838, %v1903, %v1907
      %v1909 = vrot.slane %v1688, 2
      %v1910 = vrot.slane %v1689, 2
      %v1911 = vrot.slane %v1690, 2
      %v1912 = vsel %vm1838, %v1909, %v1911
      %v1913 = vrot.slane %v1691, 2
      %v1914 = vsel %vm1838, %v1910, %v1913
      %v1915 = vrot.slane %v1692, 2
      %v1916 = vsel %vm1838, %v1911, %v1915
      %v1917 = vrot.slane %v1693, 2
      %v1918 = vsel %vm1838, %v1913, %v1917
      %v1919 = vrot.slane %v1694, 2
      %v1920 = vrot.slane %v1695, 2
      %v1921 = vrot.slane %v1696, 2
      %v1922 = vsel %vm1838, %v1919, %v1921
      %v1923 = vrot.slane %v1697, 2
      %v1924 = vsel %vm1838, %v1920, %v1923
      %v1925 = vrot.slane %v1698, 2
      %v1926 = vsel %vm1838, %v1921, %v1925
      %v1927 = vrot.slane %v1699, 2
      %v1928 = vsel %vm1838, %v1923, %v1927
      %v1929 = vrot.slane %v1700, 2
      %v1930 = vrot.slane %v1701, 2
      %v1931 = vrot.slane %v1702, 2
      %v1932 = vsel %vm1838, %v1929, %v1931
      %v1933 = vrot.slane %v1703, 2
      %v1934 = vsel %vm1838, %v1930, %v1933
      %v1935 = vrot.slane %v1704, 2
      %v1936 = vsel %vm1838, %v1931, %v1935
      %v1937 = vrot.slane %v1705, 2
      %v1938 = vsel %vm1838, %v1933, %v1937
      %v1939 = vrot.slane %v1706, 2
      %v1940 = vrot.slane %v1707, 2
      %v1941 = vrot.slane %v1708, 2
      %v1942 = vsel %vm1838, %v1939, %v1941
      %v1943 = vrot.slane %v1709, 2
      %v1944 = vsel %vm1838, %v1940, %v1943
      %v1945 = vrot.slane %v1710, 2
      %v1946 = vsel %vm1838, %v1941, %v1945
      %v1947 = vrot.slane %v1711, 2
      %v1948 = vsel %vm1838, %v1943, %v1947
      %v1949 = vrot.slane %v1712, 2
      %v1950 = vrot.slane %v1713, 2
      %v1951 = vrot.slane %v1714, 2
      %v1952 = vsel %vm1838, %v1949, %v1951
      %v1953 = vrot.slane %v1715, 2
      %v1954 = vsel %vm1838, %v1950, %v1953
      %v1955 = vrot.slane %v1716, 2
      %v1956 = vsel %vm1838, %v1951, %v1955
      %v1957 = vrot.slane %v1717, 2
      %v1958 = vsel %vm1838, %v1953, %v1957
      %v1959 = vrot.slane %v1718, 2
      %v1960 = vrot.slane %v1719, 2
      %v1961 = vrot.slane %v1720, 2
      %v1962 = vsel %vm1838, %v1959, %v1961
      %v1963 = vrot.slane %v1721, 2
      %v1964 = vsel %vm1838, %v1960, %v1963
      %v1965 = vrot.slane %v1722, 2
      %v1966 = vsel %vm1838, %v1961, %v1965
      %v1967 = vrot.slane %v1723, 2
      %v1968 = vsel %vm1838, %v1963, %v1967
      %v1969 = vrot.slane %v1724, 2
      %v1970 = vrot.slane %v1725, 2
      %v1971 = vrot.slane %v1726, 2
      %v1972 = vsel %vm1838, %v1969, %v1971
      %v1973 = vrot.slane %v1727, 2
      %v1974 = vsel %vm1838, %v1970, %v1973
      %v1975 = vrot.slane %v1728, 2
      %v1976 = vsel %vm1838, %v1971, %v1975
      %v1977 = vrot.slane %v1729, 2
      %v1978 = vsel %vm1838, %v1973, %v1977
      %v1979 = vrot.slane %v1730, 2
      %v1980 = vrot.slane %v1731, 2
      %v1981 = vrot.slane %v1732, 2
      %v1982 = vsel %vm1838, %v1979, %v1981
      %v1983 = vrot.slane %v1733, 2
      %v1984 = vsel %vm1838, %v1980, %v1983
      %v1985 = vrot.slane %v1734, 2
      %v1986 = vsel %vm1838, %v1981, %v1985
      %v1987 = vrot.slane %v1735, 2
      %v1988 = vsel %vm1838, %v1983, %v1987
      %v1989 = vrot.slane %v1736, 2
      %v1990 = vrot.slane %v1737, 2
      %v1991 = vrot.slane %v1738, 2
      %v1992 = vsel %vm1838, %v1989, %v1991
      %v1993 = vrot.slane %v1739, 2
      %v1994 = vsel %vm1838, %v1990, %v1993
      %v1995 = vrot.slane %v1740, 2
      %v1996 = vsel %vm1838, %v1991, %v1995
      %v1997 = vrot.slane %v1741, 2
      %v1998 = vsel %vm1838, %v1993, %v1997
      %v2095 = vadd.f32 %v1473, %v1839
      %v2096 = vadd.f32 %v1474, %v1840
      %v2097 = vadd.f32 %v1475, %v1842
      %v2098 = vadd.f32 %v1476, %v1844
      %v2099 = vadd.f32 %v1477, %v1846
      %v2100 = vadd.f32 %v1478, %v1848
      %v2101 = vadd.f32 %v1479, %v1849
      %v2102 = vadd.f32 %v1480, %v1850
      %v2103 = vadd.f32 %v1481, %v1852
      %v2104 = vadd.f32 %v1482, %v1854
      %v2105 = vadd.f32 %v1483, %v1856
      %v2106 = vadd.f32 %v1484, %v1858
      %v2107 = vadd.f32 %v1485, %v1859
      %v2108 = vadd.f32 %v1486, %v1860
      %v2109 = vadd.f32 %v1487, %v1862
      %v2110 = vadd.f32 %v1488, %v1864
      %v2111 = vadd.f32 %v1489, %v1866
      %v2112 = vadd.f32 %v1490, %v1868
      %v2113 = vadd.f32 %v1491, %v1869
      %v2114 = vadd.f32 %v1492, %v1870
      %v2115 = vadd.f32 %v1493, %v1872
      %v2116 = vadd.f32 %v1494, %v1874
      %v2117 = vadd.f32 %v1495, %v1876
      %v2118 = vadd.f32 %v1496, %v1878
      %v2119 = vadd.f32 %v1497, %v1879
      %v2120 = vadd.f32 %v1498, %v1880
      %v2121 = vadd.f32 %v1499, %v1882
      %v2122 = vadd.f32 %v1500, %v1884
      %v2123 = vadd.f32 %v1501, %v1886
      %v2124 = vadd.f32 %v1502, %v1888
      %v2125 = vadd.f32 %v1503, %v1889
      %v2126 = vadd.f32 %v1504, %v1890
      %v2127 = vadd.f32 %v1505, %v1892
      %v2128 = vadd.f32 %v1506, %v1894
      %v2129 = vadd.f32 %v1507, %v1896
      %v2130 = vadd.f32 %v1508, %v1898
      %v2131 = vadd.f32 %v1509, %v1899
      %v2132 = vadd.f32 %v1510, %v1900
      %v2133 = vadd.f32 %v1511, %v1902
      %v2134 = vadd.f32 %v1512, %v1904
      %v2135 = vadd.f32 %v1513, %v1906
      %v2136 = vadd.f32 %v1514, %v1908
      %v2137 = vadd.f32 %v1515, %v1909
      %v2138 = vadd.f32 %v1516, %v1910
      %v2139 = vadd.f32 %v1517, %v1912
      %v2140 = vadd.f32 %v1518, %v1914
      %v2141 = vadd.f32 %v1519, %v1916
      %v2142 = vadd.f32 %v1520, %v1918
      %v2143 = vadd.f32 %v1521, %v1919
      %v2144 = vadd.f32 %v1522, %v1920
      %v2145 = vadd.f32 %v1523, %v1922
      %v2146 = vadd.f32 %v1524, %v1924
      %v2147 = vadd.f32 %v1525, %v1926
      %v2148 = vadd.f32 %v1526, %v1928
      %v2149 = vadd.f32 %v1527, %v1929
      %v2150 = vadd.f32 %v1528, %v1930
      %v2151 = vadd.f32 %v1529, %v1932
      %v2152 = vadd.f32 %v1530, %v1934
      %v2153 = vadd.f32 %v1531, %v1936
      %v2154 = vadd.f32 %v1532, %v1938
      %v2155 = vadd.f32 %v1533, %v1939
      %v2156 = vadd.f32 %v1534, %v1940
      %v2157 = vadd.f32 %v1535, %v1942
      %v2158 = vadd.f32 %v1536, %v1944
      %v2159 = vadd.f32 %v1537, %v1946
      %v2160 = vadd.f32 %v1538, %v1948
      %v2161 = vadd.f32 %v1539, %v1949
      %v2162 = vadd.f32 %v1540, %v1950
      %v2163 = vadd.f32 %v1541, %v1952
      %v2164 = vadd.f32 %v1542, %v1954
      %v2165 = vadd.f32 %v1543, %v1956
      %v2166 = vadd.f32 %v1544, %v1958
      %v2167 = vadd.f32 %v1545, %v1959
      %v2168 = vadd.f32 %v1546, %v1960
      %v2169 = vadd.f32 %v1547, %v1962
      %v2170 = vadd.f32 %v1548, %v1964
      %v2171 = vadd.f32 %v1549, %v1966
      %v2172 = vadd.f32 %v1550, %v1968
      %v2173 = vadd.f32 %v1551, %v1969
      %v2174 = vadd.f32 %v1552, %v1970
      %v2175 = vadd.f32 %v1553, %v1972
      %v2176 = vadd.f32 %v1554, %v1974
      %v2177 = vadd.f32 %v1555, %v1976
      %v2178 = vadd.f32 %v1556, %v1978
      %v2179 = vadd.f32 %v1557, %v1979
      %v2180 = vadd.f32 %v1558, %v1980
      %v2181 = vadd.f32 %v1559, %v1982
      %v2182 = vadd.f32 %v1560, %v1984
      %v2183 = vadd.f32 %v1561, %v1986
      %v2184 = vadd.f32 %v1562, %v1988
      %v2185 = vadd.f32 %v1563, %v1989
      %v2186 = vadd.f32 %v1564, %v1990
      %v2187 = vadd.f32 %v1565, %v1992
      %v2188 = vadd.f32 %v1566, %v1994
      %v2189 = vadd.f32 %v1567, %v1996
      %v2190 = vadd.f32 %v1568, %v1998
      %s2191 = scalar_lea.vmem %s3, 3
      %v2192 = vld [vmem:[%s2191] ss:$8 sm:$0x3]
      %v2193 = vld [vmem:[%s838] sm:$0x80]
      %v2194 = vld [vmem:[%s838 + $0x8] sm:$0x80]
      %v2195 = vld [vmem:[%s838 + $0x10] sm:$0xff]
      %v2196 = vld [vmem:[%s838 + $0x18] sm:$0xff]
      %v2197 = vld [vmem:[%s838 + $0x20] sm:$0x7f]
      %v2198 = vld [vmem:[%s838 + $0x28] sm:$0x7f]
      %v2199 = vld [vmem:[%s838 + $0x40] sm:$0x80]
      %v2200 = vld [vmem:[%s838 + $0x48] sm:$0x80]
      %v2201 = vld [vmem:[%s838 + $0x50] sm:$0xff]
      %v2202 = vld [vmem:[%s838 + $0x58] sm:$0xff]
      %v2203 = vld [vmem:[%s838 + $0x60] sm:$0x7f]
      %v2204 = vld [vmem:[%s838 + $0x68] sm:$0x7f]
      %v2205 = vld [vmem:[%s838 + $0x80] sm:$0x80]
      %v2206 = vld [vmem:[%s838 + $0x88] sm:$0x80]
      %v2207 = vld [vmem:[%s838 + $0x90] sm:$0xff]
      %v2208 = vld [vmem:[%s838 + $0x98] sm:$0xff]
      %v2209 = vld [vmem:[%s838 + $0xa0] sm:$0x7f]
      %v2210 = vld [vmem:[%s838 + $0xa8] sm:$0x7f]
      %v2211 = vld [vmem:[%s838 + $0xc0] sm:$0x80]
      %v2212 = vld [vmem:[%s838 + $0xc8] sm:$0x80]
      %v2213 = vld [vmem:[%s838 + $0xd0] sm:$0xff]
      %v2214 = vld [vmem:[%s838 + $0xd8] sm:$0xff]
      %v2215 = vld [vmem:[%s838 + $0xe0] sm:$0x7f]
      %v2216 = vld [vmem:[%s838 + $0xe8] sm:$0x7f]
      %v2217 = vld [vmem:[%s838 + $0x100] sm:$0x80]
      %v2218 = vld [vmem:[%s838 + $0x108] sm:$0x80]
      %v2219 = vld [vmem:[%s838 + $0x110] sm:$0xff]
      %v2220 = vld [vmem:[%s838 + $0x118] sm:$0xff]
      %v2221 = vld [vmem:[%s838 + $0x120] sm:$0x7f]
      %v2222 = vld [vmem:[%s838 + $0x128] sm:$0x7f]
      %v2223 = vld [vmem:[%s838 + $0x140] sm:$0x80]
      %v2224 = vld [vmem:[%s838 + $0x148] sm:$0x80]
      %v2225 = vld [vmem:[%s838 + $0x150] sm:$0xff]
      %v2226 = vld [vmem:[%s838 + $0x158] sm:$0xff]
      %v2227 = vld [vmem:[%s838 + $0x160] sm:$0x7f]
      %v2228 = vld [vmem:[%s838 + $0x168] sm:$0x7f]
      %v2229 = vld [vmem:[%s838 + $0x180] sm:$0x80]
      %v2230 = vld [vmem:[%s838 + $0x188] sm:$0x80]
      %v2231 = vld [vmem:[%s838 + $0x190] sm:$0xff]
      %v2232 = vld [vmem:[%s838 + $0x198] sm:$0xff]
      %v2233 = vld [vmem:[%s838 + $0x1a0] sm:$0x7f]
      %v2234 = vld [vmem:[%s838 + $0x1a8] sm:$0x7f]
      %v2235 = vld [vmem:[%s838 + $0x1c0] sm:$0x80]
      %v2236 = vld [vmem:[%s838 + $0x1c8] sm:$0x80]
      %v2237 = vld [vmem:[%s838 + $0x1d0] sm:$0xff]
      %v2238 = vld [vmem:[%s838 + $0x1d8] sm:$0xff]
      %v2239 = vld [vmem:[%s838 + $0x1e0] sm:$0x7f]
      %v2240 = vld [vmem:[%s838 + $0x1e8] sm:$0x7f]
      %v2241 = vld [vmem:[%s838 + $0x200] sm:$0x80]
      %v2242 = vld [vmem:[%s838 + $0x208] sm:$0x80]
      %v2243 = vld [vmem:[%s838 + $0x210] sm:$0xff]
      %v2244 = vld [vmem:[%s838 + $0x218] sm:$0xff]
      %v2245 = vld [vmem:[%s838 + $0x220] sm:$0x7f]
      %v2246 = vld [vmem:[%s838 + $0x228] sm:$0x7f]
      %v2247 = vld [vmem:[%s838 + $0x240] sm:$0x80]
      %v2248 = vld [vmem:[%s838 + $0x248] sm:$0x80]
      %v2249 = vld [vmem:[%s838 + $0x250] sm:$0xff]
      %v2250 = vld [vmem:[%s838 + $0x258] sm:$0xff]
      %v2251 = vld [vmem:[%s838 + $0x260] sm:$0x7f]
      %v2252 = vld [vmem:[%s838 + $0x268] sm:$0x7f]
      %v2253 = vld [vmem:[%s838 + $0x280] sm:$0x80]
      %v2254 = vld [vmem:[%s838 + $0x288] sm:$0x80]
      %v2255 = vld [vmem:[%s838 + $0x290] sm:$0xff]
      %v2256 = vld [vmem:[%s838 + $0x298] sm:$0xff]
      %v2257 = vld [vmem:[%s838 + $0x2a0] sm:$0x7f]
      %v2258 = vld [vmem:[%s838 + $0x2a8] sm:$0x7f]
      %v2259 = vld [vmem:[%s838 + $0x2c0] sm:$0x80]
      %v2260 = vld [vmem:[%s838 + $0x2c8] sm:$0x80]
      %v2261 = vld [vmem:[%s838 + $0x2d0] sm:$0xff]
      %v2262 = vld [vmem:[%s838 + $0x2d8] sm:$0xff]
      %v2263 = vld [vmem:[%s838 + $0x2e0] sm:$0x7f]
      %v2264 = vld [vmem:[%s838 + $0x2e8] sm:$0x7f]
      %v2265 = vld [vmem:[%s838 + $0x300] sm:$0x80]
      %v2266 = vld [vmem:[%s838 + $0x308] sm:$0x80]
      %v2267 = vld [vmem:[%s838 + $0x310] sm:$0xff]
      %v2268 = vld [vmem:[%s838 + $0x318] sm:$0xff]
      %v2269 = vld [vmem:[%s838 + $0x320] sm:$0x7f]
      %v2270 = vld [vmem:[%s838 + $0x328] sm:$0x7f]
      %v2271 = vld [vmem:[%s838 + $0x340] sm:$0x80]
      %v2272 = vld [vmem:[%s838 + $0x348] sm:$0x80]
      %v2273 = vld [vmem:[%s838 + $0x350] sm:$0xff]
      %v2274 = vld [vmem:[%s838 + $0x358] sm:$0xff]
      %v2275 = vld [vmem:[%s838 + $0x360] sm:$0x7f]
      %v2276 = vld [vmem:[%s838 + $0x368] sm:$0x7f]
      %v2277 = vld [vmem:[%s838 + $0x380] sm:$0x80]
      %v2278 = vld [vmem:[%s838 + $0x388] sm:$0x80]
      %v2279 = vld [vmem:[%s838 + $0x390] sm:$0xff]
      %v2280 = vld [vmem:[%s838 + $0x398] sm:$0xff]
      %v2281 = vld [vmem:[%s838 + $0x3a0] sm:$0x7f]
      %v2282 = vld [vmem:[%s838 + $0x3a8] sm:$0x7f]
      %v2283 = vld [vmem:[%s838 + $0x3c0] sm:$0x80]
      %v2284 = vld [vmem:[%s838 + $0x3c8] sm:$0x80]
      %v2285 = vld [vmem:[%s838 + $0x3d0] sm:$0xff]
      %v2286 = vld [vmem:[%s838 + $0x3d8] sm:$0xff]
      %v2287 = vld [vmem:[%s838 + $0x3e0] sm:$0x7f]
      %v2288 = vld [vmem:[%s838 + $0x3e8] sm:$0x7f]
      %v2290 = vlaneseq
      %v2291 = vshrl.u32 %v2290, 7
      %v2292 = vsub.s32 0, %v2291
      %v2293 = vrot.slane %v2192, %v2292
      %v2294 = vlaneseq
      %v2295 = vshrl.u32 %v2294, 7
      %v2296 = vsub.s32 1, %v2295
      %v2297 = vrot.slane %v2192, %v2296
      %v2300 = vmul.f32 %v2193, %v2293
      %v2301 = vmul.f32 %v2194, %v2297
      %v2302 = vmul.f32 %v2195, %v2293
      %v2303 = vmul.f32 %v2196, %v2297
      %v2304 = vmul.f32 %v2197, %v2293
      %v2305 = vmul.f32 %v2198, %v2297
      %v2306 = vmul.f32 %v2199, %v2293
      %v2307 = vmul.f32 %v2200, %v2297
      %v2308 = vmul.f32 %v2201, %v2293
      %v2309 = vmul.f32 %v2202, %v2297
      %v2310 = vmul.f32 %v2203, %v2293
      %v2311 = vmul.f32 %v2204, %v2297
      %v2312 = vmul.f32 %v2205, %v2293
      %v2313 = vmul.f32 %v2206, %v2297
      %v2314 = vmul.f32 %v2207, %v2293
      %v2315 = vmul.f32 %v2208, %v2297
      %v2316 = vmul.f32 %v2209, %v2293
      %v2317 = vmul.f32 %v2210, %v2297
      %v2318 = vmul.f32 %v2211, %v2293
      %v2319 = vmul.f32 %v2212, %v2297
      %v2320 = vmul.f32 %v2213, %v2293
      %v2321 = vmul.f32 %v2214, %v2297
      %v2322 = vmul.f32 %v2215, %v2293
      %v2323 = vmul.f32 %v2216, %v2297
      %v2324 = vmul.f32 %v2217, %v2293
      %v2325 = vmul.f32 %v2218, %v2297
      %v2326 = vmul.f32 %v2219, %v2293
      %v2327 = vmul.f32 %v2220, %v2297
      %v2328 = vmul.f32 %v2221, %v2293
      %v2329 = vmul.f32 %v2222, %v2297
      %v2330 = vmul.f32 %v2223, %v2293
      %v2331 = vmul.f32 %v2224, %v2297
      %v2332 = vmul.f32 %v2225, %v2293
      %v2333 = vmul.f32 %v2226, %v2297
      %v2334 = vmul.f32 %v2227, %v2293
      %v2335 = vmul.f32 %v2228, %v2297
      %v2336 = vmul.f32 %v2229, %v2293
      %v2337 = vmul.f32 %v2230, %v2297
      %v2338 = vmul.f32 %v2231, %v2293
      %v2339 = vmul.f32 %v2232, %v2297
      %v2340 = vmul.f32 %v2233, %v2293
      %v2341 = vmul.f32 %v2234, %v2297
      %v2342 = vmul.f32 %v2235, %v2293
      %v2343 = vmul.f32 %v2236, %v2297
      %v2344 = vmul.f32 %v2237, %v2293
      %v2345 = vmul.f32 %v2238, %v2297
      %v2346 = vmul.f32 %v2239, %v2293
      %v2347 = vmul.f32 %v2240, %v2297
      %v2348 = vmul.f32 %v2241, %v2293
      %v2349 = vmul.f32 %v2242, %v2297
      %v2350 = vmul.f32 %v2243, %v2293
      %v2351 = vmul.f32 %v2244, %v2297
      %v2352 = vmul.f32 %v2245, %v2293
      %v2353 = vmul.f32 %v2246, %v2297
      %v2354 = vmul.f32 %v2247, %v2293
      %v2355 = vmul.f32 %v2248, %v2297
      %v2356 = vmul.f32 %v2249, %v2293
      %v2357 = vmul.f32 %v2250, %v2297
      %v2358 = vmul.f32 %v2251, %v2293
      %v2359 = vmul.f32 %v2252, %v2297
      %v2360 = vmul.f32 %v2253, %v2293
      %v2361 = vmul.f32 %v2254, %v2297
      %v2362 = vmul.f32 %v2255, %v2293
      %v2363 = vmul.f32 %v2256, %v2297
      %v2364 = vmul.f32 %v2257, %v2293
      %v2365 = vmul.f32 %v2258, %v2297
      %v2366 = vmul.f32 %v2259, %v2293
      %v2367 = vmul.f32 %v2260, %v2297
      %v2368 = vmul.f32 %v2261, %v2293
      %v2369 = vmul.f32 %v2262, %v2297
      %v2370 = vmul.f32 %v2263, %v2293
      %v2371 = vmul.f32 %v2264, %v2297
      %v2372 = vmul.f32 %v2265, %v2293
      %v2373 = vmul.f32 %v2266, %v2297
      %v2374 = vmul.f32 %v2267, %v2293
      %v2375 = vmul.f32 %v2268, %v2297
      %v2376 = vmul.f32 %v2269, %v2293
      %v2377 = vmul.f32 %v2270, %v2297
      %v2378 = vmul.f32 %v2271, %v2293
      %v2379 = vmul.f32 %v2272, %v2297
      %v2380 = vmul.f32 %v2273, %v2293
      %v2381 = vmul.f32 %v2274, %v2297
      %v2382 = vmul.f32 %v2275, %v2293
      %v2383 = vmul.f32 %v2276, %v2297
      %v2384 = vmul.f32 %v2277, %v2293
      %v2385 = vmul.f32 %v2278, %v2297
      %v2386 = vmul.f32 %v2279, %v2293
      %v2387 = vmul.f32 %v2280, %v2297
      %v2388 = vmul.f32 %v2281, %v2293
      %v2389 = vmul.f32 %v2282, %v2297
      %v2390 = vmul.f32 %v2283, %v2293
      %v2391 = vmul.f32 %v2284, %v2297
      %v2392 = vmul.f32 %v2285, %v2293
      %v2393 = vmul.f32 %v2286, %v2297
      %v2394 = vmul.f32 %v2287, %v2293
      %v2395 = vmul.f32 %v2288, %v2297
      %v2396 = vadd.f32 %v2095, %v2300
      %v2397 = vadd.f32 %v2096, %v2301
      %v2398 = vadd.f32 %v2097, %v2302
      %v2399 = vadd.f32 %v2098, %v2303
      %v2400 = vadd.f32 %v2099, %v2304
      %v2401 = vadd.f32 %v2100, %v2305
      %v2402 = vadd.f32 %v2101, %v2306
      %v2403 = vadd.f32 %v2102, %v2307
      %v2404 = vadd.f32 %v2103, %v2308
      %v2405 = vadd.f32 %v2104, %v2309
      %v2406 = vadd.f32 %v2105, %v2310
      %v2407 = vadd.f32 %v2106, %v2311
      %v2408 = vadd.f32 %v2107, %v2312
      %v2409 = vadd.f32 %v2108, %v2313
      %v2410 = vadd.f32 %v2109, %v2314
      %v2411 = vadd.f32 %v2110, %v2315
      %v2412 = vadd.f32 %v2111, %v2316
      %v2413 = vadd.f32 %v2112, %v2317
      %v2414 = vadd.f32 %v2113, %v2318
      %v2415 = vadd.f32 %v2114, %v2319
      %v2416 = vadd.f32 %v2115, %v2320
      %v2417 = vadd.f32 %v2116, %v2321
      %v2418 = vadd.f32 %v2117, %v2322
      %v2419 = vadd.f32 %v2118, %v2323
      %v2420 = vadd.f32 %v2119, %v2324
      %v2421 = vadd.f32 %v2120, %v2325
      %v2422 = vadd.f32 %v2121, %v2326
      %v2423 = vadd.f32 %v2122, %v2327
      %v2424 = vadd.f32 %v2123, %v2328
      %v2425 = vadd.f32 %v2124, %v2329
      %v2426 = vadd.f32 %v2125, %v2330
      %v2427 = vadd.f32 %v2126, %v2331
      %v2428 = vadd.f32 %v2127, %v2332
      %v2429 = vadd.f32 %v2128, %v2333
      %v2430 = vadd.f32 %v2129, %v2334
      %v2431 = vadd.f32 %v2130, %v2335
      %v2432 = vadd.f32 %v2131, %v2336
      %v2433 = vadd.f32 %v2132, %v2337
      %v2434 = vadd.f32 %v2133, %v2338
      %v2435 = vadd.f32 %v2134, %v2339
      %v2436 = vadd.f32 %v2135, %v2340
      %v2437 = vadd.f32 %v2136, %v2341
      %v2438 = vadd.f32 %v2137, %v2342
      %v2439 = vadd.f32 %v2138, %v2343
      %v2440 = vadd.f32 %v2139, %v2344
      %v2441 = vadd.f32 %v2140, %v2345
      %v2442 = vadd.f32 %v2141, %v2346
      %v2443 = vadd.f32 %v2142, %v2347
      %v2444 = vadd.f32 %v2143, %v2348
      %v2445 = vadd.f32 %v2144, %v2349
      %v2446 = vadd.f32 %v2145, %v2350
      %v2447 = vadd.f32 %v2146, %v2351
      %v2448 = vadd.f32 %v2147, %v2352
      %v2449 = vadd.f32 %v2148, %v2353
      %v2450 = vadd.f32 %v2149, %v2354
      %v2451 = vadd.f32 %v2150, %v2355
      %v2452 = vadd.f32 %v2151, %v2356
      %v2453 = vadd.f32 %v2152, %v2357
      %v2454 = vadd.f32 %v2153, %v2358
      %v2455 = vadd.f32 %v2154, %v2359
      %v2456 = vadd.f32 %v2155, %v2360
      %v2457 = vadd.f32 %v2156, %v2361
      %v2458 = vadd.f32 %v2157, %v2362
      %v2459 = vadd.f32 %v2158, %v2363
      %v2460 = vadd.f32 %v2159, %v2364
      %v2461 = vadd.f32 %v2160, %v2365
      %v2462 = vadd.f32 %v2161, %v2366
      %v2463 = vadd.f32 %v2162, %v2367
      %v2464 = vadd.f32 %v2163, %v2368
      %v2465 = vadd.f32 %v2164, %v2369
      %v2466 = vadd.f32 %v2165, %v2370
      %v2467 = vadd.f32 %v2166, %v2371
      %v2468 = vadd.f32 %v2167, %v2372
      %v2469 = vadd.f32 %v2168, %v2373
      %v2470 = vadd.f32 %v2169, %v2374
      %v2471 = vadd.f32 %v2170, %v2375
      %v2472 = vadd.f32 %v2171, %v2376
      %v2473 = vadd.f32 %v2172, %v2377
      %v2474 = vadd.f32 %v2173, %v2378
      %v2475 = vadd.f32 %v2174, %v2379
      %v2476 = vadd.f32 %v2175, %v2380
      %v2477 = vadd.f32 %v2176, %v2381
      %v2478 = vadd.f32 %v2177, %v2382
      %v2479 = vadd.f32 %v2178, %v2383
      %v2480 = vadd.f32 %v2179, %v2384
      %v2481 = vadd.f32 %v2180, %v2385
      %v2482 = vadd.f32 %v2181, %v2386
      %v2483 = vadd.f32 %v2182, %v2387
      %v2484 = vadd.f32 %v2183, %v2388
      %v2485 = vadd.f32 %v2184, %v2389
      %v2486 = vadd.f32 %v2185, %v2390
      %v2487 = vadd.f32 %v2186, %v2391
      %v2488 = vadd.f32 %v2187, %v2392
      %v2489 = vadd.f32 %v2188, %v2393
      %v2490 = vadd.f32 %v2189, %v2394
      %v2491 = vadd.f32 %v2190, %v2395
      %s2492 = scalar_lea.vmem %s3, 4
      %v2493 = vld [vmem:[%s2492] ss:$8 sm:$0x3]
      %v2494 = vld [vmem:[%s838 + $0x20] sm:$0xff]
      %v2495 = vld [vmem:[%s838 + $0x28] sm:$0xff]
      %v2496 = vld [vmem:[%s838 + $0x60] sm:$0xff]
      %v2497 = vld [vmem:[%s838 + $0x68] sm:$0xff]
      %v2498 = vld [vmem:[%s838 + $0xa0] sm:$0xff]
      %v2499 = vld [vmem:[%s838 + $0xa8] sm:$0xff]
      %v2500 = vld [vmem:[%s838 + $0xe0] sm:$0xff]
      %v2501 = vld [vmem:[%s838 + $0xe8] sm:$0xff]
      %v2502 = vld [vmem:[%s838 + $0x120] sm:$0xff]
      %v2503 = vld [vmem:[%s838 + $0x128] sm:$0xff]
      %v2504 = vld [vmem:[%s838 + $0x160] sm:$0xff]
      %v2505 = vld [vmem:[%s838 + $0x168] sm:$0xff]
      %v2506 = vld [vmem:[%s838 + $0x1a0] sm:$0xff]
      %v2507 = vld [vmem:[%s838 + $0x1a8] sm:$0xff]
      %v2508 = vld [vmem:[%s838 + $0x1e0] sm:$0xff]
      %v2509 = vld [vmem:[%s838 + $0x1e8] sm:$0xff]
      %v2510 = vld [vmem:[%s838 + $0x220] sm:$0xff]
      %v2511 = vld [vmem:[%s838 + $0x228] sm:$0xff]
      %v2512 = vld [vmem:[%s838 + $0x260] sm:$0xff]
      %v2513 = vld [vmem:[%s838 + $0x268] sm:$0xff]
      %v2514 = vld [vmem:[%s838 + $0x2a0] sm:$0xff]
      %v2515 = vld [vmem:[%s838 + $0x2a8] sm:$0xff]
      %v2516 = vld [vmem:[%s838 + $0x2e0] sm:$0xff]
      %v2517 = vld [vmem:[%s838 + $0x2e8] sm:$0xff]
      %v2518 = vld [vmem:[%s838 + $0x320] sm:$0xff]
      %v2519 = vld [vmem:[%s838 + $0x328] sm:$0xff]
      %v2520 = vld [vmem:[%s838 + $0x360] sm:$0xff]
      %v2521 = vld [vmem:[%s838 + $0x368] sm:$0xff]
      %v2522 = vld [vmem:[%s838 + $0x3a0] sm:$0xff]
      %v2523 = vld [vmem:[%s838 + $0x3a8] sm:$0xff]
      %v2524 = vld [vmem:[%s838 + $0x3e0] sm:$0xff]
      %v2525 = vld [vmem:[%s838 + $0x3e8] sm:$0xff]
      %v2527 = vlaneseq
      %v2528 = vshrl.u32 %v2527, 7
      %v2529 = vsub.s32 0, %v2528
      %v2530 = vrot.slane %v2493, %v2529
      %v2531 = vlaneseq
      %v2532 = vshrl.u32 %v2531, 7
      %v2533 = vsub.s32 1, %v2532
      %v2534 = vrot.slane %v2493, %v2533
      %v2537 = vmul.f32 %v2195, %v2530
      %v2538 = vmul.f32 %v2196, %v2534
      %v2539 = vmul.f32 %v2494, %v2530
      %v2540 = vmul.f32 %v2495, %v2534
      %v2541 = vmul.f32 %v2201, %v2530
      %v2542 = vmul.f32 %v2202, %v2534
      %v2543 = vmul.f32 %v2496, %v2530
      %v2544 = vmul.f32 %v2497, %v2534
      %v2545 = vmul.f32 %v2207, %v2530
      %v2546 = vmul.f32 %v2208, %v2534
      %v2547 = vmul.f32 %v2498, %v2530
      %v2548 = vmul.f32 %v2499, %v2534
      %v2549 = vmul.f32 %v2213, %v2530
      %v2550 = vmul.f32 %v2214, %v2534
      %v2551 = vmul.f32 %v2500, %v2530
      %v2552 = vmul.f32 %v2501, %v2534
      %v2553 = vmul.f32 %v2219, %v2530
      %v2554 = vmul.f32 %v2220, %v2534
      %v2555 = vmul.f32 %v2502, %v2530
      %v2556 = vmul.f32 %v2503, %v2534
      %v2557 = vmul.f32 %v2225, %v2530
      %v2558 = vmul.f32 %v2226, %v2534
      %v2559 = vmul.f32 %v2504, %v2530
      %v2560 = vmul.f32 %v2505, %v2534
      %v2561 = vmul.f32 %v2231, %v2530
      %v2562 = vmul.f32 %v2232, %v2534
      %v2563 = vmul.f32 %v2506, %v2530
      %v2564 = vmul.f32 %v2507, %v2534
      %v2565 = vmul.f32 %v2237, %v2530
      %v2566 = vmul.f32 %v2238, %v2534
      %v2567 = vmul.f32 %v2508, %v2530
      %v2568 = vmul.f32 %v2509, %v2534
      %v2569 = vmul.f32 %v2243, %v2530
      %v2570 = vmul.f32 %v2244, %v2534
      %v2571 = vmul.f32 %v2510, %v2530
      %v2572 = vmul.f32 %v2511, %v2534
      %v2573 = vmul.f32 %v2249, %v2530
      %v2574 = vmul.f32 %v2250, %v2534
      %v2575 = vmul.f32 %v2512, %v2530
      %v2576 = vmul.f32 %v2513, %v2534
      %v2577 = vmul.f32 %v2255, %v2530
      %v2578 = vmul.f32 %v2256, %v2534
      %v2579 = vmul.f32 %v2514, %v2530
      %v2580 = vmul.f32 %v2515, %v2534
      %v2581 = vmul.f32 %v2261, %v2530
      %v2582 = vmul.f32 %v2262, %v2534
      %v2583 = vmul.f32 %v2516, %v2530
      %v2584 = vmul.f32 %v2517, %v2534
      %v2585 = vmul.f32 %v2267, %v2530
      %v2586 = vmul.f32 %v2268, %v2534
      %v2587 = vmul.f32 %v2518, %v2530
      %v2588 = vmul.f32 %v2519, %v2534
      %v2589 = vmul.f32 %v2273, %v2530
      %v2590 = vmul.f32 %v2274, %v2534
      %v2591 = vmul.f32 %v2520, %v2530
      %v2592 = vmul.f32 %v2521, %v2534
      %v2593 = vmul.f32 %v2279, %v2530
      %v2594 = vmul.f32 %v2280, %v2534
      %v2595 = vmul.f32 %v2522, %v2530
      %v2596 = vmul.f32 %v2523, %v2534
      %v2597 = vmul.f32 %v2285, %v2530
      %v2598 = vmul.f32 %v2286, %v2534
      %v2599 = vmul.f32 %v2524, %v2530
      %v2600 = vmul.f32 %v2525, %v2534
      %v2665 = vrot.slane %v2537, 1
      %v2666 = vrot.slane %v2538, 1
      %v2667 = vrot.slane %v2539, 1
      %v2668 = vsel %vm1280, %v2665, %v2667
      %v2669 = vrot.slane %v2540, 1
      %v2670 = vsel %vm1280, %v2666, %v2669
      %v2671 = vrot.slane %v2541, 1
      %v2672 = vrot.slane %v2542, 1
      %v2673 = vrot.slane %v2543, 1
      %v2674 = vsel %vm1280, %v2671, %v2673
      %v2675 = vrot.slane %v2544, 1
      %v2676 = vsel %vm1280, %v2672, %v2675
      %v2677 = vrot.slane %v2545, 1
      %v2678 = vrot.slane %v2546, 1
      %v2679 = vrot.slane %v2547, 1
      %v2680 = vsel %vm1280, %v2677, %v2679
      %v2681 = vrot.slane %v2548, 1
      %v2682 = vsel %vm1280, %v2678, %v2681
      %v2683 = vrot.slane %v2549, 1
      %v2684 = vrot.slane %v2550, 1
      %v2685 = vrot.slane %v2551, 1
      %v2686 = vsel %vm1280, %v2683, %v2685
      %v2687 = vrot.slane %v2552, 1
      %v2688 = vsel %vm1280, %v2684, %v2687
      %v2689 = vrot.slane %v2553, 1
      %v2690 = vrot.slane %v2554, 1
      %v2691 = vrot.slane %v2555, 1
      %v2692 = vsel %vm1280, %v2689, %v2691
      %v2693 = vrot.slane %v2556, 1
      %v2694 = vsel %vm1280, %v2690, %v2693
      %v2695 = vrot.slane %v2557, 1
      %v2696 = vrot.slane %v2558, 1
      %v2697 = vrot.slane %v2559, 1
      %v2698 = vsel %vm1280, %v2695, %v2697
      %v2699 = vrot.slane %v2560, 1
      %v2700 = vsel %vm1280, %v2696, %v2699
      %v2701 = vrot.slane %v2561, 1
      %v2702 = vrot.slane %v2562, 1
      %v2703 = vrot.slane %v2563, 1
      %v2704 = vsel %vm1280, %v2701, %v2703
      %v2705 = vrot.slane %v2564, 1
      %v2706 = vsel %vm1280, %v2702, %v2705
      %v2707 = vrot.slane %v2565, 1
      %v2708 = vrot.slane %v2566, 1
      %v2709 = vrot.slane %v2567, 1
      %v2710 = vsel %vm1280, %v2707, %v2709
      %v2711 = vrot.slane %v2568, 1
      %v2712 = vsel %vm1280, %v2708, %v2711
      %v2713 = vrot.slane %v2569, 1
      %v2714 = vrot.slane %v2570, 1
      %v2715 = vrot.slane %v2571, 1
      %v2716 = vsel %vm1280, %v2713, %v2715
      %v2717 = vrot.slane %v2572, 1
      %v2718 = vsel %vm1280, %v2714, %v2717
      %v2719 = vrot.slane %v2573, 1
      %v2720 = vrot.slane %v2574, 1
      %v2721 = vrot.slane %v2575, 1
      %v2722 = vsel %vm1280, %v2719, %v2721
      %v2723 = vrot.slane %v2576, 1
      %v2724 = vsel %vm1280, %v2720, %v2723
      %v2725 = vrot.slane %v2577, 1
      %v2726 = vrot.slane %v2578, 1
      %v2727 = vrot.slane %v2579, 1
      %v2728 = vsel %vm1280, %v2725, %v2727
      %v2729 = vrot.slane %v2580, 1
      %v2730 = vsel %vm1280, %v2726, %v2729
      %v2731 = vrot.slane %v2581, 1
      %v2732 = vrot.slane %v2582, 1
      %v2733 = vrot.slane %v2583, 1
      %v2734 = vsel %vm1280, %v2731, %v2733
      %v2735 = vrot.slane %v2584, 1
      %v2736 = vsel %vm1280, %v2732, %v2735
      %v2737 = vrot.slane %v2585, 1
      %v2738 = vrot.slane %v2586, 1
      %v2739 = vrot.slane %v2587, 1
      %v2740 = vsel %vm1280, %v2737, %v2739
      %v2741 = vrot.slane %v2588, 1
      %v2742 = vsel %vm1280, %v2738, %v2741
      %v2743 = vrot.slane %v2589, 1
      %v2744 = vrot.slane %v2590, 1
      %v2745 = vrot.slane %v2591, 1
      %v2746 = vsel %vm1280, %v2743, %v2745
      %v2747 = vrot.slane %v2592, 1
      %v2748 = vsel %vm1280, %v2744, %v2747
      %v2749 = vrot.slane %v2593, 1
      %v2750 = vrot.slane %v2594, 1
      %v2751 = vrot.slane %v2595, 1
      %v2752 = vsel %vm1280, %v2749, %v2751
      %v2753 = vrot.slane %v2596, 1
      %v2754 = vsel %vm1280, %v2750, %v2753
      %v2755 = vrot.slane %v2597, 1
      %v2756 = vrot.slane %v2598, 1
      %v2757 = vrot.slane %v2599, 1
      %v2758 = vsel %vm1280, %v2755, %v2757
      %v2759 = vrot.slane %v2600, 1
      %v2760 = vsel %vm1280, %v2756, %v2759
      %v2857 = vadd.f32 %v2396, %v2665
      %v2858 = vadd.f32 %v2397, %v2666
      %v2859 = vadd.f32 %v2398, %v2668
      %v2860 = vadd.f32 %v2399, %v2670
      %v2861 = vadd.f32 %v2400, %v2667
      %v2862 = vadd.f32 %v2401, %v2669
      %v2863 = vadd.f32 %v2402, %v2671
      %v2864 = vadd.f32 %v2403, %v2672
      %v2865 = vadd.f32 %v2404, %v2674
      %v2866 = vadd.f32 %v2405, %v2676
      %v2867 = vadd.f32 %v2406, %v2673
      %v2868 = vadd.f32 %v2407, %v2675
      %v2869 = vadd.f32 %v2408, %v2677
      %v2870 = vadd.f32 %v2409, %v2678
      %v2871 = vadd.f32 %v2410, %v2680
      %v2872 = vadd.f32 %v2411, %v2682
      %v2873 = vadd.f32 %v2412, %v2679
      %v2874 = vadd.f32 %v2413, %v2681
      %v2875 = vadd.f32 %v2414, %v2683
      %v2876 = vadd.f32 %v2415, %v2684
      %v2877 = vadd.f32 %v2416, %v2686
      %v2878 = vadd.f32 %v2417, %v2688
      %v2879 = vadd.f32 %v2418, %v2685
      %v2880 = vadd.f32 %v2419, %v2687
      %v2881 = vadd.f32 %v2420, %v2689
      %v2882 = vadd.f32 %v2421, %v2690
      %v2883 = vadd.f32 %v2422, %v2692
      %v2884 = vadd.f32 %v2423, %v2694
      %v2885 = vadd.f32 %v2424, %v2691
      %v2886 = vadd.f32 %v2425, %v2693
      %v2887 = vadd.f32 %v2426, %v2695
      %v2888 = vadd.f32 %v2427, %v2696
      %v2889 = vadd.f32 %v2428, %v2698
      %v2890 = vadd.f32 %v2429, %v2700
      %v2891 = vadd.f32 %v2430, %v2697
      %v2892 = vadd.f32 %v2431, %v2699
      %v2893 = vadd.f32 %v2432, %v2701
      %v2894 = vadd.f32 %v2433, %v2702
      %v2895 = vadd.f32 %v2434, %v2704
      %v2896 = vadd.f32 %v2435, %v2706
      %v2897 = vadd.f32 %v2436, %v2703
      %v2898 = vadd.f32 %v2437, %v2705
      %v2899 = vadd.f32 %v2438, %v2707
      %v2900 = vadd.f32 %v2439, %v2708
      %v2901 = vadd.f32 %v2440, %v2710
      %v2902 = vadd.f32 %v2441, %v2712
      %v2903 = vadd.f32 %v2442, %v2709
      %v2904 = vadd.f32 %v2443, %v2711
      %v2905 = vadd.f32 %v2444, %v2713
      %v2906 = vadd.f32 %v2445, %v2714
      %v2907 = vadd.f32 %v2446, %v2716
      %v2908 = vadd.f32 %v2447, %v2718
      %v2909 = vadd.f32 %v2448, %v2715
      %v2910 = vadd.f32 %v2449, %v2717
      %v2911 = vadd.f32 %v2450, %v2719
      %v2912 = vadd.f32 %v2451, %v2720
      %v2913 = vadd.f32 %v2452, %v2722
      %v2914 = vadd.f32 %v2453, %v2724
      %v2915 = vadd.f32 %v2454, %v2721
      %v2916 = vadd.f32 %v2455, %v2723
      %v2917 = vadd.f32 %v2456, %v2725
      %v2918 = vadd.f32 %v2457, %v2726
      %v2919 = vadd.f32 %v2458, %v2728
      %v2920 = vadd.f32 %v2459, %v2730
      %v2921 = vadd.f32 %v2460, %v2727
      %v2922 = vadd.f32 %v2461, %v2729
      %v2923 = vadd.f32 %v2462, %v2731
      %v2924 = vadd.f32 %v2463, %v2732
      %v2925 = vadd.f32 %v2464, %v2734
      %v2926 = vadd.f32 %v2465, %v2736
      %v2927 = vadd.f32 %v2466, %v2733
      %v2928 = vadd.f32 %v2467, %v2735
      %v2929 = vadd.f32 %v2468, %v2737
      %v2930 = vadd.f32 %v2469, %v2738
      %v2931 = vadd.f32 %v2470, %v2740
      %v2932 = vadd.f32 %v2471, %v2742
      %v2933 = vadd.f32 %v2472, %v2739
      %v2934 = vadd.f32 %v2473, %v2741
      %v2935 = vadd.f32 %v2474, %v2743
      %v2936 = vadd.f32 %v2475, %v2744
      %v2937 = vadd.f32 %v2476, %v2746
      %v2938 = vadd.f32 %v2477, %v2748
      %v2939 = vadd.f32 %v2478, %v2745
      %v2940 = vadd.f32 %v2479, %v2747
      %v2941 = vadd.f32 %v2480, %v2749
      %v2942 = vadd.f32 %v2481, %v2750
      %v2943 = vadd.f32 %v2482, %v2752
      %v2944 = vadd.f32 %v2483, %v2754
      %v2945 = vadd.f32 %v2484, %v2751
      %v2946 = vadd.f32 %v2485, %v2753
      %v2947 = vadd.f32 %v2486, %v2755
      %v2948 = vadd.f32 %v2487, %v2756
      %v2949 = vadd.f32 %v2488, %v2758
      %v2950 = vadd.f32 %v2489, %v2760
      %v2951 = vadd.f32 %v2490, %v2757
      %v2952 = vadd.f32 %v2491, %v2759
      %s2953 = scalar_lea.vmem %s3, 5
      %v2954 = vld [vmem:[%s2953] ss:$8 sm:$0x3]
      %v2955 = vld [vmem:[%s838 + $0x10] sm:$0xfe]
      %v2956 = vld [vmem:[%s838 + $0x18] sm:$0xfe]
      %v2957 = vld [vmem:[%s838 + $0x30] sm:$0x1]
      %v2958 = vld [vmem:[%s838 + $0x38] sm:$0x1]
      %v2959 = vld [vmem:[%s838 + $0x50] sm:$0xfe]
      %v2960 = vld [vmem:[%s838 + $0x58] sm:$0xfe]
      %v2961 = vld [vmem:[%s838 + $0x70] sm:$0x1]
      %v2962 = vld [vmem:[%s838 + $0x78] sm:$0x1]
      %v2963 = vld [vmem:[%s838 + $0x90] sm:$0xfe]
      %v2964 = vld [vmem:[%s838 + $0x98] sm:$0xfe]
      %v2965 = vld [vmem:[%s838 + $0xb0] sm:$0x1]
      %v2966 = vld [vmem:[%s838 + $0xb8] sm:$0x1]
      %v2967 = vld [vmem:[%s838 + $0xd0] sm:$0xfe]
      %v2968 = vld [vmem:[%s838 + $0xd8] sm:$0xfe]
      %v2969 = vld [vmem:[%s838 + $0xf0] sm:$0x1]
      %v2970 = vld [vmem:[%s838 + $0xf8] sm:$0x1]
      %v2971 = vld [vmem:[%s838 + $0x110] sm:$0xfe]
      %v2972 = vld [vmem:[%s838 + $0x118] sm:$0xfe]
      %v2973 = vld [vmem:[%s838 + $0x130] sm:$0x1]
      %v2974 = vld [vmem:[%s838 + $0x138] sm:$0x1]
      %v2975 = vld [vmem:[%s838 + $0x150] sm:$0xfe]
      %v2976 = vld [vmem:[%s838 + $0x158] sm:$0xfe]
      %v2977 = vld [vmem:[%s838 + $0x170] sm:$0x1]
      %v2978 = vld [vmem:[%s838 + $0x178] sm:$0x1]
      %v2979 = vld [vmem:[%s838 + $0x190] sm:$0xfe]
      %v2980 = vld [vmem:[%s838 + $0x198] sm:$0xfe]
      %v2981 = vld [vmem:[%s838 + $0x1b0] sm:$0x1]
      %v2982 = vld [vmem:[%s838 + $0x1b8] sm:$0x1]
      %v2983 = vld [vmem:[%s838 + $0x1d0] sm:$0xfe]
      %v2984 = vld [vmem:[%s838 + $0x1d8] sm:$0xfe]
      %v2985 = vld [vmem:[%s838 + $0x1f0] sm:$0x1]
      %v2986 = vld [vmem:[%s838 + $0x1f8] sm:$0x1]
      %v2987 = vld [vmem:[%s838 + $0x210] sm:$0xfe]
      %v2988 = vld [vmem:[%s838 + $0x218] sm:$0xfe]
      %v2989 = vld [vmem:[%s838 + $0x230] sm:$0x1]
      %v2990 = vld [vmem:[%s838 + $0x238] sm:$0x1]
      %v2991 = vld [vmem:[%s838 + $0x250] sm:$0xfe]
      %v2992 = vld [vmem:[%s838 + $0x258] sm:$0xfe]
      %v2993 = vld [vmem:[%s838 + $0x270] sm:$0x1]
      %v2994 = vld [vmem:[%s838 + $0x278] sm:$0x1]
      %v2995 = vld [vmem:[%s838 + $0x290] sm:$0xfe]
      %v2996 = vld [vmem:[%s838 + $0x298] sm:$0xfe]
      %v2997 = vld [vmem:[%s838 + $0x2b0] sm:$0x1]
      %v2998 = vld [vmem:[%s838 + $0x2b8] sm:$0x1]
      %v2999 = vld [vmem:[%s838 + $0x2d0] sm:$0xfe]
      %v3000 = vld [vmem:[%s838 + $0x2d8] sm:$0xfe]
      %v3001 = vld [vmem:[%s838 + $0x2f0] sm:$0x1]
      %v3002 = vld [vmem:[%s838 + $0x2f8] sm:$0x1]
      %v3003 = vld [vmem:[%s838 + $0x310] sm:$0xfe]
      %v3004 = vld [vmem:[%s838 + $0x318] sm:$0xfe]
      %v3005 = vld [vmem:[%s838 + $0x330] sm:$0x1]
      %v3006 = vld [vmem:[%s838 + $0x338] sm:$0x1]
      %v3007 = vld [vmem:[%s838 + $0x350] sm:$0xfe]
      %v3008 = vld [vmem:[%s838 + $0x358] sm:$0xfe]
      %v3009 = vld [vmem:[%s838 + $0x370] sm:$0x1]
      %v3010 = vld [vmem:[%s838 + $0x378] sm:$0x1]
      %v3011 = vld [vmem:[%s838 + $0x390] sm:$0xfe]
      %v3012 = vld [vmem:[%s838 + $0x398] sm:$0xfe]
      %v3013 = vld [vmem:[%s838 + $0x3b0] sm:$0x1]
      %v3014 = vld [vmem:[%s838 + $0x3b8] sm:$0x1]
      %v3015 = vld [vmem:[%s838 + $0x3d0] sm:$0xfe]
      %v3016 = vld [vmem:[%s838 + $0x3d8] sm:$0xfe]
      %v3017 = vld [vmem:[%s838 + $0x3f0] sm:$0x1]
      %v3018 = vld [vmem:[%s838 + $0x3f8] sm:$0x1]
      %v3020 = vlaneseq
      %v3021 = vshrl.u32 %v3020, 7
      %v3022 = vsub.s32 0, %v3021
      %v3023 = vrot.slane %v2954, %v3022
      %v3024 = vlaneseq
      %v3025 = vshrl.u32 %v3024, 7
      %v3026 = vsub.s32 1, %v3025
      %v3027 = vrot.slane %v2954, %v3026
      %v3030 = vmul.f32 %v2955, %v3023
      %v3031 = vmul.f32 %v2956, %v3027
      %v3032 = vmul.f32 %v2494, %v3023
      %v3033 = vmul.f32 %v2495, %v3027
      %v3034 = vmul.f32 %v2957, %v3023
      %v3035 = vmul.f32 %v2958, %v3027
      %v3036 = vmul.f32 %v2959, %v3023
      %v3037 = vmul.f32 %v2960, %v3027
      %v3038 = vmul.f32 %v2496, %v3023
      %v3039 = vmul.f32 %v2497, %v3027
      %v3040 = vmul.f32 %v2961, %v3023
      %v3041 = vmul.f32 %v2962, %v3027
      %v3042 = vmul.f32 %v2963, %v3023
      %v3043 = vmul.f32 %v2964, %v3027
      %v3044 = vmul.f32 %v2498, %v3023
      %v3045 = vmul.f32 %v2499, %v3027
      %v3046 = vmul.f32 %v2965, %v3023
      %v3047 = vmul.f32 %v2966, %v3027
      %v3048 = vmul.f32 %v2967, %v3023
      %v3049 = vmul.f32 %v2968, %v3027
      %v3050 = vmul.f32 %v2500, %v3023
      %v3051 = vmul.f32 %v2501, %v3027
      %v3052 = vmul.f32 %v2969, %v3023
      %v3053 = vmul.f32 %v2970, %v3027
      %v3054 = vmul.f32 %v2971, %v3023
      %v3055 = vmul.f32 %v2972, %v3027
      %v3056 = vmul.f32 %v2502, %v3023
      %v3057 = vmul.f32 %v2503, %v3027
      %v3058 = vmul.f32 %v2973, %v3023
      %v3059 = vmul.f32 %v2974, %v3027
      %v3060 = vmul.f32 %v2975, %v3023
      %v3061 = vmul.f32 %v2976, %v3027
      %v3062 = vmul.f32 %v2504, %v3023
      %v3063 = vmul.f32 %v2505, %v3027
      %v3064 = vmul.f32 %v2977, %v3023
      %v3065 = vmul.f32 %v2978, %v3027
      %v3066 = vmul.f32 %v2979, %v3023
      %v3067 = vmul.f32 %v2980, %v3027
      %v3068 = vmul.f32 %v2506, %v3023
      %v3069 = vmul.f32 %v2507, %v3027
      %v3070 = vmul.f32 %v2981, %v3023
      %v3071 = vmul.f32 %v2982, %v3027
      %v3072 = vmul.f32 %v2983, %v3023
      %v3073 = vmul.f32 %v2984, %v3027
      %v3074 = vmul.f32 %v2508, %v3023
      %v3075 = vmul.f32 %v2509, %v3027
      %v3076 = vmul.f32 %v2985, %v3023
      %v3077 = vmul.f32 %v2986, %v3027
      %v3078 = vmul.f32 %v2987, %v3023
      %v3079 = vmul.f32 %v2988, %v3027
      %v3080 = vmul.f32 %v2510, %v3023
      %v3081 = vmul.f32 %v2511, %v3027
      %v3082 = vmul.f32 %v2989, %v3023
      %v3083 = vmul.f32 %v2990, %v3027
      %v3084 = vmul.f32 %v2991, %v3023
      %v3085 = vmul.f32 %v2992, %v3027
      %v3086 = vmul.f32 %v2512, %v3023
      %v3087 = vmul.f32 %v2513, %v3027
      %v3088 = vmul.f32 %v2993, %v3023
      %v3089 = vmul.f32 %v2994, %v3027
      %v3090 = vmul.f32 %v2995, %v3023
      %v3091 = vmul.f32 %v2996, %v3027
      %v3092 = vmul.f32 %v2514, %v3023
      %v3093 = vmul.f32 %v2515, %v3027
      %v3094 = vmul.f32 %v2997, %v3023
      %v3095 = vmul.f32 %v2998, %v3027
      %v3096 = vmul.f32 %v2999, %v3023
      %v3097 = vmul.f32 %v3000, %v3027
      %v3098 = vmul.f32 %v2516, %v3023
      %v3099 = vmul.f32 %v2517, %v3027
      %v3100 = vmul.f32 %v3001, %v3023
      %v3101 = vmul.f32 %v3002, %v3027
      %v3102 = vmul.f32 %v3003, %v3023
      %v3103 = vmul.f32 %v3004, %v3027
      %v3104 = vmul.f32 %v2518, %v3023
      %v3105 = vmul.f32 %v2519, %v3027
      %v3106 = vmul.f32 %v3005, %v3023
      %v3107 = vmul.f32 %v3006, %v3027
      %v3108 = vmul.f32 %v3007, %v3023
      %v3109 = vmul.f32 %v3008, %v3027
      %v3110 = vmul.f32 %v2520, %v3023
      %v3111 = vmul.f32 %v2521, %v3027
      %v3112 = vmul.f32 %v3009, %v3023
      %v3113 = vmul.f32 %v3010, %v3027
      %v3114 = vmul.f32 %v3011, %v3023
      %v3115 = vmul.f32 %v3012, %v3027
      %v3116 = vmul.f32 %v2522, %v3023
      %v3117 = vmul.f32 %v2523, %v3027
      %v3118 = vmul.f32 %v3013, %v3023
      %v3119 = vmul.f32 %v3014, %v3027
      %v3120 = vmul.f32 %v3015, %v3023
      %v3121 = vmul.f32 %v3016, %v3027
      %v3122 = vmul.f32 %v2524, %v3023
      %v3123 = vmul.f32 %v2525, %v3027
      %v3124 = vmul.f32 %v3017, %v3023
      %v3125 = vmul.f32 %v3018, %v3027
      %v3222 = vrot.slane %v3030, 2
      %v3223 = vrot.slane %v3031, 2
      %v3224 = vrot.slane %v3032, 2
      %v3225 = vsel %vm1838, %v3222, %v3224
      %v3226 = vrot.slane %v3033, 2
      %v3227 = vsel %vm1838, %v3223, %v3226
      %v3228 = vrot.slane %v3034, 2
      %v3229 = vsel %vm1838, %v3224, %v3228
      %v3230 = vrot.slane %v3035, 2
      %v3231 = vsel %vm1838, %v3226, %v3230
      %v3232 = vrot.slane %v3036, 2
      %v3233 = vrot.slane %v3037, 2
      %v3234 = vrot.slane %v3038, 2
      %v3235 = vsel %vm1838, %v3232, %v3234
      %v3236 = vrot.slane %v3039, 2
      %v3237 = vsel %vm1838, %v3233, %v3236
      %v3238 = vrot.slane %v3040, 2
      %v3239 = vsel %vm1838, %v3234, %v3238
      %v3240 = vrot.slane %v3041, 2
      %v3241 = vsel %vm1838, %v3236, %v3240
      %v3242 = vrot.slane %v3042, 2
      %v3243 = vrot.slane %v3043, 2
      %v3244 = vrot.slane %v3044, 2
      %v3245 = vsel %vm1838, %v3242, %v3244
      %v3246 = vrot.slane %v3045, 2
      %v3247 = vsel %vm1838, %v3243, %v3246
      %v3248 = vrot.slane %v3046, 2
      %v3249 = vsel %vm1838, %v3244, %v3248
      %v3250 = vrot.slane %v3047, 2
      %v3251 = vsel %vm1838, %v3246, %v3250
      %v3252 = vrot.slane %v3048, 2
      %v3253 = vrot.slane %v3049, 2
      %v3254 = vrot.slane %v3050, 2
      %v3255 = vsel %vm1838, %v3252, %v3254
      %v3256 = vrot.slane %v3051, 2
      %v3257 = vsel %vm1838, %v3253, %v3256
      %v3258 = vrot.slane %v3052, 2
      %v3259 = vsel %vm1838, %v3254, %v3258
      %v3260 = vrot.slane %v3053, 2
      %v3261 = vsel %vm1838, %v3256, %v3260
      %v3262 = vrot.slane %v3054, 2
      %v3263 = vrot.slane %v3055, 2
      %v3264 = vrot.slane %v3056, 2
      %v3265 = vsel %vm1838, %v3262, %v3264
      %v3266 = vrot.slane %v3057, 2
      %v3267 = vsel %vm1838, %v3263, %v3266
      %v3268 = vrot.slane %v3058, 2
      %v3269 = vsel %vm1838, %v3264, %v3268
      %v3270 = vrot.slane %v3059, 2
      %v3271 = vsel %vm1838, %v3266, %v3270
      %v3272 = vrot.slane %v3060, 2
      %v3273 = vrot.slane %v3061, 2
      %v3274 = vrot.slane %v3062, 2
      %v3275 = vsel %vm1838, %v3272, %v3274
      %v3276 = vrot.slane %v3063, 2
      %v3277 = vsel %vm1838, %v3273, %v3276
      %v3278 = vrot.slane %v3064, 2
      %v3279 = vsel %vm1838, %v3274, %v3278
      %v3280 = vrot.slane %v3065, 2
      %v3281 = vsel %vm1838, %v3276, %v3280
      %v3282 = vrot.slane %v3066, 2
      %v3283 = vrot.slane %v3067, 2
      %v3284 = vrot.slane %v3068, 2
      %v3285 = vsel %vm1838, %v3282, %v3284
      %v3286 = vrot.slane %v3069, 2
      %v3287 = vsel %vm1838, %v3283, %v3286
      %v3288 = vrot.slane %v3070, 2
      %v3289 = vsel %vm1838, %v3284, %v3288
      %v3290 = vrot.slane %v3071, 2
      %v3291 = vsel %vm1838, %v3286, %v3290
      %v3292 = vrot.slane %v3072, 2
      %v3293 = vrot.slane %v3073, 2
      %v3294 = vrot.slane %v3074, 2
      %v3295 = vsel %vm1838, %v3292, %v3294
      %v3296 = vrot.slane %v3075, 2
      %v3297 = vsel %vm1838, %v3293, %v3296
      %v3298 = vrot.slane %v3076, 2
      %v3299 = vsel %vm1838, %v3294, %v3298
      %v3300 = vrot.slane %v3077, 2
      %v3301 = vsel %vm1838, %v3296, %v3300
      %v3302 = vrot.slane %v3078, 2
      %v3303 = vrot.slane %v3079, 2
      %v3304 = vrot.slane %v3080, 2
      %v3305 = vsel %vm1838, %v3302, %v3304
      %v3306 = vrot.slane %v3081, 2
      %v3307 = vsel %vm1838, %v3303, %v3306
      %v3308 = vrot.slane %v3082, 2
      %v3309 = vsel %vm1838, %v3304, %v3308
      %v3310 = vrot.slane %v3083, 2
      %v3311 = vsel %vm1838, %v3306, %v3310
      %v3312 = vrot.slane %v3084, 2
      %v3313 = vrot.slane %v3085, 2
      %v3314 = vrot.slane %v3086, 2
      %v3315 = vsel %vm1838, %v3312, %v3314
      %v3316 = vrot.slane %v3087, 2
      %v3317 = vsel %vm1838, %v3313, %v3316
      %v3318 = vrot.slane %v3088, 2
      %v3319 = vsel %vm1838, %v3314, %v3318
      %v3320 = vrot.slane %v3089, 2
      %v3321 = vsel %vm1838, %v3316, %v3320
      %v3322 = vrot.slane %v3090, 2
      %v3323 = vrot.slane %v3091, 2
      %v3324 = vrot.slane %v3092, 2
      %v3325 = vsel %vm1838, %v3322, %v3324
      %v3326 = vrot.slane %v3093, 2
      %v3327 = vsel %vm1838, %v3323, %v3326
      %v3328 = vrot.slane %v3094, 2
      %v3329 = vsel %vm1838, %v3324, %v3328
      %v3330 = vrot.slane %v3095, 2
      %v3331 = vsel %vm1838, %v3326, %v3330
      %v3332 = vrot.slane %v3096, 2
      %v3333 = vrot.slane %v3097, 2
      %v3334 = vrot.slane %v3098, 2
      %v3335 = vsel %vm1838, %v3332, %v3334
      %v3336 = vrot.slane %v3099, 2
      %v3337 = vsel %vm1838, %v3333, %v3336
      %v3338 = vrot.slane %v3100, 2
      %v3339 = vsel %vm1838, %v3334, %v3338
      %v3340 = vrot.slane %v3101, 2
      %v3341 = vsel %vm1838, %v3336, %v3340
      %v3342 = vrot.slane %v3102, 2
      %v3343 = vrot.slane %v3103, 2
      %v3344 = vrot.slane %v3104, 2
      %v3345 = vsel %vm1838, %v3342, %v3344
      %v3346 = vrot.slane %v3105, 2
      %v3347 = vsel %vm1838, %v3343, %v3346
      %v3348 = vrot.slane %v3106, 2
      %v3349 = vsel %vm1838, %v3344, %v3348
      %v3350 = vrot.slane %v3107, 2
      %v3351 = vsel %vm1838, %v3346, %v3350
      %v3352 = vrot.slane %v3108, 2
      %v3353 = vrot.slane %v3109, 2
      %v3354 = vrot.slane %v3110, 2
      %v3355 = vsel %vm1838, %v3352, %v3354
      %v3356 = vrot.slane %v3111, 2
      %v3357 = vsel %vm1838, %v3353, %v3356
      %v3358 = vrot.slane %v3112, 2
      %v3359 = vsel %vm1838, %v3354, %v3358
      %v3360 = vrot.slane %v3113, 2
      %v3361 = vsel %vm1838, %v3356, %v3360
      %v3362 = vrot.slane %v3114, 2
      %v3363 = vrot.slane %v3115, 2
      %v3364 = vrot.slane %v3116, 2
      %v3365 = vsel %vm1838, %v3362, %v3364
      %v3366 = vrot.slane %v3117, 2
      %v3367 = vsel %vm1838, %v3363, %v3366
      %v3368 = vrot.slane %v3118, 2
      %v3369 = vsel %vm1838, %v3364, %v3368
      %v3370 = vrot.slane %v3119, 2
      %v3371 = vsel %vm1838, %v3366, %v3370
      %v3372 = vrot.slane %v3120, 2
      %v3373 = vrot.slane %v3121, 2
      %v3374 = vrot.slane %v3122, 2
      %v3375 = vsel %vm1838, %v3372, %v3374
      %v3376 = vrot.slane %v3123, 2
      %v3377 = vsel %vm1838, %v3373, %v3376
      %v3378 = vrot.slane %v3124, 2
      %v3379 = vsel %vm1838, %v3374, %v3378
      %v3380 = vrot.slane %v3125, 2
      %v3381 = vsel %vm1838, %v3376, %v3380
      %v3478 = vadd.f32 %v2857, %v3222
      %v3479 = vadd.f32 %v2858, %v3223
      %v3480 = vadd.f32 %v2859, %v3225
      %v3481 = vadd.f32 %v2860, %v3227
      %v3482 = vadd.f32 %v2861, %v3229
      %v3483 = vadd.f32 %v2862, %v3231
      %v3484 = vadd.f32 %v2863, %v3232
      %v3485 = vadd.f32 %v2864, %v3233
      %v3486 = vadd.f32 %v2865, %v3235
      %v3487 = vadd.f32 %v2866, %v3237
      %v3488 = vadd.f32 %v2867, %v3239
      %v3489 = vadd.f32 %v2868, %v3241
      %v3490 = vadd.f32 %v2869, %v3242
      %v3491 = vadd.f32 %v2870, %v3243
      %v3492 = vadd.f32 %v2871, %v3245
      %v3493 = vadd.f32 %v2872, %v3247
      %v3494 = vadd.f32 %v2873, %v3249
      %v3495 = vadd.f32 %v2874, %v3251
      %v3496 = vadd.f32 %v2875, %v3252
      %v3497 = vadd.f32 %v2876, %v3253
      %v3498 = vadd.f32 %v2877, %v3255
      %v3499 = vadd.f32 %v2878, %v3257
      %v3500 = vadd.f32 %v2879, %v3259
      %v3501 = vadd.f32 %v2880, %v3261
      %v3502 = vadd.f32 %v2881, %v3262
      %v3503 = vadd.f32 %v2882, %v3263
      %v3504 = vadd.f32 %v2883, %v3265
      %v3505 = vadd.f32 %v2884, %v3267
      %v3506 = vadd.f32 %v2885, %v3269
      %v3507 = vadd.f32 %v2886, %v3271
      %v3508 = vadd.f32 %v2887, %v3272
      %v3509 = vadd.f32 %v2888, %v3273
      %v3510 = vadd.f32 %v2889, %v3275
      %v3511 = vadd.f32 %v2890, %v3277
      %v3512 = vadd.f32 %v2891, %v3279
      %v3513 = vadd.f32 %v2892, %v3281
      %v3514 = vadd.f32 %v2893, %v3282
      %v3515 = vadd.f32 %v2894, %v3283
      %v3516 = vadd.f32 %v2895, %v3285
      %v3517 = vadd.f32 %v2896, %v3287
      %v3518 = vadd.f32 %v2897, %v3289
      %v3519 = vadd.f32 %v2898, %v3291
      %v3520 = vadd.f32 %v2899, %v3292
      %v3521 = vadd.f32 %v2900, %v3293
      %v3522 = vadd.f32 %v2901, %v3295
      %v3523 = vadd.f32 %v2902, %v3297
      %v3524 = vadd.f32 %v2903, %v3299
      %v3525 = vadd.f32 %v2904, %v3301
      %v3526 = vadd.f32 %v2905, %v3302
      %v3527 = vadd.f32 %v2906, %v3303
      %v3528 = vadd.f32 %v2907, %v3305
      %v3529 = vadd.f32 %v2908, %v3307
      %v3530 = vadd.f32 %v2909, %v3309
      %v3531 = vadd.f32 %v2910, %v3311
      %v3532 = vadd.f32 %v2911, %v3312
      %v3533 = vadd.f32 %v2912, %v3313
      %v3534 = vadd.f32 %v2913, %v3315
      %v3535 = vadd.f32 %v2914, %v3317
      %v3536 = vadd.f32 %v2915, %v3319
      %v3537 = vadd.f32 %v2916, %v3321
      %v3538 = vadd.f32 %v2917, %v3322
      %v3539 = vadd.f32 %v2918, %v3323
      %v3540 = vadd.f32 %v2919, %v3325
      %v3541 = vadd.f32 %v2920, %v3327
      %v3542 = vadd.f32 %v2921, %v3329
      %v3543 = vadd.f32 %v2922, %v3331
      %v3544 = vadd.f32 %v2923, %v3332
      %v3545 = vadd.f32 %v2924, %v3333
      %v3546 = vadd.f32 %v2925, %v3335
      %v3547 = vadd.f32 %v2926, %v3337
      %v3548 = vadd.f32 %v2927, %v3339
      %v3549 = vadd.f32 %v2928, %v3341
      %v3550 = vadd.f32 %v2929, %v3342
      %v3551 = vadd.f32 %v2930, %v3343
      %v3552 = vadd.f32 %v2931, %v3345
      %v3553 = vadd.f32 %v2932, %v3347
      %v3554 = vadd.f32 %v2933, %v3349
      %v3555 = vadd.f32 %v2934, %v3351
      %v3556 = vadd.f32 %v2935, %v3352
      %v3557 = vadd.f32 %v2936, %v3353
      %v3558 = vadd.f32 %v2937, %v3355
      %v3559 = vadd.f32 %v2938, %v3357
      %v3560 = vadd.f32 %v2939, %v3359
      %v3561 = vadd.f32 %v2940, %v3361
      %v3562 = vadd.f32 %v2941, %v3362
      %v3563 = vadd.f32 %v2942, %v3363
      %v3564 = vadd.f32 %v2943, %v3365
      %v3565 = vadd.f32 %v2944, %v3367
      %v3566 = vadd.f32 %v2945, %v3369
      %v3567 = vadd.f32 %v2946, %v3371
      %v3568 = vadd.f32 %v2947, %v3372
      %v3569 = vadd.f32 %v2948, %v3373
      %v3570 = vadd.f32 %v2949, %v3375
      %v3571 = vadd.f32 %v2950, %v3377
      %v3572 = vadd.f32 %v2951, %v3379
      %v3573 = vadd.f32 %v2952, %v3381
      %s3574 = scalar_lea.vmem %s3, 6
      %v3575 = vld [vmem:[%s3574] ss:$8 sm:$0x3]
      %s3576 = scalar_lea.vmem [#allocation2], 128
      %v3577 = vld [vmem:[%s3576] sm:$0x80]
      %v3578 = vld [vmem:[%s3576 + $0x8] sm:$0x80]
      %v3579 = vld [vmem:[%s3576 + $0x10] sm:$0xff]
      %v3580 = vld [vmem:[%s3576 + $0x18] sm:$0xff]
      %v3581 = vld [vmem:[%s3576 + $0x20] sm:$0x7f]
      %v3582 = vld [vmem:[%s3576 + $0x28] sm:$0x7f]
      %v3583 = vld [vmem:[%s3576 + $0x40] sm:$0x80]
      %v3584 = vld [vmem:[%s3576 + $0x48] sm:$0x80]
      %v3585 = vld [vmem:[%s3576 + $0x50] sm:$0xff]
      %v3586 = vld [vmem:[%s3576 + $0x58] sm:$0xff]
      %v3587 = vld [vmem:[%s3576 + $0x60] sm:$0x7f]
      %v3588 = vld [vmem:[%s3576 + $0x68] sm:$0x7f]
      %v3589 = vld [vmem:[%s3576 + $0x80] sm:$0x80]
      %v3590 = vld [vmem:[%s3576 + $0x88] sm:$0x80]
      %v3591 = vld [vmem:[%s3576 + $0x90] sm:$0xff]
      %v3592 = vld [vmem:[%s3576 + $0x98] sm:$0xff]
      %v3593 = vld [vmem:[%s3576 + $0xa0] sm:$0x7f]
      %v3594 = vld [vmem:[%s3576 + $0xa8] sm:$0x7f]
      %v3595 = vld [vmem:[%s3576 + $0xc0] sm:$0x80]
      %v3596 = vld [vmem:[%s3576 + $0xc8] sm:$0x80]
      %v3597 = vld [vmem:[%s3576 + $0xd0] sm:$0xff]
      %v3598 = vld [vmem:[%s3576 + $0xd8] sm:$0xff]
      %v3599 = vld [vmem:[%s3576 + $0xe0] sm:$0x7f]
      %v3600 = vld [vmem:[%s3576 + $0xe8] sm:$0x7f]
      %v3601 = vld [vmem:[%s3576 + $0x100] sm:$0x80]
      %v3602 = vld [vmem:[%s3576 + $0x108] sm:$0x80]
      %v3603 = vld [vmem:[%s3576 + $0x110] sm:$0xff]
      %v3604 = vld [vmem:[%s3576 + $0x118] sm:$0xff]
      %v3605 = vld [vmem:[%s3576 + $0x120] sm:$0x7f]
      %v3606 = vld [vmem:[%s3576 + $0x128] sm:$0x7f]
      %v3607 = vld [vmem:[%s3576 + $0x140] sm:$0x80]
      %v3608 = vld [vmem:[%s3576 + $0x148] sm:$0x80]
      %v3609 = vld [vmem:[%s3576 + $0x150] sm:$0xff]
      %v3610 = vld [vmem:[%s3576 + $0x158] sm:$0xff]
      %v3611 = vld [vmem:[%s3576 + $0x160] sm:$0x7f]
      %v3612 = vld [vmem:[%s3576 + $0x168] sm:$0x7f]
      %v3613 = vld [vmem:[%s3576 + $0x180] sm:$0x80]
      %v3614 = vld [vmem:[%s3576 + $0x188] sm:$0x80]
      %v3615 = vld [vmem:[%s3576 + $0x190] sm:$0xff]
      %v3616 = vld [vmem:[%s3576 + $0x198] sm:$0xff]
      %v3617 = vld [vmem:[%s3576 + $0x1a0] sm:$0x7f]
      %v3618 = vld [vmem:[%s3576 + $0x1a8] sm:$0x7f]
      %v3619 = vld [vmem:[%s3576 + $0x1c0] sm:$0x80]
      %v3620 = vld [vmem:[%s3576 + $0x1c8] sm:$0x80]
      %v3621 = vld [vmem:[%s3576 + $0x1d0] sm:$0xff]
      %v3622 = vld [vmem:[%s3576 + $0x1d8] sm:$0xff]
      %v3623 = vld [vmem:[%s3576 + $0x1e0] sm:$0x7f]
      %v3624 = vld [vmem:[%s3576 + $0x1e8] sm:$0x7f]
      %v3625 = vld [vmem:[%s3576 + $0x200] sm:$0x80]
      %v3626 = vld [vmem:[%s3576 + $0x208] sm:$0x80]
      %v3627 = vld [vmem:[%s3576 + $0x210] sm:$0xff]
      %v3628 = vld [vmem:[%s3576 + $0x218] sm:$0xff]
      %v3629 = vld [vmem:[%s3576 + $0x220] sm:$0x7f]
      %v3630 = vld [vmem:[%s3576 + $0x228] sm:$0x7f]
      %v3631 = vld [vmem:[%s3576 + $0x240] sm:$0x80]
      %v3632 = vld [vmem:[%s3576 + $0x248] sm:$0x80]
      %v3633 = vld [vmem:[%s3576 + $0x250] sm:$0xff]
      %v3634 = vld [vmem:[%s3576 + $0x258] sm:$0xff]
      %v3635 = vld [vmem:[%s3576 + $0x260] sm:$0x7f]
      %v3636 = vld [vmem:[%s3576 + $0x268] sm:$0x7f]
      %v3637 = vld [vmem:[%s3576 + $0x280] sm:$0x80]
      %v3638 = vld [vmem:[%s3576 + $0x288] sm:$0x80]
      %v3639 = vld [vmem:[%s3576 + $0x290] sm:$0xff]
      %v3640 = vld [vmem:[%s3576 + $0x298] sm:$0xff]
      %v3641 = vld [vmem:[%s3576 + $0x2a0] sm:$0x7f]
      %v3642 = vld [vmem:[%s3576 + $0x2a8] sm:$0x7f]
      %v3643 = vld [vmem:[%s3576 + $0x2c0] sm:$0x80]
      %v3644 = vld [vmem:[%s3576 + $0x2c8] sm:$0x80]
      %v3645 = vld [vmem:[%s3576 + $0x2d0] sm:$0xff]
      %v3646 = vld [vmem:[%s3576 + $0x2d8] sm:$0xff]
      %v3647 = vld [vmem:[%s3576 + $0x2e0] sm:$0x7f]
      %v3648 = vld [vmem:[%s3576 + $0x2e8] sm:$0x7f]
      %v3649 = vld [vmem:[%s3576 + $0x300] sm:$0x80]
      %v3650 = vld [vmem:[%s3576 + $0x308] sm:$0x80]
      %v3651 = vld [vmem:[%s3576 + $0x310] sm:$0xff]
      %v3652 = vld [vmem:[%s3576 + $0x318] sm:$0xff]
      %v3653 = vld [vmem:[%s3576 + $0x320] sm:$0x7f]
      %v3654 = vld [vmem:[%s3576 + $0x328] sm:$0x7f]
      %v3655 = vld [vmem:[%s3576 + $0x340] sm:$0x80]
      %v3656 = vld [vmem:[%s3576 + $0x348] sm:$0x80]
      %v3657 = vld [vmem:[%s3576 + $0x350] sm:$0xff]
      %v3658 = vld [vmem:[%s3576 + $0x358] sm:$0xff]
      %v3659 = vld [vmem:[%s3576 + $0x360] sm:$0x7f]
      %v3660 = vld [vmem:[%s3576 + $0x368] sm:$0x7f]
      %v3661 = vld [vmem:[%s3576 + $0x380] sm:$0x80]
      %v3662 = vld [vmem:[%s3576 + $0x388] sm:$0x80]
      %v3663 = vld [vmem:[%s3576 + $0x390] sm:$0xff]
      %v3664 = vld [vmem:[%s3576 + $0x398] sm:$0xff]
      %v3665 = vld [vmem:[%s3576 + $0x3a0] sm:$0x7f]
      %v3666 = vld [vmem:[%s3576 + $0x3a8] sm:$0x7f]
      %v3667 = vld [vmem:[%s3576 + $0x3c0] sm:$0x80]
      %v3668 = vld [vmem:[%s3576 + $0x3c8] sm:$0x80]
      %v3669 = vld [vmem:[%s3576 + $0x3d0] sm:$0xff]
      %v3670 = vld [vmem:[%s3576 + $0x3d8] sm:$0xff]
      %v3671 = vld [vmem:[%s3576 + $0x3e0] sm:$0x7f]
      %v3672 = vld [vmem:[%s3576 + $0x3e8] sm:$0x7f]
      %v3674 = vlaneseq
      %v3675 = vshrl.u32 %v3674, 7
      %v3676 = vsub.s32 0, %v3675
      %v3677 = vrot.slane %v3575, %v3676
      %v3678 = vlaneseq
      %v3679 = vshrl.u32 %v3678, 7
      %v3680 = vsub.s32 1, %v3679
      %v3681 = vrot.slane %v3575, %v3680
      %v3684 = vmul.f32 %v3577, %v3677
      %v3685 = vmul.f32 %v3578, %v3681
      %v3686 = vmul.f32 %v3579, %v3677
      %v3687 = vmul.f32 %v3580, %v3681
      %v3688 = vmul.f32 %v3581, %v3677
      %v3689 = vmul.f32 %v3582, %v3681
      %v3690 = vmul.f32 %v3583, %v3677
      %v3691 = vmul.f32 %v3584, %v3681
      %v3692 = vmul.f32 %v3585, %v3677
      %v3693 = vmul.f32 %v3586, %v3681
      %v3694 = vmul.f32 %v3587, %v3677
      %v3695 = vmul.f32 %v3588, %v3681
      %v3696 = vmul.f32 %v3589, %v3677
      %v3697 = vmul.f32 %v3590, %v3681
      %v3698 = vmul.f32 %v3591, %v3677
      %v3699 = vmul.f32 %v3592, %v3681
      %v3700 = vmul.f32 %v3593, %v3677
      %v3701 = vmul.f32 %v3594, %v3681
      %v3702 = vmul.f32 %v3595, %v3677
      %v3703 = vmul.f32 %v3596, %v3681
      %v3704 = vmul.f32 %v3597, %v3677
      %v3705 = vmul.f32 %v3598, %v3681
      %v3706 = vmul.f32 %v3599, %v3677
      %v3707 = vmul.f32 %v3600, %v3681
      %v3708 = vmul.f32 %v3601, %v3677
      %v3709 = vmul.f32 %v3602, %v3681
      %v3710 = vmul.f32 %v3603, %v3677
      %v3711 = vmul.f32 %v3604, %v3681
      %v3712 = vmul.f32 %v3605, %v3677
      %v3713 = vmul.f32 %v3606, %v3681
      %v3714 = vmul.f32 %v3607, %v3677
      %v3715 = vmul.f32 %v3608, %v3681
      %v3716 = vmul.f32 %v3609, %v3677
      %v3717 = vmul.f32 %v3610, %v3681
      %v3718 = vmul.f32 %v3611, %v3677
      %v3719 = vmul.f32 %v3612, %v3681
      %v3720 = vmul.f32 %v3613, %v3677
      %v3721 = vmul.f32 %v3614, %v3681
      %v3722 = vmul.f32 %v3615, %v3677
      %v3723 = vmul.f32 %v3616, %v3681
      %v3724 = vmul.f32 %v3617, %v3677
      %v3725 = vmul.f32 %v3618, %v3681
      %v3726 = vmul.f32 %v3619, %v3677
      %v3727 = vmul.f32 %v3620, %v3681
      %v3728 = vmul.f32 %v3621, %v3677
      %v3729 = vmul.f32 %v3622, %v3681
      %v3730 = vmul.f32 %v3623, %v3677
      %v3731 = vmul.f32 %v3624, %v3681
      %v3732 = vmul.f32 %v3625, %v3677
      %v3733 = vmul.f32 %v3626, %v3681
      %v3734 = vmul.f32 %v3627, %v3677
      %v3735 = vmul.f32 %v3628, %v3681
      %v3736 = vmul.f32 %v3629, %v3677
      %v3737 = vmul.f32 %v3630, %v3681
      %v3738 = vmul.f32 %v3631, %v3677
      %v3739 = vmul.f32 %v3632, %v3681
      %v3740 = vmul.f32 %v3633, %v3677
      %v3741 = vmul.f32 %v3634, %v3681
      %v3742 = vmul.f32 %v3635, %v3677
      %v3743 = vmul.f32 %v3636, %v3681
      %v3744 = vmul.f32 %v3637, %v3677
      %v3745 = vmul.f32 %v3638, %v3681
      %v3746 = vmul.f32 %v3639, %v3677
      %v3747 = vmul.f32 %v3640, %v3681
      %v3748 = vmul.f32 %v3641, %v3677
      %v3749 = vmul.f32 %v3642, %v3681
      %v3750 = vmul.f32 %v3643, %v3677
      %v3751 = vmul.f32 %v3644, %v3681
      %v3752 = vmul.f32 %v3645, %v3677
      %v3753 = vmul.f32 %v3646, %v3681
      %v3754 = vmul.f32 %v3647, %v3677
      %v3755 = vmul.f32 %v3648, %v3681
      %v3756 = vmul.f32 %v3649, %v3677
      %v3757 = vmul.f32 %v3650, %v3681
      %v3758 = vmul.f32 %v3651, %v3677
      %v3759 = vmul.f32 %v3652, %v3681
      %v3760 = vmul.f32 %v3653, %v3677
      %v3761 = vmul.f32 %v3654, %v3681
      %v3762 = vmul.f32 %v3655, %v3677
      %v3763 = vmul.f32 %v3656, %v3681
      %v3764 = vmul.f32 %v3657, %v3677
      %v3765 = vmul.f32 %v3658, %v3681
      %v3766 = vmul.f32 %v3659, %v3677
      %v3767 = vmul.f32 %v3660, %v3681
      %v3768 = vmul.f32 %v3661, %v3677
      %v3769 = vmul.f32 %v3662, %v3681
      %v3770 = vmul.f32 %v3663, %v3677
      %v3771 = vmul.f32 %v3664, %v3681
      %v3772 = vmul.f32 %v3665, %v3677
      %v3773 = vmul.f32 %v3666, %v3681
      %v3774 = vmul.f32 %v3667, %v3677
      %v3775 = vmul.f32 %v3668, %v3681
      %v3776 = vmul.f32 %v3669, %v3677
      %v3777 = vmul.f32 %v3670, %v3681
      %v3778 = vmul.f32 %v3671, %v3677
      %v3779 = vmul.f32 %v3672, %v3681
      %v3780 = vadd.f32 %v3478, %v3684
      %v3781 = vadd.f32 %v3479, %v3685
      %v3782 = vadd.f32 %v3480, %v3686
      %v3783 = vadd.f32 %v3481, %v3687
      %v3784 = vadd.f32 %v3482, %v3688
      %v3785 = vadd.f32 %v3483, %v3689
      %v3786 = vadd.f32 %v3484, %v3690
      %v3787 = vadd.f32 %v3485, %v3691
      %v3788 = vadd.f32 %v3486, %v3692
      %v3789 = vadd.f32 %v3487, %v3693
      %v3790 = vadd.f32 %v3488, %v3694
      %v3791 = vadd.f32 %v3489, %v3695
      %v3792 = vadd.f32 %v3490, %v3696
      %v3793 = vadd.f32 %v3491, %v3697
      %v3794 = vadd.f32 %v3492, %v3698
      %v3795 = vadd.f32 %v3493, %v3699
      %v3796 = vadd.f32 %v3494, %v3700
      %v3797 = vadd.f32 %v3495, %v3701
      %v3798 = vadd.f32 %v3496, %v3702
      %v3799 = vadd.f32 %v3497, %v3703
      %v3800 = vadd.f32 %v3498, %v3704
      %v3801 = vadd.f32 %v3499, %v3705
      %v3802 = vadd.f32 %v3500, %v3706
      %v3803 = vadd.f32 %v3501, %v3707
      %v3804 = vadd.f32 %v3502, %v3708
      %v3805 = vadd.f32 %v3503, %v3709
      %v3806 = vadd.f32 %v3504, %v3710
      %v3807 = vadd.f32 %v3505, %v3711
      %v3808 = vadd.f32 %v3506, %v3712
      %v3809 = vadd.f32 %v3507, %v3713
      %v3810 = vadd.f32 %v3508, %v3714
      %v3811 = vadd.f32 %v3509, %v3715
      %v3812 = vadd.f32 %v3510, %v3716
      %v3813 = vadd.f32 %v3511, %v3717
      %v3814 = vadd.f32 %v3512, %v3718
      %v3815 = vadd.f32 %v3513, %v3719
      %v3816 = vadd.f32 %v3514, %v3720
      %v3817 = vadd.f32 %v3515, %v3721
      %v3818 = vadd.f32 %v3516, %v3722
      %v3819 = vadd.f32 %v3517, %v3723
      %v3820 = vadd.f32 %v3518, %v3724
      %v3821 = vadd.f32 %v3519, %v3725
      %v3822 = vadd.f32 %v3520, %v3726
      %v3823 = vadd.f32 %v3521, %v3727
      %v3824 = vadd.f32 %v3522, %v3728
      %v3825 = vadd.f32 %v3523, %v3729
      %v3826 = vadd.f32 %v3524, %v3730
      %v3827 = vadd.f32 %v3525, %v3731
      %v3828 = vadd.f32 %v3526, %v3732
      %v3829 = vadd.f32 %v3527, %v3733
      %v3830 = vadd.f32 %v3528, %v3734
      %v3831 = vadd.f32 %v3529, %v3735
      %v3832 = vadd.f32 %v3530, %v3736
      %v3833 = vadd.f32 %v3531, %v3737
      %v3834 = vadd.f32 %v3532, %v3738
      %v3835 = vadd.f32 %v3533, %v3739
      %v3836 = vadd.f32 %v3534, %v3740
      %v3837 = vadd.f32 %v3535, %v3741
      %v3838 = vadd.f32 %v3536, %v3742
      %v3839 = vadd.f32 %v3537, %v3743
      %v3840 = vadd.f32 %v3538, %v3744
      %v3841 = vadd.f32 %v3539, %v3745
      %v3842 = vadd.f32 %v3540, %v3746
      %v3843 = vadd.f32 %v3541, %v3747
      %v3844 = vadd.f32 %v3542, %v3748
      %v3845 = vadd.f32 %v3543, %v3749
      %v3846 = vadd.f32 %v3544, %v3750
      %v3847 = vadd.f32 %v3545, %v3751
      %v3848 = vadd.f32 %v3546, %v3752
      %v3849 = vadd.f32 %v3547, %v3753
      %v3850 = vadd.f32 %v3548, %v3754
      %v3851 = vadd.f32 %v3549, %v3755
      %v3852 = vadd.f32 %v3550, %v3756
      %v3853 = vadd.f32 %v3551, %v3757
      %v3854 = vadd.f32 %v3552, %v3758
      %v3855 = vadd.f32 %v3553, %v3759
      %v3856 = vadd.f32 %v3554, %v3760
      %v3857 = vadd.f32 %v3555, %v3761
      %v3858 = vadd.f32 %v3556, %v3762
      %v3859 = vadd.f32 %v3557, %v3763
      %v3860 = vadd.f32 %v3558, %v3764
      %v3861 = vadd.f32 %v3559, %v3765
      %v3862 = vadd.f32 %v3560, %v3766
      %v3863 = vadd.f32 %v3561, %v3767
      %v3864 = vadd.f32 %v3562, %v3768
      %v3865 = vadd.f32 %v3563, %v3769
      %v3866 = vadd.f32 %v3564, %v3770
      %v3867 = vadd.f32 %v3565, %v3771
      %v3868 = vadd.f32 %v3566, %v3772
      %v3869 = vadd.f32 %v3567, %v3773
      %v3870 = vadd.f32 %v3568, %v3774
      %v3871 = vadd.f32 %v3569, %v3775
      %v3872 = vadd.f32 %v3570, %v3776
      %v3873 = vadd.f32 %v3571, %v3777
      %v3874 = vadd.f32 %v3572, %v3778
      %v3875 = vadd.f32 %v3573, %v3779
      %s3876 = scalar_lea.vmem %s3, 7
      %v3877 = vld [vmem:[%s3876] ss:$8 sm:$0x3]
      %v3878 = vld [vmem:[%s3576 + $0x20] sm:$0xff]
      %v3879 = vld [vmem:[%s3576 + $0x28] sm:$0xff]
      %v3880 = vld [vmem:[%s3576 + $0x60] sm:$0xff]
      %v3881 = vld [vmem:[%s3576 + $0x68] sm:$0xff]
      %v3882 = vld [vmem:[%s3576 + $0xa0] sm:$0xff]
      %v3883 = vld [vmem:[%s3576 + $0xa8] sm:$0xff]
      %v3884 = vld [vmem:[%s3576 + $0xe0] sm:$0xff]
      %v3885 = vld [vmem:[%s3576 + $0xe8] sm:$0xff]
      %v3886 = vld [vmem:[%s3576 + $0x120] sm:$0xff]
      %v3887 = vld [vmem:[%s3576 + $0x128] sm:$0xff]
      %v3888 = vld [vmem:[%s3576 + $0x160] sm:$0xff]
      %v3889 = vld [vmem:[%s3576 + $0x168] sm:$0xff]
      %v3890 = vld [vmem:[%s3576 + $0x1a0] sm:$0xff]
      %v3891 = vld [vmem:[%s3576 + $0x1a8] sm:$0xff]
      %v3892 = vld [vmem:[%s3576 + $0x1e0] sm:$0xff]
      %v3893 = vld [vmem:[%s3576 + $0x1e8] sm:$0xff]
      %v3894 = vld [vmem:[%s3576 + $0x220] sm:$0xff]
      %v3895 = vld [vmem:[%s3576 + $0x228] sm:$0xff]
      %v3896 = vld [vmem:[%s3576 + $0x260] sm:$0xff]
      %v3897 = vld [vmem:[%s3576 + $0x268] sm:$0xff]
      %v3898 = vld [vmem:[%s3576 + $0x2a0] sm:$0xff]
      %v3899 = vld [vmem:[%s3576 + $0x2a8] sm:$0xff]
      %v3900 = vld [vmem:[%s3576 + $0x2e0] sm:$0xff]
      %v3901 = vld [vmem:[%s3576 + $0x2e8] sm:$0xff]
      %v3902 = vld [vmem:[%s3576 + $0x320] sm:$0xff]
      %v3903 = vld [vmem:[%s3576 + $0x328] sm:$0xff]
      %v3904 = vld [vmem:[%s3576 + $0x360] sm:$0xff]
      %v3905 = vld [vmem:[%s3576 + $0x368] sm:$0xff]
      %v3906 = vld [vmem:[%s3576 + $0x3a0] sm:$0xff]
      %v3907 = vld [vmem:[%s3576 + $0x3a8] sm:$0xff]
      %v3908 = vld [vmem:[%s3576 + $0x3e0] sm:$0xff]
      %v3909 = vld [vmem:[%s3576 + $0x3e8] sm:$0xff]
      %v3911 = vlaneseq
      %v3912 = vshrl.u32 %v3911, 7
      %v3913 = vsub.s32 0, %v3912
      %v3914 = vrot.slane %v3877, %v3913
      %v3915 = vlaneseq
      %v3916 = vshrl.u32 %v3915, 7
      %v3917 = vsub.s32 1, %v3916
      %v3918 = vrot.slane %v3877, %v3917
      %v3921 = vmul.f32 %v3579, %v3914
      %v3922 = vmul.f32 %v3580, %v3918
      %v3923 = vmul.f32 %v3878, %v3914
      %v3924 = vmul.f32 %v3879, %v3918
      %v3925 = vmul.f32 %v3585, %v3914
      %v3926 = vmul.f32 %v3586, %v3918
      %v3927 = vmul.f32 %v3880, %v3914
      %v3928 = vmul.f32 %v3881, %v3918
      %v3929 = vmul.f32 %v3591, %v3914
      %v3930 = vmul.f32 %v3592, %v3918
      %v3931 = vmul.f32 %v3882, %v3914
      %v3932 = vmul.f32 %v3883, %v3918
      %v3933 = vmul.f32 %v3597, %v3914
      %v3934 = vmul.f32 %v3598, %v3918
      %v3935 = vmul.f32 %v3884, %v3914
      %v3936 = vmul.f32 %v3885, %v3918
      %v3937 = vmul.f32 %v3603, %v3914
      %v3938 = vmul.f32 %v3604, %v3918
      %v3939 = vmul.f32 %v3886, %v3914
      %v3940 = vmul.f32 %v3887, %v3918
      %v3941 = vmul.f32 %v3609, %v3914
      %v3942 = vmul.f32 %v3610, %v3918
      %v3943 = vmul.f32 %v3888, %v3914
      %v3944 = vmul.f32 %v3889, %v3918
      %v3945 = vmul.f32 %v3615, %v3914
      %v3946 = vmul.f32 %v3616, %v3918
      %v3947 = vmul.f32 %v3890, %v3914
      %v3948 = vmul.f32 %v3891, %v3918
      %v3949 = vmul.f32 %v3621, %v3914
      %v3950 = vmul.f32 %v3622, %v3918
      %v3951 = vmul.f32 %v3892, %v3914
      %v3952 = vmul.f32 %v3893, %v3918
      %v3953 = vmul.f32 %v3627, %v3914
      %v3954 = vmul.f32 %v3628, %v3918
      %v3955 = vmul.f32 %v3894, %v3914
      %v3956 = vmul.f32 %v3895, %v3918
      %v3957 = vmul.f32 %v3633, %v3914
      %v3958 = vmul.f32 %v3634, %v3918
      %v3959 = vmul.f32 %v3896, %v3914
      %v3960 = vmul.f32 %v3897, %v3918
      %v3961 = vmul.f32 %v3639, %v3914
      %v3962 = vmul.f32 %v3640, %v3918
      %v3963 = vmul.f32 %v3898, %v3914
      %v3964 = vmul.f32 %v3899, %v3918
      %v3965 = vmul.f32 %v3645, %v3914
      %v3966 = vmul.f32 %v3646, %v3918
      %v3967 = vmul.f32 %v3900, %v3914
      %v3968 = vmul.f32 %v3901, %v3918
      %v3969 = vmul.f32 %v3651, %v3914
      %v3970 = vmul.f32 %v3652, %v3918
      %v3971 = vmul.f32 %v3902, %v3914
      %v3972 = vmul.f32 %v3903, %v3918
      %v3973 = vmul.f32 %v3657, %v3914
      %v3974 = vmul.f32 %v3658, %v3918
      %v3975 = vmul.f32 %v3904, %v3914
      %v3976 = vmul.f32 %v3905, %v3918
      %v3977 = vmul.f32 %v3663, %v3914
      %v3978 = vmul.f32 %v3664, %v3918
      %v3979 = vmul.f32 %v3906, %v3914
      %v3980 = vmul.f32 %v3907, %v3918
      %v3981 = vmul.f32 %v3669, %v3914
      %v3982 = vmul.f32 %v3670, %v3918
      %v3983 = vmul.f32 %v3908, %v3914
      %v3984 = vmul.f32 %v3909, %v3918
      %v4049 = vrot.slane %v3921, 1
      %v4050 = vrot.slane %v3922, 1
      %v4051 = vrot.slane %v3923, 1
      %v4052 = vsel %vm1280, %v4049, %v4051
      %v4053 = vrot.slane %v3924, 1
      %v4054 = vsel %vm1280, %v4050, %v4053
      %v4055 = vrot.slane %v3925, 1
      %v4056 = vrot.slane %v3926, 1
      %v4057 = vrot.slane %v3927, 1
      %v4058 = vsel %vm1280, %v4055, %v4057
      %v4059 = vrot.slane %v3928, 1
      %v4060 = vsel %vm1280, %v4056, %v4059
      %v4061 = vrot.slane %v3929, 1
      %v4062 = vrot.slane %v3930, 1
      %v4063 = vrot.slane %v3931, 1
      %v4064 = vsel %vm1280, %v4061, %v4063
      %v4065 = vrot.slane %v3932, 1
      %v4066 = vsel %vm1280, %v4062, %v4065
      %v4067 = vrot.slane %v3933, 1
      %v4068 = vrot.slane %v3934, 1
      %v4069 = vrot.slane %v3935, 1
      %v4070 = vsel %vm1280, %v4067, %v4069
      %v4071 = vrot.slane %v3936, 1
      %v4072 = vsel %vm1280, %v4068, %v4071
      %v4073 = vrot.slane %v3937, 1
      %v4074 = vrot.slane %v3938, 1
      %v4075 = vrot.slane %v3939, 1
      %v4076 = vsel %vm1280, %v4073, %v4075
      %v4077 = vrot.slane %v3940, 1
      %v4078 = vsel %vm1280, %v4074, %v4077
      %v4079 = vrot.slane %v3941, 1
      %v4080 = vrot.slane %v3942, 1
      %v4081 = vrot.slane %v3943, 1
      %v4082 = vsel %vm1280, %v4079, %v4081
      %v4083 = vrot.slane %v3944, 1
      %v4084 = vsel %vm1280, %v4080, %v4083
      %v4085 = vrot.slane %v3945, 1
      %v4086 = vrot.slane %v3946, 1
      %v4087 = vrot.slane %v3947, 1
      %v4088 = vsel %vm1280, %v4085, %v4087
      %v4089 = vrot.slane %v3948, 1
      %v4090 = vsel %vm1280, %v4086, %v4089
      %v4091 = vrot.slane %v3949, 1
      %v4092 = vrot.slane %v3950, 1
      %v4093 = vrot.slane %v3951, 1
      %v4094 = vsel %vm1280, %v4091, %v4093
      %v4095 = vrot.slane %v3952, 1
      %v4096 = vsel %vm1280, %v4092, %v4095
      %v4097 = vrot.slane %v3953, 1
      %v4098 = vrot.slane %v3954, 1
      %v4099 = vrot.slane %v3955, 1
      %v4100 = vsel %vm1280, %v4097, %v4099
      %v4101 = vrot.slane %v3956, 1
      %v4102 = vsel %vm1280, %v4098, %v4101
      %v4103 = vrot.slane %v3957, 1
      %v4104 = vrot.slane %v3958, 1
      %v4105 = vrot.slane %v3959, 1
      %v4106 = vsel %vm1280, %v4103, %v4105
      %v4107 = vrot.slane %v3960, 1
      %v4108 = vsel %vm1280, %v4104, %v4107
      %v4109 = vrot.slane %v3961, 1
      %v4110 = vrot.slane %v3962, 1
      %v4111 = vrot.slane %v3963, 1
      %v4112 = vsel %vm1280, %v4109, %v4111
      %v4113 = vrot.slane %v3964, 1
      %v4114 = vsel %vm1280, %v4110, %v4113
      %v4115 = vrot.slane %v3965, 1
      %v4116 = vrot.slane %v3966, 1
      %v4117 = vrot.slane %v3967, 1
      %v4118 = vsel %vm1280, %v4115, %v4117
      %v4119 = vrot.slane %v3968, 1
      %v4120 = vsel %vm1280, %v4116, %v4119
      %v4121 = vrot.slane %v3969, 1
      %v4122 = vrot.slane %v3970, 1
      %v4123 = vrot.slane %v3971, 1
      %v4124 = vsel %vm1280, %v4121, %v4123
      %v4125 = vrot.slane %v3972, 1
      %v4126 = vsel %vm1280, %v4122, %v4125
      %v4127 = vrot.slane %v3973, 1
      %v4128 = vrot.slane %v3974, 1
      %v4129 = vrot.slane %v3975, 1
      %v4130 = vsel %vm1280, %v4127, %v4129
      %v4131 = vrot.slane %v3976, 1
      %v4132 = vsel %vm1280, %v4128, %v4131
      %v4133 = vrot.slane %v3977, 1
      %v4134 = vrot.slane %v3978, 1
      %v4135 = vrot.slane %v3979, 1
      %v4136 = vsel %vm1280, %v4133, %v4135
      %v4137 = vrot.slane %v3980, 1
      %v4138 = vsel %vm1280, %v4134, %v4137
      %v4139 = vrot.slane %v3981, 1
      %v4140 = vrot.slane %v3982, 1
      %v4141 = vrot.slane %v3983, 1
      %v4142 = vsel %vm1280, %v4139, %v4141
      %v4143 = vrot.slane %v3984, 1
      %v4144 = vsel %vm1280, %v4140, %v4143
      %v4241 = vadd.f32 %v3780, %v4049
      %v4242 = vadd.f32 %v3781, %v4050
      %v4243 = vadd.f32 %v3782, %v4052
      %v4244 = vadd.f32 %v3783, %v4054
      %v4245 = vadd.f32 %v3784, %v4051
      %v4246 = vadd.f32 %v3785, %v4053
      %v4247 = vadd.f32 %v3786, %v4055
      %v4248 = vadd.f32 %v3787, %v4056
      %v4249 = vadd.f32 %v3788, %v4058
      %v4250 = vadd.f32 %v3789, %v4060
      %v4251 = vadd.f32 %v3790, %v4057
      %v4252 = vadd.f32 %v3791, %v4059
      %v4253 = vadd.f32 %v3792, %v4061
      %v4254 = vadd.f32 %v3793, %v4062
      %v4255 = vadd.f32 %v3794, %v4064
      %v4256 = vadd.f32 %v3795, %v4066
      %v4257 = vadd.f32 %v3796, %v4063
      %v4258 = vadd.f32 %v3797, %v4065
      %v4259 = vadd.f32 %v3798, %v4067
      %v4260 = vadd.f32 %v3799, %v4068
      %v4261 = vadd.f32 %v3800, %v4070
      %v4262 = vadd.f32 %v3801, %v4072
      %v4263 = vadd.f32 %v3802, %v4069
      %v4264 = vadd.f32 %v3803, %v4071
      %v4265 = vadd.f32 %v3804, %v4073
      %v4266 = vadd.f32 %v3805, %v4074
      %v4267 = vadd.f32 %v3806, %v4076
      %v4268 = vadd.f32 %v3807, %v4078
      %v4269 = vadd.f32 %v3808, %v4075
      %v4270 = vadd.f32 %v3809, %v4077
      %v4271 = vadd.f32 %v3810, %v4079
      %v4272 = vadd.f32 %v3811, %v4080
      %v4273 = vadd.f32 %v3812, %v4082
      %v4274 = vadd.f32 %v3813, %v4084
      %v4275 = vadd.f32 %v3814, %v4081
      %v4276 = vadd.f32 %v3815, %v4083
      %v4277 = vadd.f32 %v3816, %v4085
      %v4278 = vadd.f32 %v3817, %v4086
      %v4279 = vadd.f32 %v3818, %v4088
      %v4280 = vadd.f32 %v3819, %v4090
      %v4281 = vadd.f32 %v3820, %v4087
      %v4282 = vadd.f32 %v3821, %v4089
      %v4283 = vadd.f32 %v3822, %v4091
      %v4284 = vadd.f32 %v3823, %v4092
      %v4285 = vadd.f32 %v3824, %v4094
      %v4286 = vadd.f32 %v3825, %v4096
      %v4287 = vadd.f32 %v3826, %v4093
      %v4288 = vadd.f32 %v3827, %v4095
      %v4289 = vadd.f32 %v3828, %v4097
      %v4290 = vadd.f32 %v3829, %v4098
      %v4291 = vadd.f32 %v3830, %v4100
      %v4292 = vadd.f32 %v3831, %v4102
      %v4293 = vadd.f32 %v3832, %v4099
      %v4294 = vadd.f32 %v3833, %v4101
      %v4295 = vadd.f32 %v3834, %v4103
      %v4296 = vadd.f32 %v3835, %v4104
      %v4297 = vadd.f32 %v3836, %v4106
      %v4298 = vadd.f32 %v3837, %v4108
      %v4299 = vadd.f32 %v3838, %v4105
      %v4300 = vadd.f32 %v3839, %v4107
      %v4301 = vadd.f32 %v3840, %v4109
      %v4302 = vadd.f32 %v3841, %v4110
      %v4303 = vadd.f32 %v3842, %v4112
      %v4304 = vadd.f32 %v3843, %v4114
      %v4305 = vadd.f32 %v3844, %v4111
      %v4306 = vadd.f32 %v3845, %v4113
      %v4307 = vadd.f32 %v3846, %v4115
      %v4308 = vadd.f32 %v3847, %v4116
      %v4309 = vadd.f32 %v3848, %v4118
      %v4310 = vadd.f32 %v3849, %v4120
      %v4311 = vadd.f32 %v3850, %v4117
      %v4312 = vadd.f32 %v3851, %v4119
      %v4313 = vadd.f32 %v3852, %v4121
      %v4314 = vadd.f32 %v3853, %v4122
      %v4315 = vadd.f32 %v3854, %v4124
      %v4316 = vadd.f32 %v3855, %v4126
      %v4317 = vadd.f32 %v3856, %v4123
      %v4318 = vadd.f32 %v3857, %v4125
      %v4319 = vadd.f32 %v3858, %v4127
      %v4320 = vadd.f32 %v3859, %v4128
      %v4321 = vadd.f32 %v3860, %v4130
      %v4322 = vadd.f32 %v3861, %v4132
      %v4323 = vadd.f32 %v3862, %v4129
      %v4324 = vadd.f32 %v3863, %v4131
      %v4325 = vadd.f32 %v3864, %v4133
      %v4326 = vadd.f32 %v3865, %v4134
      %v4327 = vadd.f32 %v3866, %v4136
      %v4328 = vadd.f32 %v3867, %v4138
      %v4329 = vadd.f32 %v3868, %v4135
      %v4330 = vadd.f32 %v3869, %v4137
      %v4331 = vadd.f32 %v3870, %v4139
      %v4332 = vadd.f32 %v3871, %v4140
      %v4333 = vadd.f32 %v3872, %v4142
      %v4334 = vadd.f32 %v3873, %v4144
      %v4335 = vadd.f32 %v3874, %v4141
      %v4336 = vadd.f32 %v3875, %v4143
      %s4337 = scalar_lea.vmem %s3, 16
      %v4338 = vld [vmem:[%s4337] ss:$8 sm:$0x3]
      %v4339 = vld [vmem:[%s3576 + $0x10] sm:$0xfe]
      %v4340 = vld [vmem:[%s3576 + $0x18] sm:$0xfe]
      %v4341 = vld [vmem:[%s3576 + $0x30] sm:$0x1]
      %v4342 = vld [vmem:[%s3576 + $0x38] sm:$0x1]
      %v4343 = vld [vmem:[%s3576 + $0x50] sm:$0xfe]
      %v4344 = vld [vmem:[%s3576 + $0x58] sm:$0xfe]
      %v4345 = vld [vmem:[%s3576 + $0x70] sm:$0x1]
      %v4346 = vld [vmem:[%s3576 + $0x78] sm:$0x1]
      %v4347 = vld [vmem:[%s3576 + $0x90] sm:$0xfe]
      %v4348 = vld [vmem:[%s3576 + $0x98] sm:$0xfe]
      %v4349 = vld [vmem:[%s3576 + $0xb0] sm:$0x1]
      %v4350 = vld [vmem:[%s3576 + $0xb8] sm:$0x1]
      %v4351 = vld [vmem:[%s3576 + $0xd0] sm:$0xfe]
      %v4352 = vld [vmem:[%s3576 + $0xd8] sm:$0xfe]
      %v4353 = vld [vmem:[%s3576 + $0xf0] sm:$0x1]
      %v4354 = vld [vmem:[%s3576 + $0xf8] sm:$0x1]
      %v4355 = vld [vmem:[%s3576 + $0x110] sm:$0xfe]
      %v4356 = vld [vmem:[%s3576 + $0x118] sm:$0xfe]
      %v4357 = vld [vmem:[%s3576 + $0x130] sm:$0x1]
      %v4358 = vld [vmem:[%s3576 + $0x138] sm:$0x1]
      %v4359 = vld [vmem:[%s3576 + $0x150] sm:$0xfe]
      %v4360 = vld [vmem:[%s3576 + $0x158] sm:$0xfe]
      %v4361 = vld [vmem:[%s3576 + $0x170] sm:$0x1]
      %v4362 = vld [vmem:[%s3576 + $0x178] sm:$0x1]
      %v4363 = vld [vmem:[%s3576 + $0x190] sm:$0xfe]
      %v4364 = vld [vmem:[%s3576 + $0x198] sm:$0xfe]
      %v4365 = vld [vmem:[%s3576 + $0x1b0] sm:$0x1]
      %v4366 = vld [vmem:[%s3576 + $0x1b8] sm:$0x1]
      %v4367 = vld [vmem:[%s3576 + $0x1d0] sm:$0xfe]
      %v4368 = vld [vmem:[%s3576 + $0x1d8] sm:$0xfe]
      %v4369 = vld [vmem:[%s3576 + $0x1f0] sm:$0x1]
      %v4370 = vld [vmem:[%s3576 + $0x1f8] sm:$0x1]
      %v4371 = vld [vmem:[%s3576 + $0x210] sm:$0xfe]
      %v4372 = vld [vmem:[%s3576 + $0x218] sm:$0xfe]
      %v4373 = vld [vmem:[%s3576 + $0x230] sm:$0x1]
      %v4374 = vld [vmem:[%s3576 + $0x238] sm:$0x1]
      %v4375 = vld [vmem:[%s3576 + $0x250] sm:$0xfe]
      %v4376 = vld [vmem:[%s3576 + $0x258] sm:$0xfe]
      %v4377 = vld [vmem:[%s3576 + $0x270] sm:$0x1]
      %v4378 = vld [vmem:[%s3576 + $0x278] sm:$0x1]
      %v4379 = vld [vmem:[%s3576 + $0x290] sm:$0xfe]
      %v4380 = vld [vmem:[%s3576 + $0x298] sm:$0xfe]
      %v4381 = vld [vmem:[%s3576 + $0x2b0] sm:$0x1]
      %v4382 = vld [vmem:[%s3576 + $0x2b8] sm:$0x1]
      %v4383 = vld [vmem:[%s3576 + $0x2d0] sm:$0xfe]
      %v4384 = vld [vmem:[%s3576 + $0x2d8] sm:$0xfe]
      %v4385 = vld [vmem:[%s3576 + $0x2f0] sm:$0x1]
      %v4386 = vld [vmem:[%s3576 + $0x2f8] sm:$0x1]
      %v4387 = vld [vmem:[%s3576 + $0x310] sm:$0xfe]
      %v4388 = vld [vmem:[%s3576 + $0x318] sm:$0xfe]
      %v4389 = vld [vmem:[%s3576 + $0x330] sm:$0x1]
      %v4390 = vld [vmem:[%s3576 + $0x338] sm:$0x1]
      %v4391 = vld [vmem:[%s3576 + $0x350] sm:$0xfe]
      %v4392 = vld [vmem:[%s3576 + $0x358] sm:$0xfe]
      %v4393 = vld [vmem:[%s3576 + $0x370] sm:$0x1]
      %v4394 = vld [vmem:[%s3576 + $0x378] sm:$0x1]
      %v4395 = vld [vmem:[%s3576 + $0x390] sm:$0xfe]
      %v4396 = vld [vmem:[%s3576 + $0x398] sm:$0xfe]
      %v4397 = vld [vmem:[%s3576 + $0x3b0] sm:$0x1]
      %v4398 = vld [vmem:[%s3576 + $0x3b8] sm:$0x1]
      %v4399 = vld [vmem:[%s3576 + $0x3d0] sm:$0xfe]
      %v4400 = vld [vmem:[%s3576 + $0x3d8] sm:$0xfe]
      %v4401 = vld [vmem:[%s3576 + $0x3f0] sm:$0x1]
      %v4402 = vld [vmem:[%s3576 + $0x3f8] sm:$0x1]
      %v4404 = vlaneseq
      %v4405 = vshrl.u32 %v4404, 7
      %v4406 = vsub.s32 0, %v4405
      %v4407 = vrot.slane %v4338, %v4406
      %v4408 = vlaneseq
      %v4409 = vshrl.u32 %v4408, 7
      %v4410 = vsub.s32 1, %v4409
      %v4411 = vrot.slane %v4338, %v4410
      %v4414 = vmul.f32 %v4339, %v4407
      %v4415 = vmul.f32 %v4340, %v4411
      %v4416 = vmul.f32 %v3878, %v4407
      %v4417 = vmul.f32 %v3879, %v4411
      %v4418 = vmul.f32 %v4341, %v4407
      %v4419 = vmul.f32 %v4342, %v4411
      %v4420 = vmul.f32 %v4343, %v4407
      %v4421 = vmul.f32 %v4344, %v4411
      %v4422 = vmul.f32 %v3880, %v4407
      %v4423 = vmul.f32 %v3881, %v4411
      %v4424 = vmul.f32 %v4345, %v4407
      %v4425 = vmul.f32 %v4346, %v4411
      %v4426 = vmul.f32 %v4347, %v4407
      %v4427 = vmul.f32 %v4348, %v4411
      %v4428 = vmul.f32 %v3882, %v4407
      %v4429 = vmul.f32 %v3883, %v4411
      %v4430 = vmul.f32 %v4349, %v4407
      %v4431 = vmul.f32 %v4350, %v4411
      %v4432 = vmul.f32 %v4351, %v4407
      %v4433 = vmul.f32 %v4352, %v4411
      %v4434 = vmul.f32 %v3884, %v4407
      %v4435 = vmul.f32 %v3885, %v4411
      %v4436 = vmul.f32 %v4353, %v4407
      %v4437 = vmul.f32 %v4354, %v4411
      %v4438 = vmul.f32 %v4355, %v4407
      %v4439 = vmul.f32 %v4356, %v4411
      %v4440 = vmul.f32 %v3886, %v4407
      %v4441 = vmul.f32 %v3887, %v4411
      %v4442 = vmul.f32 %v4357, %v4407
      %v4443 = vmul.f32 %v4358, %v4411
      %v4444 = vmul.f32 %v4359, %v4407
      %v4445 = vmul.f32 %v4360, %v4411
      %v4446 = vmul.f32 %v3888, %v4407
      %v4447 = vmul.f32 %v3889, %v4411
      %v4448 = vmul.f32 %v4361, %v4407
      %v4449 = vmul.f32 %v4362, %v4411
      %v4450 = vmul.f32 %v4363, %v4407
      %v4451 = vmul.f32 %v4364, %v4411
      %v4452 = vmul.f32 %v3890, %v4407
      %v4453 = vmul.f32 %v3891, %v4411
      %v4454 = vmul.f32 %v4365, %v4407
      %v4455 = vmul.f32 %v4366, %v4411
      %v4456 = vmul.f32 %v4367, %v4407
      %v4457 = vmul.f32 %v4368, %v4411
      %v4458 = vmul.f32 %v3892, %v4407
      %v4459 = vmul.f32 %v3893, %v4411
      %v4460 = vmul.f32 %v4369, %v4407
      %v4461 = vmul.f32 %v4370, %v4411
      %v4462 = vmul.f32 %v4371, %v4407
      %v4463 = vmul.f32 %v4372, %v4411
      %v4464 = vmul.f32 %v3894, %v4407
      %v4465 = vmul.f32 %v3895, %v4411
      %v4466 = vmul.f32 %v4373, %v4407
      %v4467 = vmul.f32 %v4374, %v4411
      %v4468 = vmul.f32 %v4375, %v4407
      %v4469 = vmul.f32 %v4376, %v4411
      %v4470 = vmul.f32 %v3896, %v4407
      %v4471 = vmul.f32 %v3897, %v4411
      %v4472 = vmul.f32 %v4377, %v4407
      %v4473 = vmul.f32 %v4378, %v4411
      %v4474 = vmul.f32 %v4379, %v4407
      %v4475 = vmul.f32 %v4380, %v4411
      %v4476 = vmul.f32 %v3898, %v4407
      %v4477 = vmul.f32 %v3899, %v4411
      %v4478 = vmul.f32 %v4381, %v4407
      %v4479 = vmul.f32 %v4382, %v4411
      %v4480 = vmul.f32 %v4383, %v4407
      %v4481 = vmul.f32 %v4384, %v4411
      %v4482 = vmul.f32 %v3900, %v4407
      %v4483 = vmul.f32 %v3901, %v4411
      %v4484 = vmul.f32 %v4385, %v4407
      %v4485 = vmul.f32 %v4386, %v4411
      %v4486 = vmul.f32 %v4387, %v4407
      %v4487 = vmul.f32 %v4388, %v4411
      %v4488 = vmul.f32 %v3902, %v4407
      %v4489 = vmul.f32 %v3903, %v4411
      %v4490 = vmul.f32 %v4389, %v4407
      %v4491 = vmul.f32 %v4390, %v4411
      %v4492 = vmul.f32 %v4391, %v4407
      %v4493 = vmul.f32 %v4392, %v4411
      %v4494 = vmul.f32 %v3904, %v4407
      %v4495 = vmul.f32 %v3905, %v4411
      %v4496 = vmul.f32 %v4393, %v4407
      %v4497 = vmul.f32 %v4394, %v4411
      %v4498 = vmul.f32 %v4395, %v4407
      %v4499 = vmul.f32 %v4396, %v4411
      %v4500 = vmul.f32 %v3906, %v4407
      %v4501 = vmul.f32 %v3907, %v4411
      %v4502 = vmul.f32 %v4397, %v4407
      %v4503 = vmul.f32 %v4398, %v4411
      %v4504 = vmul.f32 %v4399, %v4407
      %v4505 = vmul.f32 %v4400, %v4411
      %v4506 = vmul.f32 %v3908, %v4407
      %v4507 = vmul.f32 %v3909, %v4411
      %v4508 = vmul.f32 %v4401, %v4407
      %v4509 = vmul.f32 %v4402, %v4411
      %v4606 = vrot.slane %v4414, 2
      %v4607 = vrot.slane %v4415, 2
      %v4608 = vrot.slane %v4416, 2
      %v4609 = vsel %vm1838, %v4606, %v4608
      %v4610 = vrot.slane %v4417, 2
      %v4611 = vsel %vm1838, %v4607, %v4610
      %v4612 = vrot.slane %v4418, 2
      %v4613 = vsel %vm1838, %v4608, %v4612
      %v4614 = vrot.slane %v4419, 2
      %v4615 = vsel %vm1838, %v4610, %v4614
      %v4616 = vrot.slane %v4420, 2
      %v4617 = vrot.slane %v4421, 2
      %v4618 = vrot.slane %v4422, 2
      %v4619 = vsel %vm1838, %v4616, %v4618
      %v4620 = vrot.slane %v4423, 2
      %v4621 = vsel %vm1838, %v4617, %v4620
      %v4622 = vrot.slane %v4424, 2
      %v4623 = vsel %vm1838, %v4618, %v4622
      %v4624 = vrot.slane %v4425, 2
      %v4625 = vsel %vm1838, %v4620, %v4624
      %v4626 = vrot.slane %v4426, 2
      %v4627 = vrot.slane %v4427, 2
      %v4628 = vrot.slane %v4428, 2
      %v4629 = vsel %vm1838, %v4626, %v4628
      %v4630 = vrot.slane %v4429, 2
      %v4631 = vsel %vm1838, %v4627, %v4630
      %v4632 = vrot.slane %v4430, 2
      %v4633 = vsel %vm1838, %v4628, %v4632
      %v4634 = vrot.slane %v4431, 2
      %v4635 = vsel %vm1838, %v4630, %v4634
      %v4636 = vrot.slane %v4432, 2
      %v4637 = vrot.slane %v4433, 2
      %v4638 = vrot.slane %v4434, 2
      %v4639 = vsel %vm1838, %v4636, %v4638
      %v4640 = vrot.slane %v4435, 2
      %v4641 = vsel %vm1838, %v4637, %v4640
      %v4642 = vrot.slane %v4436, 2
      %v4643 = vsel %vm1838, %v4638, %v4642
      %v4644 = vrot.slane %v4437, 2
      %v4645 = vsel %vm1838, %v4640, %v4644
      %v4646 = vrot.slane %v4438, 2
      %v4647 = vrot.slane %v4439, 2
      %v4648 = vrot.slane %v4440, 2
      %v4649 = vsel %vm1838, %v4646, %v4648
      %v4650 = vrot.slane %v4441, 2
      %v4651 = vsel %vm1838, %v4647, %v4650
      %v4652 = vrot.slane %v4442, 2
      %v4653 = vsel %vm1838, %v4648, %v4652
      %v4654 = vrot.slane %v4443, 2
      %v4655 = vsel %vm1838, %v4650, %v4654
      %v4656 = vrot.slane %v4444, 2
      %v4657 = vrot.slane %v4445, 2
      %v4658 = vrot.slane %v4446, 2
      %v4659 = vsel %vm1838, %v4656, %v4658
      %v4660 = vrot.slane %v4447, 2
      %v4661 = vsel %vm1838, %v4657, %v4660
      %v4662 = vrot.slane %v4448, 2
      %v4663 = vsel %vm1838, %v4658, %v4662
      %v4664 = vrot.slane %v4449, 2
      %v4665 = vsel %vm1838, %v4660, %v4664
      %v4666 = vrot.slane %v4450, 2
      %v4667 = vrot.slane %v4451, 2
      %v4668 = vrot.slane %v4452, 2
      %v4669 = vsel %vm1838, %v4666, %v4668
      %v4670 = vrot.slane %v4453, 2
      %v4671 = vsel %vm1838, %v4667, %v4670
      %v4672 = vrot.slane %v4454, 2
      %v4673 = vsel %vm1838, %v4668, %v4672
      %v4674 = vrot.slane %v4455, 2
      %v4675 = vsel %vm1838, %v4670, %v4674
      %v4676 = vrot.slane %v4456, 2
      %v4677 = vrot.slane %v4457, 2
      %v4678 = vrot.slane %v4458, 2
      %v4679 = vsel %vm1838, %v4676, %v4678
      %v4680 = vrot.slane %v4459, 2
      %v4681 = vsel %vm1838, %v4677, %v4680
      %v4682 = vrot.slane %v4460, 2
      %v4683 = vsel %vm1838, %v4678, %v4682
      %v4684 = vrot.slane %v4461, 2
      %v4685 = vsel %vm1838, %v4680, %v4684
      %v4686 = vrot.slane %v4462, 2
      %v4687 = vrot.slane %v4463, 2
      %v4688 = vrot.slane %v4464, 2
      %v4689 = vsel %vm1838, %v4686, %v4688
      %v4690 = vrot.slane %v4465, 2
      %v4691 = vsel %vm1838, %v4687, %v4690
      %v4692 = vrot.slane %v4466, 2
      %v4693 = vsel %vm1838, %v4688, %v4692
      %v4694 = vrot.slane %v4467, 2
      %v4695 = vsel %vm1838, %v4690, %v4694
      %v4696 = vrot.slane %v4468, 2
      %v4697 = vrot.slane %v4469, 2
      %v4698 = vrot.slane %v4470, 2
      %v4699 = vsel %vm1838, %v4696, %v4698
      %v4700 = vrot.slane %v4471, 2
      %v4701 = vsel %vm1838, %v4697, %v4700
      %v4702 = vrot.slane %v4472, 2
      %v4703 = vsel %vm1838, %v4698, %v4702
      %v4704 = vrot.slane %v4473, 2
      %v4705 = vsel %vm1838, %v4700, %v4704
      %v4706 = vrot.slane %v4474, 2
      %v4707 = vrot.slane %v4475, 2
      %v4708 = vrot.slane %v4476, 2
      %v4709 = vsel %vm1838, %v4706, %v4708
      %v4710 = vrot.slane %v4477, 2
      %v4711 = vsel %vm1838, %v4707, %v4710
      %v4712 = vrot.slane %v4478, 2
      %v4713 = vsel %vm1838, %v4708, %v4712
      %v4714 = vrot.slane %v4479, 2
      %v4715 = vsel %vm1838, %v4710, %v4714
      %v4716 = vrot.slane %v4480, 2
      %v4717 = vrot.slane %v4481, 2
      %v4718 = vrot.slane %v4482, 2
      %v4719 = vsel %vm1838, %v4716, %v4718
      %v4720 = vrot.slane %v4483, 2
      %v4721 = vsel %vm1838, %v4717, %v4720
      %v4722 = vrot.slane %v4484, 2
      %v4723 = vsel %vm1838, %v4718, %v4722
      %v4724 = vrot.slane %v4485, 2
      %v4725 = vsel %vm1838, %v4720, %v4724
      %v4726 = vrot.slane %v4486, 2
      %v4727 = vrot.slane %v4487, 2
      %v4728 = vrot.slane %v4488, 2
      %v4729 = vsel %vm1838, %v4726, %v4728
      %v4730 = vrot.slane %v4489, 2
      %v4731 = vsel %vm1838, %v4727, %v4730
      %v4732 = vrot.slane %v4490, 2
      %v4733 = vsel %vm1838, %v4728, %v4732
      %v4734 = vrot.slane %v4491, 2
      %v4735 = vsel %vm1838, %v4730, %v4734
      %v4736 = vrot.slane %v4492, 2
      %v4737 = vrot.slane %v4493, 2
      %v4738 = vrot.slane %v4494, 2
      %v4739 = vsel %vm1838, %v4736, %v4738
      %v4740 = vrot.slane %v4495, 2
      %v4741 = vsel %vm1838, %v4737, %v4740
      %v4742 = vrot.slane %v4496, 2
      %v4743 = vsel %vm1838, %v4738, %v4742
      %v4744 = vrot.slane %v4497, 2
      %v4745 = vsel %vm1838, %v4740, %v4744
      %v4746 = vrot.slane %v4498, 2
      %v4747 = vrot.slane %v4499, 2
      %v4748 = vrot.slane %v4500, 2
      %v4749 = vsel %vm1838, %v4746, %v4748
      %v4750 = vrot.slane %v4501, 2
      %v4751 = vsel %vm1838, %v4747, %v4750
      %v4752 = vrot.slane %v4502, 2
      %v4753 = vsel %vm1838, %v4748, %v4752
      %v4754 = vrot.slane %v4503, 2
      %v4755 = vsel %vm1838, %v4750, %v4754
      %v4756 = vrot.slane %v4504, 2
      %v4757 = vrot.slane %v4505, 2
      %v4758 = vrot.slane %v4506, 2
      %v4759 = vsel %vm1838, %v4756, %v4758
      %v4760 = vrot.slane %v4507, 2
      %v4761 = vsel %vm1838, %v4757, %v4760
      %v4762 = vrot.slane %v4508, 2
      %v4763 = vsel %vm1838, %v4758, %v4762
      %v4764 = vrot.slane %v4509, 2
      %v4765 = vsel %vm1838, %v4760, %v4764
      %v4862 = vadd.f32 %v4241, %v4606
      %v4863 = vadd.f32 %v4242, %v4607
      %v4864 = vadd.f32 %v4243, %v4609
      %v4865 = vadd.f32 %v4244, %v4611
      %v4866 = vadd.f32 %v4245, %v4613
      %v4867 = vadd.f32 %v4246, %v4615
      %v4868 = vadd.f32 %v4247, %v4616
      %v4869 = vadd.f32 %v4248, %v4617
      %v4870 = vadd.f32 %v4249, %v4619
      %v4871 = vadd.f32 %v4250, %v4621
      %v4872 = vadd.f32 %v4251, %v4623
      %v4873 = vadd.f32 %v4252, %v4625
      %v4874 = vadd.f32 %v4253, %v4626
      %v4875 = vadd.f32 %v4254, %v4627
      %v4876 = vadd.f32 %v4255, %v4629
      %v4877 = vadd.f32 %v4256, %v4631
      %v4878 = vadd.f32 %v4257, %v4633
      %v4879 = vadd.f32 %v4258, %v4635
      %v4880 = vadd.f32 %v4259, %v4636
      %v4881 = vadd.f32 %v4260, %v4637
      %v4882 = vadd.f32 %v4261, %v4639
      %v4883 = vadd.f32 %v4262, %v4641
      %v4884 = vadd.f32 %v4263, %v4643
      %v4885 = vadd.f32 %v4264, %v4645
      %v4886 = vadd.f32 %v4265, %v4646
      %v4887 = vadd.f32 %v4266, %v4647
      %v4888 = vadd.f32 %v4267, %v4649
      %v4889 = vadd.f32 %v4268, %v4651
      %v4890 = vadd.f32 %v4269, %v4653
      %v4891 = vadd.f32 %v4270, %v4655
      %v4892 = vadd.f32 %v4271, %v4656
      %v4893 = vadd.f32 %v4272, %v4657
      %v4894 = vadd.f32 %v4273, %v4659
      %v4895 = vadd.f32 %v4274, %v4661
      %v4896 = vadd.f32 %v4275, %v4663
      %v4897 = vadd.f32 %v4276, %v4665
      %v4898 = vadd.f32 %v4277, %v4666
      %v4899 = vadd.f32 %v4278, %v4667
      %v4900 = vadd.f32 %v4279, %v4669
      %v4901 = vadd.f32 %v4280, %v4671
      %v4902 = vadd.f32 %v4281, %v4673
      %v4903 = vadd.f32 %v4282, %v4675
      %v4904 = vadd.f32 %v4283, %v4676
      %v4905 = vadd.f32 %v4284, %v4677
      %v4906 = vadd.f32 %v4285, %v4679
      %v4907 = vadd.f32 %v4286, %v4681
      %v4908 = vadd.f32 %v4287, %v4683
      %v4909 = vadd.f32 %v4288, %v4685
      %v4910 = vadd.f32 %v4289, %v4686
      %v4911 = vadd.f32 %v4290, %v4687
      %v4912 = vadd.f32 %v4291, %v4689
      %v4913 = vadd.f32 %v4292, %v4691
      %v4914 = vadd.f32 %v4293, %v4693
      %v4915 = vadd.f32 %v4294, %v4695
      %v4916 = vadd.f32 %v4295, %v4696
      %v4917 = vadd.f32 %v4296, %v4697
      %v4918 = vadd.f32 %v4297, %v4699
      %v4919 = vadd.f32 %v4298, %v4701
      %v4920 = vadd.f32 %v4299, %v4703
      %v4921 = vadd.f32 %v4300, %v4705
      %v4922 = vadd.f32 %v4301, %v4706
      %v4923 = vadd.f32 %v4302, %v4707
      %v4924 = vadd.f32 %v4303, %v4709
      %v4925 = vadd.f32 %v4304, %v4711
      %v4926 = vadd.f32 %v4305, %v4713
      %v4927 = vadd.f32 %v4306, %v4715
      %v4928 = vadd.f32 %v4307, %v4716
      %v4929 = vadd.f32 %v4308, %v4717
      %v4930 = vadd.f32 %v4309, %v4719
      %v4931 = vadd.f32 %v4310, %v4721
      %v4932 = vadd.f32 %v4311, %v4723
      %v4933 = vadd.f32 %v4312, %v4725
      %v4934 = vadd.f32 %v4313, %v4726
      %v4935 = vadd.f32 %v4314, %v4727
      %v4936 = vadd.f32 %v4315, %v4729
      %v4937 = vadd.f32 %v4316, %v4731
      %v4938 = vadd.f32 %v4317, %v4733
      %v4939 = vadd.f32 %v4318, %v4735
      %v4940 = vadd.f32 %v4319, %v4736
      %v4941 = vadd.f32 %v4320, %v4737
      %v4942 = vadd.f32 %v4321, %v4739
      %v4943 = vadd.f32 %v4322, %v4741
      %v4944 = vadd.f32 %v4323, %v4743
      %v4945 = vadd.f32 %v4324, %v4745
      %v4946 = vadd.f32 %v4325, %v4746
      %v4947 = vadd.f32 %v4326, %v4747
      %v4948 = vadd.f32 %v4327, %v4749
      %v4949 = vadd.f32 %v4328, %v4751
      %v4950 = vadd.f32 %v4329, %v4753
      %v4951 = vadd.f32 %v4330, %v4755
      %v4952 = vadd.f32 %v4331, %v4756
      %v4953 = vadd.f32 %v4332, %v4757
      %v4954 = vadd.f32 %v4333, %v4759
      %v4955 = vadd.f32 %v4334, %v4761
      %v4956 = vadd.f32 %v4335, %v4763
      %v4957 = vadd.f32 %v4336, %v4765
      %vm5054 = vcmask 1040384
      %v5055 = vrot.slane %v4862, 7
      %v5056 = vrot.slane %v4864, 7
      %v5057 = vsel %vm5054, %v5055, %v5056
      %v5058 = vrot.slane %v4863, 7
      %v5059 = vrot.slane %v4865, 7
      %v5060 = vsel %vm5054, %v5058, %v5059
      %v5061 = vrot.slane %v4866, 7
      %v5062 = vsel %vm5054, %v5056, %v5061
      %v5063 = vrot.slane %v4867, 7
      %v5064 = vsel %vm5054, %v5059, %v5063
      %v5065 = vrot.slane %v4868, 7
      %v5066 = vrot.slane %v4870, 7
      %v5067 = vsel %vm5054, %v5065, %v5066
      %v5068 = vrot.slane %v4869, 7
      %v5069 = vrot.slane %v4871, 7
      %v5070 = vsel %vm5054, %v5068, %v5069
      %v5071 = vrot.slane %v4872, 7
      %v5072 = vsel %vm5054, %v5066, %v5071
      %v5073 = vrot.slane %v4873, 7
      %v5074 = vsel %vm5054, %v5069, %v5073
      %v5075 = vrot.slane %v4874, 7
      %v5076 = vrot.slane %v4876, 7
      %v5077 = vsel %vm5054, %v5075, %v5076
      %v5078 = vrot.slane %v4875, 7
      %v5079 = vrot.slane %v4877, 7
      %v5080 = vsel %vm5054, %v5078, %v5079
      %v5081 = vrot.slane %v4878, 7
      %v5082 = vsel %vm5054, %v5076, %v5081
      %v5083 = vrot.slane %v4879, 7
      %v5084 = vsel %vm5054, %v5079, %v5083
      %v5085 = vrot.slane %v4880, 7
      %v5086 = vrot.slane %v4882, 7
      %v5087 = vsel %vm5054, %v5085, %v5086
      %v5088 = vrot.slane %v4881, 7
      %v5089 = vrot.slane %v4883, 7
      %v5090 = vsel %vm5054, %v5088, %v5089
      %v5091 = vrot.slane %v4884, 7
      %v5092 = vsel %vm5054, %v5086, %v5091
      %v5093 = vrot.slane %v4885, 7
      %v5094 = vsel %vm5054, %v5089, %v5093
      %v5095 = vrot.slane %v4886, 7
      %v5096 = vrot.slane %v4888, 7
      %v5097 = vsel %vm5054, %v5095, %v5096
      %v5098 = vrot.slane %v4887, 7
      %v5099 = vrot.slane %v4889, 7
      %v5100 = vsel %vm5054, %v5098, %v5099
      %v5101 = vrot.slane %v4890, 7
      %v5102 = vsel %vm5054, %v5096, %v5101
      %v5103 = vrot.slane %v4891, 7
      %v5104 = vsel %vm5054, %v5099, %v5103
      %v5105 = vrot.slane %v4892, 7
      %v5106 = vrot.slane %v4894, 7
      %v5107 = vsel %vm5054, %v5105, %v5106
      %v5108 = vrot.slane %v4893, 7
      %v5109 = vrot.slane %v4895, 7
      %v5110 = vsel %vm5054, %v5108, %v5109
      %v5111 = vrot.slane %v4896, 7
      %v5112 = vsel %vm5054, %v5106, %v5111
      %v5113 = vrot.slane %v4897, 7
      %v5114 = vsel %vm5054, %v5109, %v5113
      %v5115 = vrot.slane %v4898, 7
      %v5116 = vrot.slane %v4900, 7
      %v5117 = vsel %vm5054, %v5115, %v5116
      %v5118 = vrot.slane %v4899, 7
      %v5119 = vrot.slane %v4901, 7
      %v5120 = vsel %vm5054, %v5118, %v5119
      %v5121 = vrot.slane %v4902, 7
      %v5122 = vsel %vm5054, %v5116, %v5121
      %v5123 = vrot.slane %v4903, 7
      %v5124 = vsel %vm5054, %v5119, %v5123
      %v5125 = vrot.slane %v4904, 7
      %v5126 = vrot.slane %v4906, 7
      %v5127 = vsel %vm5054, %v5125, %v5126
      %v5128 = vrot.slane %v4905, 7
      %v5129 = vrot.slane %v4907, 7
      %v5130 = vsel %vm5054, %v5128, %v5129
      %v5131 = vrot.slane %v4908, 7
      %v5132 = vsel %vm5054, %v5126, %v5131
      %v5133 = vrot.slane %v4909, 7
      %v5134 = vsel %vm5054, %v5129, %v5133
      %v5135 = vrot.slane %v4910, 7
      %v5136 = vrot.slane %v4912, 7
      %v5137 = vsel %vm5054, %v5135, %v5136
      %v5138 = vrot.slane %v4911, 7
      %v5139 = vrot.slane %v4913, 7
      %v5140 = vsel %vm5054, %v5138, %v5139
      %v5141 = vrot.slane %v4914, 7
      %v5142 = vsel %vm5054, %v5136, %v5141
      %v5143 = vrot.slane %v4915, 7
      %v5144 = vsel %vm5054, %v5139, %v5143
      %v5145 = vrot.slane %v4916, 7
      %v5146 = vrot.slane %v4918, 7
      %v5147 = vsel %vm5054, %v5145, %v5146
      %v5148 = vrot.slane %v4917, 7
      %v5149 = vrot.slane %v4919, 7
      %v5150 = vsel %vm5054, %v5148, %v5149
      %v5151 = vrot.slane %v4920, 7
      %v5152 = vsel %vm5054, %v5146, %v5151
      %v5153 = vrot.slane %v4921, 7
      %v5154 = vsel %vm5054, %v5149, %v5153
      %v5155 = vrot.slane %v4922, 7
      %v5156 = vrot.slane %v4924, 7
      %v5157 = vsel %vm5054, %v5155, %v5156
      %v5158 = vrot.slane %v4923, 7
      %v5159 = vrot.slane %v4925, 7
      %v5160 = vsel %vm5054, %v5158, %v5159
      %v5161 = vrot.slane %v4926, 7
      %v5162 = vsel %vm5054, %v5156, %v5161
      %v5163 = vrot.slane %v4927, 7
      %v5164 = vsel %vm5054, %v5159, %v5163
      %v5165 = vrot.slane %v4928, 7
      %v5166 = vrot.slane %v4930, 7
      %v5167 = vsel %vm5054, %v5165, %v5166
      %v5168 = vrot.slane %v4929, 7
      %v5169 = vrot.slane %v4931, 7
      %v5170 = vsel %vm5054, %v5168, %v5169
      %v5171 = vrot.slane %v4932, 7
      %v5172 = vsel %vm5054, %v5166, %v5171
      %v5173 = vrot.slane %v4933, 7
      %v5174 = vsel %vm5054, %v5169, %v5173
      %v5175 = vrot.slane %v4934, 7
      %v5176 = vrot.slane %v4936, 7
      %v5177 = vsel %vm5054, %v5175, %v5176
      %v5178 = vrot.slane %v4935, 7
      %v5179 = vrot.slane %v4937, 7
      %v5180 = vsel %vm5054, %v5178, %v5179
      %v5181 = vrot.slane %v4938, 7
      %v5182 = vsel %vm5054, %v5176, %v5181
      %v5183 = vrot.slane %v4939, 7
      %v5184 = vsel %vm5054, %v5179, %v5183
      %v5185 = vrot.slane %v4940, 7
      %v5186 = vrot.slane %v4942, 7
      %v5187 = vsel %vm5054, %v5185, %v5186
      %v5188 = vrot.slane %v4941, 7
      %v5189 = vrot.slane %v4943, 7
      %v5190 = vsel %vm5054, %v5188, %v5189
      %v5191 = vrot.slane %v4944, 7
      %v5192 = vsel %vm5054, %v5186, %v5191
      %v5193 = vrot.slane %v4945, 7
      %v5194 = vsel %vm5054, %v5189, %v5193
      %v5195 = vrot.slane %v4946, 7
      %v5196 = vrot.slane %v4948, 7
      %v5197 = vsel %vm5054, %v5195, %v5196
      %v5198 = vrot.slane %v4947, 7
      %v5199 = vrot.slane %v4949, 7
      %v5200 = vsel %vm5054, %v5198, %v5199
      %v5201 = vrot.slane %v4950, 7
      %v5202 = vsel %vm5054, %v5196, %v5201
      %v5203 = vrot.slane %v4951, 7
      %v5204 = vsel %vm5054, %v5199, %v5203
      %v5205 = vrot.slane %v4952, 7
      %v5206 = vrot.slane %v4954, 7
      %v5207 = vsel %vm5054, %v5205, %v5206
      %v5208 = vrot.slane %v4953, 7
      %v5209 = vrot.slane %v4955, 7
      %v5210 = vsel %vm5054, %v5208, %v5209
      %v5211 = vrot.slane %v4956, 7
      %v5212 = vsel %vm5054, %v5206, %v5211
      %v5213 = vrot.slane %v4957, 7
      %v5214 = vsel %vm5054, %v5209, %v5213
      %v5279 = vadd.f32 %v536, %v5057
      %v5280 = vadd.f32 %v538, %v5060
      %v5281 = vadd.f32 %v540, %v5062
      %v5282 = vadd.f32 %v542, %v5064
      %v5283 = vadd.f32 %v546, %v5067
      %v5284 = vadd.f32 %v548, %v5070
      %v5285 = vadd.f32 %v550, %v5072
      %v5286 = vadd.f32 %v552, %v5074
      %v5287 = vadd.f32 %v556, %v5077
      %v5288 = vadd.f32 %v558, %v5080
      %v5289 = vadd.f32 %v560, %v5082
      %v5290 = vadd.f32 %v562, %v5084
      %v5291 = vadd.f32 %v566, %v5087
      %v5292 = vadd.f32 %v568, %v5090
      %v5293 = vadd.f32 %v570, %v5092
      %v5294 = vadd.f32 %v572, %v5094
      %v5295 = vadd.f32 %v576, %v5097
      %v5296 = vadd.f32 %v578, %v5100
      %v5297 = vadd.f32 %v580, %v5102
      %v5298 = vadd.f32 %v582, %v5104
      %v5299 = vadd.f32 %v586, %v5107
      %v5300 = vadd.f32 %v588, %v5110
      %v5301 = vadd.f32 %v590, %v5112
      %v5302 = vadd.f32 %v592, %v5114
      %v5303 = vadd.f32 %v596, %v5117
      %v5304 = vadd.f32 %v598, %v5120
      %v5305 = vadd.f32 %v600, %v5122
      %v5306 = vadd.f32 %v602, %v5124
      %v5307 = vadd.f32 %v606, %v5127
      %v5308 = vadd.f32 %v608, %v5130
      %v5309 = vadd.f32 %v610, %v5132
      %v5310 = vadd.f32 %v612, %v5134
      %v5311 = vadd.f32 %v616, %v5137
      %v5312 = vadd.f32 %v618, %v5140
      %v5313 = vadd.f32 %v620, %v5142
      %v5314 = vadd.f32 %v622, %v5144
      %v5315 = vadd.f32 %v626, %v5147
      %v5316 = vadd.f32 %v628, %v5150
      %v5317 = vadd.f32 %v630, %v5152
      %v5318 = vadd.f32 %v632, %v5154
      %v5319 = vadd.f32 %v636, %v5157
      %v5320 = vadd.f32 %v638, %v5160
      %v5321 = vadd.f32 %v640, %v5162
      %v5322 = vadd.f32 %v642, %v5164
      %v5323 = vadd.f32 %v646, %v5167
      %v5324 = vadd.f32 %v648, %v5170
      %v5325 = vadd.f32 %v650, %v5172
      %v5326 = vadd.f32 %v652, %v5174
      %v5327 = vadd.f32 %v656, %v5177
      %v5328 = vadd.f32 %v658, %v5180
      %v5329 = vadd.f32 %v660, %v5182
      %v5330 = vadd.f32 %v662, %v5184
      %v5331 = vadd.f32 %v666, %v5187
      %v5332 = vadd.f32 %v668, %v5190
      %v5333 = vadd.f32 %v670, %v5192
      %v5334 = vadd.f32 %v672, %v5194
      %v5335 = vadd.f32 %v676, %v5197
      %v5336 = vadd.f32 %v678, %v5200
      %v5337 = vadd.f32 %v680, %v5202
      %v5338 = vadd.f32 %v682, %v5204
      %v5339 = vadd.f32 %v686, %v5207
      %v5340 = vadd.f32 %v688, %v5210
      %v5341 = vadd.f32 %v690, %v5212
      %v5342 = vadd.f32 %v692, %v5214
      %v5343 = vld [vmem:[%s4] sm:$0x3]
      %v5345 = vlaneseq
      %v5346 = vshrl.u32 %v5345, 7
      %v5347 = vsub.s32 0, %v5346
      %v5348 = vrot.slane %v5343, %v5347
      %v5349 = vlaneseq
      %v5350 = vshrl.u32 %v5349, 7
      %v5351 = vsub.s32 1, %v5350
      %v5352 = vrot.slane %v5343, %v5351
      %v5355 = vadd.f32 %v5279, %v5348
      %v5356 = vadd.f32 %v5280, %v5352
      %v5357 = vadd.f32 %v5281, %v5348
      %v5358 = vadd.f32 %v5282, %v5352
      %v5359 = vadd.f32 %v5283, %v5348
      %v5360 = vadd.f32 %v5284, %v5352
      %v5361 = vadd.f32 %v5285, %v5348
      %v5362 = vadd.f32 %v5286, %v5352
      %v5363 = vadd.f32 %v5287, %v5348
      %v5364 = vadd.f32 %v5288, %v5352
      %v5365 = vadd.f32 %v5289, %v5348
      %v5366 = vadd.f32 %v5290, %v5352
      %v5367 = vadd.f32 %v5291, %v5348
      %v5368 = vadd.f32 %v5292, %v5352
      %v5369 = vadd.f32 %v5293, %v5348
      %v5370 = vadd.f32 %v5294, %v5352
      %v5371 = vadd.f32 %v5295, %v5348
      %v5372 = vadd.f32 %v5296, %v5352
      %v5373 = vadd.f32 %v5297, %v5348
      %v5374 = vadd.f32 %v5298, %v5352
      %v5375 = vadd.f32 %v5299, %v5348
      %v5376 = vadd.f32 %v5300, %v5352
      %v5377 = vadd.f32 %v5301, %v5348
      %v5378 = vadd.f32 %v5302, %v5352
      %v5379 = vadd.f32 %v5303, %v5348
      %v5380 = vadd.f32 %v5304, %v5352
      %v5381 = vadd.f32 %v5305, %v5348
      %v5382 = vadd.f32 %v5306, %v5352
      %v5383 = vadd.f32 %v5307, %v5348
      %v5384 = vadd.f32 %v5308, %v5352
      %v5385 = vadd.f32 %v5309, %v5348
      %v5386 = vadd.f32 %v5310, %v5352
      %v5387 = vadd.f32 %v5311, %v5348
      %v5388 = vadd.f32 %v5312, %v5352
      %v5389 = vadd.f32 %v5313, %v5348
      %v5390 = vadd.f32 %v5314, %v5352
      %v5391 = vadd.f32 %v5315, %v5348
      %v5392 = vadd.f32 %v5316, %v5352
      %v5393 = vadd.f32 %v5317, %v5348
      %v5394 = vadd.f32 %v5318, %v5352
      %v5395 = vadd.f32 %v5319, %v5348
      %v5396 = vadd.f32 %v5320, %v5352
      %v5397 = vadd.f32 %v5321, %v5348
      %v5398 = vadd.f32 %v5322, %v5352
      %v5399 = vadd.f32 %v5323, %v5348
      %v5400 = vadd.f32 %v5324, %v5352
      %v5401 = vadd.f32 %v5325, %v5348
      %v5402 = vadd.f32 %v5326, %v5352
      %v5403 = vadd.f32 %v5327, %v5348
      %v5404 = vadd.f32 %v5328, %v5352
      %v5405 = vadd.f32 %v5329, %v5348
      %v5406 = vadd.f32 %v5330, %v5352
      %v5407 = vadd.f32 %v5331, %v5348
      %v5408 = vadd.f32 %v5332, %v5352
      %v5409 = vadd.f32 %v5333, %v5348
      %v5410 = vadd.f32 %v5334, %v5352
      %v5411 = vadd.f32 %v5335, %v5348
      %v5412 = vadd.f32 %v5336, %v5352
      %v5413 = vadd.f32 %v5337, %v5348
      %v5414 = vadd.f32 %v5338, %v5352
      %v5415 = vadd.f32 %v5339, %v5348
      %v5416 = vadd.f32 %v5340, %v5352
      %v5417 = vadd.f32 %v5341, %v5348
      %v5418 = vadd.f32 %v5342, %v5352
      %v5419 = vmul.f32 %v5355, 0.5
      %v5420 = vmul.f32 %v5356, 0.5
      %v5421 = vmul.f32 %v5357, 0.5
      %v5422 = vmul.f32 %v5358, 0.5
      %v5423 = vmul.f32 %v5359, 0.5
      %v5424 = vmul.f32 %v5360, 0.5
      %v5425 = vmul.f32 %v5361, 0.5
      %v5426 = vmul.f32 %v5362, 0.5
      %v5427 = vmul.f32 %v5363, 0.5
      %v5428 = vmul.f32 %v5364, 0.5
      %v5429 = vmul.f32 %v5365, 0.5
      %v5430 = vmul.f32 %v5366, 0.5
      %v5431 = vmul.f32 %v5367, 0.5
      %v5432 = vmul.f32 %v5368, 0.5
      %v5433 = vmul.f32 %v5369, 0.5
      %v5434 = vmul.f32 %v5370, 0.5
      %v5435 = vmul.f32 %v5371, 0.5
      %v5436 = vmul.f32 %v5372, 0.5
      %v5437 = vmul.f32 %v5373, 0.5
      %v5438 = vmul.f32 %v5374, 0.5
      %v5439 = vmul.f32 %v5375, 0.5
      %v5440 = vmul.f32 %v5376, 0.5
      %v5441 = vmul.f32 %v5377, 0.5
      %v5442 = vmul.f32 %v5378, 0.5
      %v5443 = vmul.f32 %v5379, 0.5
      %v5444 = vmul.f32 %v5380, 0.5
      %v5445 = vmul.f32 %v5381, 0.5
      %v5446 = vmul.f32 %v5382, 0.5
      %v5447 = vmul.f32 %v5383, 0.5
      %v5448 = vmul.f32 %v5384, 0.5
      %v5449 = vmul.f32 %v5385, 0.5
      %v5450 = vmul.f32 %v5386, 0.5
      %v5451 = vmul.f32 %v5387, 0.5
      %v5452 = vmul.f32 %v5388, 0.5
      %v5453 = vmul.f32 %v5389, 0.5
      %v5454 = vmul.f32 %v5390, 0.5
      %v5455 = vmul.f32 %v5391, 0.5
      %v5456 = vmul.f32 %v5392, 0.5
      %v5457 = vmul.f32 %v5393, 0.5
      %v5458 = vmul.f32 %v5394, 0.5
      %v5459 = vmul.f32 %v5395, 0.5
      %v5460 = vmul.f32 %v5396, 0.5
      %v5461 = vmul.f32 %v5397, 0.5
      %v5462 = vmul.f32 %v5398, 0.5
      %v5463 = vmul.f32 %v5399, 0.5
      %v5464 = vmul.f32 %v5400, 0.5
      %v5465 = vmul.f32 %v5401, 0.5
      %v5466 = vmul.f32 %v5402, 0.5
      %v5467 = vmul.f32 %v5403, 0.5
      %v5468 = vmul.f32 %v5404, 0.5
      %v5469 = vmul.f32 %v5405, 0.5
      %v5470 = vmul.f32 %v5406, 0.5
      %v5471 = vmul.f32 %v5407, 0.5
      %v5472 = vmul.f32 %v5408, 0.5
      %v5473 = vmul.f32 %v5409, 0.5
      %v5474 = vmul.f32 %v5410, 0.5
      %v5475 = vmul.f32 %v5411, 0.5
      %v5476 = vmul.f32 %v5412, 0.5
      %v5477 = vmul.f32 %v5413, 0.5
      %v5478 = vmul.f32 %v5414, 0.5
      %v5479 = vmul.f32 %v5415, 0.5
      %v5480 = vmul.f32 %v5416, 0.5
      %v5481 = vmul.f32 %v5417, 0.5
      %v5482 = vmul.f32 %v5418, 0.5
      %v5483 = vmul.f32 %v5355, %v5355
      %v5484 = vmul.f32 %v5356, %v5356
      %v5485 = vmul.f32 %v5357, %v5357
      %v5486 = vmul.f32 %v5358, %v5358
      %v5487 = vmul.f32 %v5359, %v5359
      %v5488 = vmul.f32 %v5360, %v5360
      %v5489 = vmul.f32 %v5361, %v5361
      %v5490 = vmul.f32 %v5362, %v5362
      %v5491 = vmul.f32 %v5363, %v5363
      %v5492 = vmul.f32 %v5364, %v5364
      %v5493 = vmul.f32 %v5365, %v5365
      %v5494 = vmul.f32 %v5366, %v5366
      %v5495 = vmul.f32 %v5367, %v5367
      %v5496 = vmul.f32 %v5368, %v5368
      %v5497 = vmul.f32 %v5369, %v5369
      %v5498 = vmul.f32 %v5370, %v5370
      %v5499 = vmul.f32 %v5371, %v5371
      %v5500 = vmul.f32 %v5372, %v5372
      %v5501 = vmul.f32 %v5373, %v5373
      %v5502 = vmul.f32 %v5374, %v5374
      %v5503 = vmul.f32 %v5375, %v5375
      %v5504 = vmul.f32 %v5376, %v5376
      %v5505 = vmul.f32 %v5377, %v5377
      %v5506 = vmul.f32 %v5378, %v5378
      %v5507 = vmul.f32 %v5379, %v5379
      %v5508 = vmul.f32 %v5380, %v5380
      %v5509 = vmul.f32 %v5381, %v5381
      %v5510 = vmul.f32 %v5382, %v5382
      %v5511 = vmul.f32 %v5383, %v5383
      %v5512 = vmul.f32 %v5384, %v5384
      %v5513 = vmul.f32 %v5385, %v5385
      %v5514 = vmul.f32 %v5386, %v5386
      %v5515 = vmul.f32 %v5387, %v5387
      %v5516 = vmul.f32 %v5388, %v5388
      %v5517 = vmul.f32 %v5389, %v5389
      %v5518 = vmul.f32 %v5390, %v5390
      %v5519 = vmul.f32 %v5391, %v5391
      %v5520 = vmul.f32 %v5392, %v5392
      %v5521 = vmul.f32 %v5393, %v5393
      %v5522 = vmul.f32 %v5394, %v5394
      %v5523 = vmul.f32 %v5395, %v5395
      %v5524 = vmul.f32 %v5396, %v5396
      %v5525 = vmul.f32 %v5397, %v5397
      %v5526 = vmul.f32 %v5398, %v5398
      %v5527 = vmul.f32 %v5399, %v5399
      %v5528 = vmul.f32 %v5400, %v5400
      %v5529 = vmul.f32 %v5401, %v5401
      %v5530 = vmul.f32 %v5402, %v5402
      %v5531 = vmul.f32 %v5403, %v5403
      %v5532 = vmul.f32 %v5404, %v5404
      %v5533 = vmul.f32 %v5405, %v5405
      %v5534 = vmul.f32 %v5406, %v5406
      %v5535 = vmul.f32 %v5407, %v5407
      %v5536 = vmul.f32 %v5408, %v5408
      %v5537 = vmul.f32 %v5409, %v5409
      %v5538 = vmul.f32 %v5410, %v5410
      %v5539 = vmul.f32 %v5411, %v5411
      %v5540 = vmul.f32 %v5412, %v5412
      %v5541 = vmul.f32 %v5413, %v5413
      %v5542 = vmul.f32 %v5414, %v5414
      %v5543 = vmul.f32 %v5415, %v5415
      %v5544 = vmul.f32 %v5416, %v5416
      %v5545 = vmul.f32 %v5417, %v5417
      %v5546 = vmul.f32 %v5418, %v5418
      %v5547 = vmul.f32 %v5483, %v5355
      %v5548 = vmul.f32 %v5484, %v5356
      %v5549 = vmul.f32 %v5485, %v5357
      %v5550 = vmul.f32 %v5486, %v5358
      %v5551 = vmul.f32 %v5487, %v5359
      %v5552 = vmul.f32 %v5488, %v5360
      %v5553 = vmul.f32 %v5489, %v5361
      %v5554 = vmul.f32 %v5490, %v5362
      %v5555 = vmul.f32 %v5491, %v5363
      %v5556 = vmul.f32 %v5492, %v5364
      %v5557 = vmul.f32 %v5493, %v5365
      %v5558 = vmul.f32 %v5494, %v5366
      %v5559 = vmul.f32 %v5495, %v5367
      %v5560 = vmul.f32 %v5496, %v5368
      %v5561 = vmul.f32 %v5497, %v5369
      %v5562 = vmul.f32 %v5498, %v5370
      %v5563 = vmul.f32 %v5499, %v5371
      %v5564 = vmul.f32 %v5500, %v5372
      %v5565 = vmul.f32 %v5501, %v5373
      %v5566 = vmul.f32 %v5502, %v5374
      %v5567 = vmul.f32 %v5503, %v5375
      %v5568 = vmul.f32 %v5504, %v5376
      %v5569 = vmul.f32 %v5505, %v5377
      %v5570 = vmul.f32 %v5506, %v5378
      %v5571 = vmul.f32 %v5507, %v5379
      %v5572 = vmul.f32 %v5508, %v5380
      %v5573 = vmul.f32 %v5509, %v5381
      %v5574 = vmul.f32 %v5510, %v5382
      %v5575 = vmul.f32 %v5511, %v5383
      %v5576 = vmul.f32 %v5512, %v5384
      %v5577 = vmul.f32 %v5513, %v5385
      %v5578 = vmul.f32 %v5514, %v5386
      %v5579 = vmul.f32 %v5515, %v5387
      %v5580 = vmul.f32 %v5516, %v5388
      %v5581 = vmul.f32 %v5517, %v5389
      %v5582 = vmul.f32 %v5518, %v5390
      %v5583 = vmul.f32 %v5519, %v5391
      %v5584 = vmul.f32 %v5520, %v5392
      %v5585 = vmul.f32 %v5521, %v5393
      %v5586 = vmul.f32 %v5522, %v5394
      %v5587 = vmul.f32 %v5523, %v5395
      %v5588 = vmul.f32 %v5524, %v5396
      %v5589 = vmul.f32 %v5525, %v5397
      %v5590 = vmul.f32 %v5526, %v5398
      %v5591 = vmul.f32 %v5527, %v5399
      %v5592 = vmul.f32 %v5528, %v5400
      %v5593 = vmul.f32 %v5529, %v5401
      %v5594 = vmul.f32 %v5530, %v5402
      %v5595 = vmul.f32 %v5531, %v5403
      %v5596 = vmul.f32 %v5532, %v5404
      %v5597 = vmul.f32 %v5533, %v5405
      %v5598 = vmul.f32 %v5534, %v5406
      %v5599 = vmul.f32 %v5535, %v5407
      %v5600 = vmul.f32 %v5536, %v5408
      %v5601 = vmul.f32 %v5537, %v5409
      %v5602 = vmul.f32 %v5538, %v5410
      %v5603 = vmul.f32 %v5539, %v5411
      %v5604 = vmul.f32 %v5540, %v5412
      %v5605 = vmul.f32 %v5541, %v5413
      %v5606 = vmul.f32 %v5542, %v5414
      %v5607 = vmul.f32 %v5543, %v5415
      %v5608 = vmul.f32 %v5544, %v5416
      %v5609 = vmul.f32 %v5545, %v5417
      %v5610 = vmul.f32 %v5546, %v5418
      %v5611 = vmul.f32 %v5547, 0.044715
      %v5612 = vmul.f32 %v5548, 0.044715
      %v5613 = vmul.f32 %v5549, 0.044715
      %v5614 = vmul.f32 %v5550, 0.044715
      %v5615 = vmul.f32 %v5551, 0.044715
      %v5616 = vmul.f32 %v5552, 0.044715
      %v5617 = vmul.f32 %v5553, 0.044715
      %v5618 = vmul.f32 %v5554, 0.044715
      %v5619 = vmul.f32 %v5555, 0.044715
      %v5620 = vmul.f32 %v5556, 0.044715
      %v5621 = vmul.f32 %v5557, 0.044715
      %v5622 = vmul.f32 %v5558, 0.044715
      %v5623 = vmul.f32 %v5559, 0.044715
      %v5624 = vmul.f32 %v5560, 0.044715
      %v5625 = vmul.f32 %v5561, 0.044715
      %v5626 = vmul.f32 %v5562, 0.044715
      %v5627 = vmul.f32 %v5563, 0.044715
      %v5628 = vmul.f32 %v5564, 0.044715
      %v5629 = vmul.f32 %v5565, 0.044715
      %v5630 = vmul.f32 %v5566, 0.044715
      %v5631 = vmul.f32 %v5567, 0.044715
      %v5632 = vmul.f32 %v5568, 0.044715
      %v5633 = vmul.f32 %v5569, 0.044715
      %v5634 = vmul.f32 %v5570, 0.044715
      %v5635 = vmul.f32 %v5571, 0.044715
      %v5636 = vmul.f32 %v5572, 0.044715
      %v5637 = vmul.f32 %v5573, 0.044715
      %v5638 = vmul.f32 %v5574, 0.044715
      %v5639 = vmul.f32 %v5575, 0.044715
      %v5640 = vmul.f32 %v5576, 0.044715
      %v5641 = vmul.f32 %v5577, 0.044715
      %v5642 = vmul.f32 %v5578, 0.044715
      %v5643 = vmul.f32 %v5579, 0.044715
      %v5644 = vmul.f32 %v5580, 0.044715
      %v5645 = vmul.f32 %v5581, 0.044715
      %v5646 = vmul.f32 %v5582, 0.044715
      %v5647 = vmul.f32 %v5583, 0.044715
      %v5648 = vmul.f32 %v5584, 0.044715
      %v5649 = vmul.f32 %v5585, 0.044715
      %v5650 = vmul.f32 %v5586, 0.044715
      %v5651 = vmul.f32 %v5587, 0.044715
      %v5652 = vmul.f32 %v5588, 0.044715
      %v5653 = vmul.f32 %v5589, 0.044715
      %v5654 = vmul.f32 %v5590, 0.044715
      %v5655 = vmul.f32 %v5591, 0.044715
      %v5656 = vmul.f32 %v5592, 0.044715
      %v5657 = vmul.f32 %v5593, 0.044715
      %v5658 = vmul.f32 %v5594, 0.044715
      %v5659 = vmul.f32 %v5595, 0.044715
      %v5660 = vmul.f32 %v5596, 0.044715
      %v5661 = vmul.f32 %v5597, 0.044715
      %v5662 = vmul.f32 %v5598, 0.044715
      %v5663 = vmul.f32 %v5599, 0.044715
      %v5664 = vmul.f32 %v5600, 0.044715
      %v5665 = vmul.f32 %v5601, 0.044715
      %v5666 = vmul.f32 %v5602, 0.044715
      %v5667 = vmul.f32 %v5603, 0.044715
      %v5668 = vmul.f32 %v5604, 0.044715
      %v5669 = vmul.f32 %v5605, 0.044715
      %v5670 = vmul.f32 %v5606, 0.044715
      %v5671 = vmul.f32 %v5607, 0.044715
      %v5672 = vmul.f32 %v5608, 0.044715
      %v5673 = vmul.f32 %v5609, 0.044715
      %v5674 = vmul.f32 %v5610, 0.044715
      %v5675 = vadd.f32 %v5355, %v5611
      %v5676 = vadd.f32 %v5356, %v5612
      %v5677 = vadd.f32 %v5357, %v5613
      %v5678 = vadd.f32 %v5358, %v5614
      %v5679 = vadd.f32 %v5359, %v5615
      %v5680 = vadd.f32 %v5360, %v5616
      %v5681 = vadd.f32 %v5361, %v5617
      %v5682 = vadd.f32 %v5362, %v5618
      %v5683 = vadd.f32 %v5363, %v5619
      %v5684 = vadd.f32 %v5364, %v5620
      %v5685 = vadd.f32 %v5365, %v5621
      %v5686 = vadd.f32 %v5366, %v5622
      %v5687 = vadd.f32 %v5367, %v5623
      %v5688 = vadd.f32 %v5368, %v5624
      %v5689 = vadd.f32 %v5369, %v5625
      %v5690 = vadd.f32 %v5370, %v5626
      %v5691 = vadd.f32 %v5371, %v5627
      %v5692 = vadd.f32 %v5372, %v5628
      %v5693 = vadd.f32 %v5373, %v5629
      %v5694 = vadd.f32 %v5374, %v5630
      %v5695 = vadd.f32 %v5375, %v5631
      %v5696 = vadd.f32 %v5376, %v5632
      %v5697 = vadd.f32 %v5377, %v5633
      %v5698 = vadd.f32 %v5378, %v5634
      %v5699 = vadd.f32 %v5379, %v5635
      %v5700 = vadd.f32 %v5380, %v5636
      %v5701 = vadd.f32 %v5381, %v5637
      %v5702 = vadd.f32 %v5382, %v5638
      %v5703 = vadd.f32 %v5383, %v5639
      %v5704 = vadd.f32 %v5384, %v5640
      %v5705 = vadd.f32 %v5385, %v5641
      %v5706 = vadd.f32 %v5386, %v5642
      %v5707 = vadd.f32 %v5387, %v5643
      %v5708 = vadd.f32 %v5388, %v5644
      %v5709 = vadd.f32 %v5389, %v5645
      %v5710 = vadd.f32 %v5390, %v5646
      %v5711 = vadd.f32 %v5391, %v5647
      %v5712 = vadd.f32 %v5392, %v5648
      %v5713 = vadd.f32 %v5393, %v5649
      %v5714 = vadd.f32 %v5394, %v5650
      %v5715 = vadd.f32 %v5395, %v5651
      %v5716 = vadd.f32 %v5396, %v5652
      %v5717 = vadd.f32 %v5397, %v5653
      %v5718 = vadd.f32 %v5398, %v5654
      %v5719 = vadd.f32 %v5399, %v5655
      %v5720 = vadd.f32 %v5400, %v5656
      %v5721 = vadd.f32 %v5401, %v5657
      %v5722 = vadd.f32 %v5402, %v5658
      %v5723 = vadd.f32 %v5403, %v5659
      %v5724 = vadd.f32 %v5404, %v5660
      %v5725 = vadd.f32 %v5405, %v5661
      %v5726 = vadd.f32 %v5406, %v5662
      %v5727 = vadd.f32 %v5407, %v5663
      %v5728 = vadd.f32 %v5408, %v5664
      %v5729 = vadd.f32 %v5409, %v5665
      %v5730 = vadd.f32 %v5410, %v5666
      %v5731 = vadd.f32 %v5411, %v5667
      %v5732 = vadd.f32 %v5412, %v5668
      %v5733 = vadd.f32 %v5413, %v5669
      %v5734 = vadd.f32 %v5414, %v5670
      %v5735 = vadd.f32 %v5415, %v5671
      %v5736 = vadd.f32 %v5416, %v5672
      %v5737 = vadd.f32 %v5417, %v5673
      %v5738 = vadd.f32 %v5418, %v5674
      %v5739 = vmul.f32 %v5675, 0.7978846
      %v5740 = vmul.f32 %v5676, 0.7978846
      %v5741 = vmul.f32 %v5677, 0.7978846
      %v5742 = vmul.f32 %v5678, 0.7978846
      %v5743 = vmul.f32 %v5679, 0.7978846
      %v5744 = vmul.f32 %v5680, 0.7978846
      %v5745 = vmul.f32 %v5681, 0.7978846
      %v5746 = vmul.f32 %v5682, 0.7978846
      %v5747 = vmul.f32 %v5683, 0.7978846
      %v5748 = vmul.f32 %v5684, 0.7978846
      %v5749 = vmul.f32 %v5685, 0.7978846
      %v5750 = vmul.f32 %v5686, 0.7978846
      %v5751 = vmul.f32 %v5687, 0.7978846
      %v5752 = vmul.f32 %v5688, 0.7978846
      %v5753 = vmul.f32 %v5689, 0.7978846
      %v5754 = vmul.f32 %v5690, 0.7978846
      %v5755 = vmul.f32 %v5691, 0.7978846
      %v5756 = vmul.f32 %v5692, 0.7978846
      %v5757 = vmul.f32 %v5693, 0.7978846
      %v5758 = vmul.f32 %v5694, 0.7978846
      %v5759 = vmul.f32 %v5695, 0.7978846
      %v5760 = vmul.f32 %v5696, 0.7978846
      %v5761 = vmul.f32 %v5697, 0.7978846
      %v5762 = vmul.f32 %v5698, 0.7978846
      %v5763 = vmul.f32 %v5699, 0.7978846
      %v5764 = vmul.f32 %v5700, 0.7978846
      %v5765 = vmul.f32 %v5701, 0.7978846
      %v5766 = vmul.f32 %v5702, 0.7978846
      %v5767 = vmul.f32 %v5703, 0.7978846
      %v5768 = vmul.f32 %v5704, 0.7978846
      %v5769 = vmul.f32 %v5705, 0.7978846
      %v5770 = vmul.f32 %v5706, 0.7978846
      %v5771 = vmul.f32 %v5707, 0.7978846
      %v5772 = vmul.f32 %v5708, 0.7978846
      %v5773 = vmul.f32 %v5709, 0.7978846
      %v5774 = vmul.f32 %v5710, 0.7978846
      %v5775 = vmul.f32 %v5711, 0.7978846
      %v5776 = vmul.f32 %v5712, 0.7978846
      %v5777 = vmul.f32 %v5713, 0.7978846
      %v5778 = vmul.f32 %v5714, 0.7978846
      %v5779 = vmul.f32 %v5715, 0.7978846
      %v5780 = vmul.f32 %v5716, 0.7978846
      %v5781 = vmul.f32 %v5717, 0.7978846
      %v5782 = vmul.f32 %v5718, 0.7978846
      %v5783 = vmul.f32 %v5719, 0.7978846
      %v5784 = vmul.f32 %v5720, 0.7978846
      %v5785 = vmul.f32 %v5721, 0.7978846
      %v5786 = vmul.f32 %v5722, 0.7978846
      %v5787 = vmul.f32 %v5723, 0.7978846
      %v5788 = vmul.f32 %v5724, 0.7978846
      %v5789 = vmul.f32 %v5725, 0.7978846
      %v5790 = vmul.f32 %v5726, 0.7978846
      %v5791 = vmul.f32 %v5727, 0.7978846
      %v5792 = vmul.f32 %v5728, 0.7978846
      %v5793 = vmul.f32 %v5729, 0.7978846
      %v5794 = vmul.f32 %v5730, 0.7978846
      %v5795 = vmul.f32 %v5731, 0.7978846
      %v5796 = vmul.f32 %v5732, 0.7978846
      %v5797 = vmul.f32 %v5733, 0.7978846
      %v5798 = vmul.f32 %v5734, 0.7978846
      %v5799 = vmul.f32 %v5735, 0.7978846
      %v5800 = vmul.f32 %v5736, 0.7978846
      %v5801 = vmul.f32 %v5737, 0.7978846
      %v5802 = vmul.f32 %v5738, 0.7978846
      %v5803 = vtanh.pop %v5739
      %v5804 = vtanh.pop %v5740
      %v5805 = vtanh.pop %v5741
      %v5806 = vtanh.pop %v5742
      %v5807 = vtanh.pop %v5743
      %v5808 = vtanh.pop %v5744
      %v5809 = vtanh.pop %v5745
      %v5810 = vtanh.pop %v5746
      %v5811 = vtanh.pop %v5747
      %v5812 = vtanh.pop %v5748
      %v5813 = vtanh.pop %v5749
      %v5814 = vtanh.pop %v5750
      %v5815 = vtanh.pop %v5751
      %v5816 = vtanh.pop %v5752
      %v5817 = vtanh.pop %v5753
      %v5818 = vtanh.pop %v5754
      %v5819 = vtanh.pop %v5755
      %v5820 = vtanh.pop %v5756
      %v5821 = vtanh.pop %v5757
      %v5822 = vtanh.pop %v5758
      %v5823 = vtanh.pop %v5759
      %v5824 = vtanh.pop %v5760
      %v5825 = vtanh.pop %v5761
      %v5826 = vtanh.pop %v5762
      %v5827 = vtanh.pop %v5763
      %v5828 = vtanh.pop %v5764
      %v5829 = vtanh.pop %v5765
      %v5830 = vtanh.pop %v5766
      %v5831 = vtanh.pop %v5767
      %v5832 = vtanh.pop %v5768
      %v5833 = vtanh.pop %v5769
      %v5834 = vtanh.pop %v5770
      %v5835 = vtanh.pop %v5771
      %v5836 = vtanh.pop %v5772
      %v5837 = vtanh.pop %v5773
      %v5838 = vtanh.pop %v5774
      %v5839 = vtanh.pop %v5775
      %v5840 = vtanh.pop %v5776
      %v5841 = vtanh.pop %v5777
      %v5842 = vtanh.pop %v5778
      %v5843 = vtanh.pop %v5779
      %v5844 = vtanh.pop %v5780
      %v5845 = vtanh.pop %v5781
      %v5846 = vtanh.pop %v5782
      %v5847 = vtanh.pop %v5783
      %v5848 = vtanh.pop %v5784
      %v5849 = vtanh.pop %v5785
      %v5850 = vtanh.pop %v5786
      %v5851 = vtanh.pop %v5787
      %v5852 = vtanh.pop %v5788
      %v5853 = vtanh.pop %v5789
      %v5854 = vtanh.pop %v5790
      %v5855 = vtanh.pop %v5791
      %v5856 = vtanh.pop %v5792
      %v5857 = vtanh.pop %v5793
      %v5858 = vtanh.pop %v5794
      %v5859 = vtanh.pop %v5795
      %v5860 = vtanh.pop %v5796
      %v5861 = vtanh.pop %v5797
      %v5862 = vtanh.pop %v5798
      %v5863 = vtanh.pop %v5799
      %v5864 = vtanh.pop %v5800
      %v5865 = vtanh.pop %v5801
      %v5866 = vtanh.pop %v5802
      %v5867 = vadd.f32 %v5803, 1.0
      %v5868 = vadd.f32 %v5804, 1.0
      %v5869 = vadd.f32 %v5805, 1.0
      %v5870 = vadd.f32 %v5806, 1.0
      %v5871 = vadd.f32 %v5807, 1.0
      %v5872 = vadd.f32 %v5808, 1.0
      %v5873 = vadd.f32 %v5809, 1.0
      %v5874 = vadd.f32 %v5810, 1.0
      %v5875 = vadd.f32 %v5811, 1.0
      %v5876 = vadd.f32 %v5812, 1.0
      %v5877 = vadd.f32 %v5813, 1.0
      %v5878 = vadd.f32 %v5814, 1.0
      %v5879 = vadd.f32 %v5815, 1.0
      %v5880 = vadd.f32 %v5816, 1.0
      %v5881 = vadd.f32 %v5817, 1.0
      %v5882 = vadd.f32 %v5818, 1.0
      %v5883 = vadd.f32 %v5819, 1.0
      %v5884 = vadd.f32 %v5820, 1.0
      %v5885 = vadd.f32 %v5821, 1.0
      %v5886 = vadd.f32 %v5822, 1.0
      %v5887 = vadd.f32 %v5823, 1.0
      %v5888 = vadd.f32 %v5824, 1.0
      %v5889 = vadd.f32 %v5825, 1.0
      %v5890 = vadd.f32 %v5826, 1.0
      %v5891 = vadd.f32 %v5827, 1.0
      %v5892 = vadd.f32 %v5828, 1.0
      %v5893 = vadd.f32 %v5829, 1.0
      %v5894 = vadd.f32 %v5830, 1.0
      %v5895 = vadd.f32 %v5831, 1.0
      %v5896 = vadd.f32 %v5832, 1.0
      %v5897 = vadd.f32 %v5833, 1.0
      %v5898 = vadd.f32 %v5834, 1.0
      %v5899 = vadd.f32 %v5835, 1.0
      %v5900 = vadd.f32 %v5836, 1.0
      %v5901 = vadd.f32 %v5837, 1.0
      %v5902 = vadd.f32 %v5838, 1.0
      %v5903 = vadd.f32 %v5839, 1.0
      %v5904 = vadd.f32 %v5840, 1.0
      %v5905 = vadd.f32 %v5841, 1.0
      %v5906 = vadd.f32 %v5842, 1.0
      %v5907 = vadd.f32 %v5843, 1.0
      %v5908 = vadd.f32 %v5844, 1.0
      %v5909 = vadd.f32 %v5845, 1.0
      %v5910 = vadd.f32 %v5846, 1.0
      %v5911 = vadd.f32 %v5847, 1.0
      %v5912 = vadd.f32 %v5848, 1.0
      %v5913 = vadd.f32 %v5849, 1.0
      %v5914 = vadd.f32 %v5850, 1.0
      %v5915 = vadd.f32 %v5851, 1.0
      %v5916 = vadd.f32 %v5852, 1.0
      %v5917 = vadd.f32 %v5853, 1.0
      %v5918 = vadd.f32 %v5854, 1.0
      %v5919 = vadd.f32 %v5855, 1.0
      %v5920 = vadd.f32 %v5856, 1.0
      %v5921 = vadd.f32 %v5857, 1.0
      %v5922 = vadd.f32 %v5858, 1.0
      %v5923 = vadd.f32 %v5859, 1.0
      %v5924 = vadd.f32 %v5860, 1.0
      %v5925 = vadd.f32 %v5861, 1.0
      %v5926 = vadd.f32 %v5862, 1.0
      %v5927 = vadd.f32 %v5863, 1.0
      %v5928 = vadd.f32 %v5864, 1.0
      %v5929 = vadd.f32 %v5865, 1.0
      %v5930 = vadd.f32 %v5866, 1.0
      %v5931 = vmul.f32 %v5419, %v5867
      %v5932 = vmul.f32 %v5420, %v5868
      %v5933 = vmul.f32 %v5421, %v5869
      %v5934 = vmul.f32 %v5422, %v5870
      %v5935 = vmul.f32 %v5423, %v5871
      %v5936 = vmul.f32 %v5424, %v5872
      %v5937 = vmul.f32 %v5425, %v5873
      %v5938 = vmul.f32 %v5426, %v5874
      %v5939 = vmul.f32 %v5427, %v5875
      %v5940 = vmul.f32 %v5428, %v5876
      %v5941 = vmul.f32 %v5429, %v5877
      %v5942 = vmul.f32 %v5430, %v5878
      %v5943 = vmul.f32 %v5431, %v5879
      %v5944 = vmul.f32 %v5432, %v5880
      %v5945 = vmul.f32 %v5433, %v5881
      %v5946 = vmul.f32 %v5434, %v5882
      %v5947 = vmul.f32 %v5435, %v5883
      %v5948 = vmul.f32 %v5436, %v5884
      %v5949 = vmul.f32 %v5437, %v5885
      %v5950 = vmul.f32 %v5438, %v5886
      %v5951 = vmul.f32 %v5439, %v5887
      %v5952 = vmul.f32 %v5440, %v5888
      %v5953 = vmul.f32 %v5441, %v5889
      %v5954 = vmul.f32 %v5442, %v5890
      %v5955 = vmul.f32 %v5443, %v5891
      %v5956 = vmul.f32 %v5444, %v5892
      %v5957 = vmul.f32 %v5445, %v5893
      %v5958 = vmul.f32 %v5446, %v5894
      %v5959 = vmul.f32 %v5447, %v5895
      %v5960 = vmul.f32 %v5448, %v5896
      %v5961 = vmul.f32 %v5449, %v5897
      %v5962 = vmul.f32 %v5450, %v5898
      %v5963 = vmul.f32 %v5451, %v5899
      %v5964 = vmul.f32 %v5452, %v5900
      %v5965 = vmul.f32 %v5453, %v5901
      %v5966 = vmul.f32 %v5454, %v5902
      %v5967 = vmul.f32 %v5455, %v5903
      %v5968 = vmul.f32 %v5456, %v5904
      %v5969 = vmul.f32 %v5457, %v5905
      %v5970 = vmul.f32 %v5458, %v5906
      %v5971 = vmul.f32 %v5459, %v5907
      %v5972 = vmul.f32 %v5460, %v5908
      %v5973 = vmul.f32 %v5461, %v5909
      %v5974 = vmul.f32 %v5462, %v5910
      %v5975 = vmul.f32 %v5463, %v5911
      %v5976 = vmul.f32 %v5464, %v5912
      %v5977 = vmul.f32 %v5465, %v5913
      %v5978 = vmul.f32 %v5466, %v5914
      %v5979 = vmul.f32 %v5467, %v5915
      %v5980 = vmul.f32 %v5468, %v5916
      %v5981 = vmul.f32 %v5469, %v5917
      %v5982 = vmul.f32 %v5470, %v5918
      %v5983 = vmul.f32 %v5471, %v5919
      %v5984 = vmul.f32 %v5472, %v5920
      %v5985 = vmul.f32 %v5473, %v5921
      %v5986 = vmul.f32 %v5474, %v5922
      %v5987 = vmul.f32 %v5475, %v5923
      %v5988 = vmul.f32 %v5476, %v5924
      %v5989 = vmul.f32 %v5477, %v5925
      %v5990 = vmul.f32 %v5478, %v5926
      %v5991 = vmul.f32 %v5479, %v5927
      %v5992 = vmul.f32 %v5480, %v5928
      %v5993 = vmul.f32 %v5481, %v5929
      %v5994 = vmul.f32 %v5482, %v5930
      %v5995 = vpack.c.bf16 %v5933, %v5931
      %v5996 = vpack.c.bf16 %v5934, %v5932
      %v5997 = vpack.c.bf16 %v5937, %v5935
      %v5998 = vpack.c.bf16 %v5938, %v5936
      %v5999 = vpack.c.bf16 %v5941, %v5939
      %v6000 = vpack.c.bf16 %v5942, %v5940
      %v6001 = vpack.c.bf16 %v5945, %v5943
      %v6002 = vpack.c.bf16 %v5946, %v5944
      %v6003 = vpack.c.bf16 %v5949, %v5947
      %v6004 = vpack.c.bf16 %v5950, %v5948
      %v6005 = vpack.c.bf16 %v5953, %v5951
      %v6006 = vpack.c.bf16 %v5954, %v5952
      %v6007 = vpack.c.bf16 %v5957, %v5955
      %v6008 = vpack.c.bf16 %v5958, %v5956
      %v6009 = vpack.c.bf16 %v5961, %v5959
      %v6010 = vpack.c.bf16 %v5962, %v5960
      %v6011 = vpack.c.bf16 %v5965, %v5963
      %v6012 = vpack.c.bf16 %v5966, %v5964
      %v6013 = vpack.c.bf16 %v5969, %v5967
      %v6014 = vpack.c.bf16 %v5970, %v5968
      %v6015 = vpack.c.bf16 %v5973, %v5971
      %v6016 = vpack.c.bf16 %v5974, %v5972
      %v6017 = vpack.c.bf16 %v5977, %v5975
      %v6018 = vpack.c.bf16 %v5978, %v5976
      %v6019 = vpack.c.bf16 %v5981, %v5979
      %v6020 = vpack.c.bf16 %v5982, %v5980
      %v6021 = vpack.c.bf16 %v5985, %v5983
      %v6022 = vpack.c.bf16 %v5986, %v5984
      %v6023 = vpack.c.bf16 %v5989, %v5987
      %v6024 = vpack.c.bf16 %v5990, %v5988
      %v6025 = vpack.c.bf16 %v5993, %v5991
      %v6026 = vpack.c.bf16 %v5994, %v5992
      %v6027 = vld [vmem:[%s5] sm:$0xf]
      %v6028 = vld [vmem:[%s5 + $0x4] sm:$0xf]
      %v6029 = vld [vmem:[%s5 + $0x8] sm:$0xf]
      %v6030 = vld [vmem:[%s5 + $0xc] sm:$0xf]
      %v6031 = vld [vmem:[%s5 + $0x10] sm:$0xf]
      %v6032 = vld [vmem:[%s5 + $0x14] sm:$0xf]
      %v6033 = vld [vmem:[%s5 + $0x18] sm:$0xf]
      %v6034 = vld [vmem:[%s5 + $0x1c] sm:$0xf]
      %v6035 = vld [vmem:[%s5 + $0x20] sm:$0xf]
      %v6036 = vld [vmem:[%s5 + $0x24] sm:$0xf]
      %v6037 = vld [vmem:[%s5 + $0x28] sm:$0xf]
      %v6038 = vld [vmem:[%s5 + $0x2c] sm:$0xf]
      %v6039 = vld [vmem:[%s5 + $0x30] sm:$0xf]
      %v6040 = vld [vmem:[%s5 + $0x34] sm:$0xf]
      %v6041 = vld [vmem:[%s5 + $0x38] sm:$0xf]
      %v6042 = vld [vmem:[%s5 + $0x3c] sm:$0xf]
      %v6043 = vld [vmem:[%s5 + $0x40] sm:$0xf]
      %v6044 = vld [vmem:[%s5 + $0x44] sm:$0xf]
      %v6045 = vld [vmem:[%s5 + $0x48] sm:$0xf]
      %v6046 = vld [vmem:[%s5 + $0x4c] sm:$0xf]
      %v6047 = vld [vmem:[%s5 + $0x50] sm:$0xf]
      %v6048 = vld [vmem:[%s5 + $0x54] sm:$0xf]
      %v6049 = vld [vmem:[%s5 + $0x58] sm:$0xf]
      %v6050 = vld [vmem:[%s5 + $0x5c] sm:$0xf]
      %v6051 = vld [vmem:[%s5 + $0x60] sm:$0xf]
      %v6052 = vld [vmem:[%s5 + $0x64] sm:$0xf]
      %v6053 = vld [vmem:[%s5 + $0x68] sm:$0xf]
      %v6054 = vld [vmem:[%s5 + $0x6c] sm:$0xf]
      %v6055 = vld [vmem:[%s5 + $0x70] sm:$0xf]
      %v6056 = vld [vmem:[%s5 + $0x74] sm:$0xf]
      %v6057 = vld [vmem:[%s5 + $0x78] sm:$0xf]
      %v6058 = vld [vmem:[%s5 + $0x7c] sm:$0xf]
      %v6059 = vld [vmem:[%s6] sm:$0x1]
      %v6061 = vlaneseq
      %v6062 = vshrl.u32 %v6061, 7
      %v6063 = vsub.s32 0, %v6062
      %v6064 = vrot.slane %v6059, %v6063
      %v6098 = vunpack.c.l.b16 %v6027
      %v6099 = vunpack.c.l.b16 %v6028
      %v6100 = vunpack.c.l.b16 %v6029
      %v6101 = vunpack.c.l.b16 %v6030
      %v6102 = vunpack.c.l.b16 %v6031
      %v6103 = vunpack.c.l.b16 %v6032
      %v6104 = vunpack.c.l.b16 %v6033
      %v6105 = vunpack.c.l.b16 %v6034
      %v6106 = vunpack.c.l.b16 %v6035
      %v6107 = vunpack.c.l.b16 %v6036
      %v6108 = vunpack.c.l.b16 %v6037
      %v6109 = vunpack.c.l.b16 %v6038
      %v6110 = vunpack.c.l.b16 %v6039
      %v6111 = vunpack.c.l.b16 %v6040
      %v6112 = vunpack.c.l.b16 %v6041
      %v6113 = vunpack.c.l.b16 %v6042
      %v6114 = vunpack.c.l.b16 %v6043
      %v6115 = vunpack.c.l.b16 %v6044
      %v6116 = vunpack.c.l.b16 %v6045
      %v6117 = vunpack.c.l.b16 %v6046
      %v6118 = vunpack.c.l.b16 %v6047
      %v6119 = vunpack.c.l.b16 %v6048
      %v6120 = vunpack.c.l.b16 %v6049
      %v6121 = vunpack.c.l.b16 %v6050
      %v6122 = vunpack.c.l.b16 %v6051
      %v6123 = vunpack.c.l.b16 %v6052
      %v6124 = vunpack.c.l.b16 %v6053
      %v6125 = vunpack.c.l.b16 %v6054
      %v6126 = vunpack.c.l.b16 %v6055
      %v6127 = vunpack.c.l.b16 %v6056
      %v6128 = vunpack.c.l.b16 %v6057
      %v6129 = vunpack.c.l.b16 %v6058
      %v6130 = vpack.c.b16 %v6099, %v6098
      %v6131 = vpack.c.b16 %v6101, %v6100
      %v6132 = vpack.c.b16 %v6103, %v6102
      %v6133 = vpack.c.b16 %v6105, %v6104
      %v6134 = vpack.c.b16 %v6107, %v6106
      %v6135 = vpack.c.b16 %v6109, %v6108
      %v6136 = vpack.c.b16 %v6111, %v6110
      %v6137 = vpack.c.b16 %v6113, %v6112
      %v6138 = vpack.c.b16 %v6115, %v6114
      %v6139 = vpack.c.b16 %v6117, %v6116
      %v6140 = vpack.c.b16 %v6119, %v6118
      %v6141 = vpack.c.b16 %v6121, %v6120
      %v6142 = vpack.c.b16 %v6123, %v6122
      %v6143 = vpack.c.b16 %v6125, %v6124
      %v6144 = vpack.c.b16 %v6127, %v6126
      %v6145 = vpack.c.b16 %v6129, %v6128
      %6162 = vmatprep.subr.bf16.mxu0 0
      %6163 = vmatpush1.bf16.msra.mxu0 %v6130
      %6164 = vmatprep.subr.bf16.mxu0 0
      %6165 = vmatpush1.bf16.msra.mxu0 %v6131
      %6166 = vmatprep.subr.bf16.mxu0 0
      %6167 = vmatpush1.bf16.msra.mxu0 %v6132
      %6168 = vmatprep.subr.bf16.mxu0 0
      %6169 = vmatpush1.bf16.msra.mxu0 %v6133
      %6170 = vmatprep.subr.bf16.mxu0 0
      %6171 = vmatpush1.bf16.msra.mxu0 %v6134
      %6172 = vmatprep.subr.bf16.mxu0 0
      %6173 = vmatpush1.bf16.msra.mxu0 %v6135
      %6174 = vmatprep.subr.bf16.mxu0 0
      %6175 = vmatpush1.bf16.msra.mxu0 %v6136
      %6176 = vmatprep.subr.bf16.mxu0 0
      %6177 = vmatpush1.bf16.msra.mxu0 %v6137
      %6178 = vmatprep.subr.bf16.mxu0 0
      %6179 = vmatpush1.bf16.msra.mxu0 %v6138
      %6180 = vmatprep.subr.bf16.mxu0 0
      %6181 = vmatpush1.bf16.msra.mxu0 %v6139
      %6182 = vmatprep.subr.bf16.mxu0 0
      %6183 = vmatpush1.bf16.msra.mxu0 %v6140
      %6184 = vmatprep.subr.bf16.mxu0 0
      %6185 = vmatpush1.bf16.msra.mxu0 %v6141
      %6186 = vmatprep.subr.bf16.mxu0 0
      %6187 = vmatpush1.bf16.msra.mxu0 %v6142
      %6188 = vmatprep.subr.bf16.mxu0 0
      %6189 = vmatpush1.bf16.msra.mxu0 %v6143
      %6190 = vmatprep.subr.bf16.mxu0 0
      %6191 = vmatpush1.bf16.msra.mxu0 %v6144
      %6192 = vmatprep.subr.bf16.mxu0 0
      %6193 = vmatpush1.bf16.msra.mxu0 %v6145
      %6194 = vmatprep.mubr.bf16.mxu0 %v5996
      %6195 = vmatmul.mubr.bf16.gmra.mrb[0].mxu0 %v5995
      %v6196 = vpop.f32.mrb[0].mxu0
      %v6197 = vadd.f32 %v6064, %v6196
      %v6198 = vpop.f32.mrb[0].mxu0
      %v6199 = vpop.f32.mrb[0].mxu0
      %v6200 = vadd.f32 %v6064, %v6199
      %v6201 = vpop.f32.mrb[0].mxu0
      %6202 = vmatprep.mubr.bf16.mxu0 %v5998
      %6203 = vmatmul.mubr.bf16.gmra.mrb[0].mxu0 %v5997
      %v6204 = vpop.f32.mrb[0].mxu0
      %v6205 = vadd.f32 %v6064, %v6204
      %v6206 = vpop.f32.mrb[0].mxu0
      %v6207 = vpop.f32.mrb[0].mxu0
      %v6208 = vadd.f32 %v6064, %v6207
      %v6209 = vpop.f32.mrb[0].mxu0
      %6210 = vmatprep.mubr.bf16.mxu0 %v6000
      %6211 = vmatmul.mubr.bf16.gmra.mrb[0].mxu0 %v5999
      %v6212 = vpop.f32.mrb[0].mxu0
      %v6213 = vadd.f32 %v6064, %v6212
      %v6214 = vpop.f32.mrb[0].mxu0
      %v6215 = vpop.f32.mrb[0].mxu0
      %v6216 = vadd.f32 %v6064, %v6215
      %v6217 = vpop.f32.mrb[0].mxu0
      %6218 = vmatprep.mubr.bf16.mxu0 %v6002
      %6219 = vmatmul.mubr.bf16.gmra.mrb[0].mxu0 %v6001
      %v6220 = vpop.f32.mrb[0].mxu0
      %v6221 = vadd.f32 %v6064, %v6220
      %v6222 = vpop.f32.mrb[0].mxu0
      %v6223 = vpop.f32.mrb[0].mxu0
      %v6224 = vadd.f32 %v6064, %v6223
      %v6225 = vpop.f32.mrb[0].mxu0
      %6226 = vmatprep.mubr.bf16.mxu0 %v6004
      %6227 = vmatmul.mubr.bf16.gmra.mrb[0].mxu0 %v6003
      %v6228 = vpop.f32.mrb[0].mxu0
      %v6229 = vadd.f32 %v6064, %v6228
      %v6230 = vpop.f32.mrb[0].mxu0
      %v6231 = vpop.f32.mrb[0].mxu0
      %v6232 = vadd.f32 %v6064, %v6231
      %v6233 = vpop.f32.mrb[0].mxu0
      %6234 = vmatprep.mubr.bf16.mxu0 %v6006
      %6235 = vmatmul.mubr.bf16.gmra.mrb[0].mxu0 %v6005
      %v6236 = vpop.f32.mrb[0].mxu0
      %v6237 = vadd.f32 %v6064, %v6236
      %v6238 = vpop.f32.mrb[0].mxu0
      %v6239 = vpop.f32.mrb[0].mxu0
      %v6240 = vadd.f32 %v6064, %v6239
      %v6241 = vpop.f32.mrb[0].mxu0
      %6242 = vmatprep.mubr.bf16.mxu0 %v6008
      %6243 = vmatmul.mubr.bf16.gmra.mrb[0].mxu0 %v6007
      %v6244 = vpop.f32.mrb[0].mxu0
      %v6245 = vadd.f32 %v6064, %v6244
      %v6246 = vpop.f32.mrb[0].mxu0
      %v6247 = vpop.f32.mrb[0].mxu0
      %v6248 = vadd.f32 %v6064, %v6247
      %v6249 = vpop.f32.mrb[0].mxu0
      %6250 = vmatprep.mubr.bf16.mxu0 %v6010
      %6251 = vmatmul.mubr.bf16.gmra.mrb[0].mxu0 %v6009
      %v6252 = vpop.f32.mrb[0].mxu0
      %v6253 = vadd.f32 %v6064, %v6252
      %v6254 = vpop.f32.mrb[0].mxu0
      %v6255 = vpop.f32.mrb[0].mxu0
      %v6256 = vadd.f32 %v6064, %v6255
      %v6257 = vpop.f32.mrb[0].mxu0
      %6258 = vmatprep.mubr.bf16.mxu0 %v6012
      %6259 = vmatmul.mubr.bf16.gmra.mrb[0].mxu0 %v6011
      %v6260 = vpop.f32.mrb[0].mxu0
      %v6261 = vadd.f32 %v6064, %v6260
      %v6262 = vpop.f32.mrb[0].mxu0
      %v6263 = vpop.f32.mrb[0].mxu0
      %v6264 = vadd.f32 %v6064, %v6263
      %v6265 = vpop.f32.mrb[0].mxu0
      %6266 = vmatprep.mubr.bf16.mxu0 %v6014
      %6267 = vmatmul.mubr.bf16.gmra.mrb[0].mxu0 %v6013
      %v6268 = vpop.f32.mrb[0].mxu0
      %v6269 = vadd.f32 %v6064, %v6268
      %v6270 = vpop.f32.mrb[0].mxu0
      %v6271 = vpop.f32.mrb[0].mxu0
      %v6272 = vadd.f32 %v6064, %v6271
      %v6273 = vpop.f32.mrb[0].mxu0
      %6274 = vmatprep.mubr.bf16.mxu0 %v6016
      %6275 = vmatmul.mubr.bf16.gmra.mrb[0].mxu0 %v6015
      %v6276 = vpop.f32.mrb[0].mxu0
      %v6277 = vadd.f32 %v6064, %v6276
      %v6278 = vpop.f32.mrb[0].mxu0
      %v6279 = vpop.f32.mrb[0].mxu0
      %v6280 = vadd.f32 %v6064, %v6279
      %v6281 = vpop.f32.mrb[0].mxu0
      %6282 = vmatprep.mubr.bf16.mxu0 %v6018
      %6283 = vmatmul.mubr.bf16.gmra.mrb[0].mxu0 %v6017
      %v6284 = vpop.f32.mrb[0].mxu0
      %v6285 = vadd.f32 %v6064, %v6284
      %v6286 = vpop.f32.mrb[0].mxu0
      %v6287 = vpop.f32.mrb[0].mxu0
      %v6288 = vadd.f32 %v6064, %v6287
      %v6289 = vpop.f32.mrb[0].mxu0
      %6290 = vmatprep.mubr.bf16.mxu0 %v6020
      %6291 = vmatmul.mubr.bf16.gmra.mrb[0].mxu0 %v6019
      %v6292 = vpop.f32.mrb[0].mxu0
      %v6293 = vadd.f32 %v6064, %v6292
      %v6294 = vpop.f32.mrb[0].mxu0
      %v6295 = vpop.f32.mrb[0].mxu0
      %v6296 = vadd.f32 %v6064, %v6295
      %v6297 = vpop.f32.mrb[0].mxu0
      %6298 = vmatprep.mubr.bf16.mxu0 %v6022
      %6299 = vmatmul.mubr.bf16.gmra.mrb[0].mxu0 %v6021
      %v6300 = vpop.f32.mrb[0].mxu0
      %v6301 = vadd.f32 %v6064, %v6300
      %v6302 = vpop.f32.mrb[0].mxu0
      %v6303 = vpop.f32.mrb[0].mxu0
      %v6304 = vadd.f32 %v6064, %v6303
      %v6305 = vpop.f32.mrb[0].mxu0
      %6306 = vmatprep.mubr.bf16.mxu0 %v6024
      %6307 = vmatmul.mubr.bf16.gmra.mrb[0].mxu0 %v6023
      %v6308 = vpop.f32.mrb[0].mxu0
      %v6309 = vadd.f32 %v6064, %v6308
      %v6310 = vpop.f32.mrb[0].mxu0
      %v6311 = vpop.f32.mrb[0].mxu0
      %v6312 = vadd.f32 %v6064, %v6311
      %v6313 = vpop.f32.mrb[0].mxu0
      %6314 = vmatprep.mubr.bf16.mxu0 %v6026
      %6315 = vmatmul.mubr.bf16.gmra.mrb[0].mxu0 %v6025
      %v6316 = vpop.f32.mrb[0].mxu0
      %v6317 = vadd.f32 %v6064, %v6316
      %v6318 = vpop.f32.mrb[0].mxu0
      %v6319 = vpop.f32.mrb[0].mxu0
      %v6320 = vadd.f32 %v6064, %v6319
      %v6321 = vpop.f32.mrb[0].mxu0
      %6322 = vdwg.mxu0
      %6323 = vst.msk [vmem:[%s278] sm:$0xff] %vm452, %v6197
      %6324 = vst.msk [vmem:[%s278 + $0x8] sm:$0xff] %vm452, %v6200
      %6325 = vst.msk [vmem:[%s278 + $0x10] sm:$0xff] %vm452, %v6205
      %6326 = vst.msk [vmem:[%s278 + $0x18] sm:$0xff] %vm452, %v6208
      %6327 = vst.msk [vmem:[%s278 + $0x20] sm:$0xff] %vm452, %v6213
      %6328 = vst.msk [vmem:[%s278 + $0x28] sm:$0xff] %vm452, %v6216
      %6329 = vst.msk [vmem:[%s278 + $0x30] sm:$0xff] %vm452, %v6221
      %6330 = vst.msk [vmem:[%s278 + $0x38] sm:$0xff] %vm452, %v6224
      %6331 = vst.msk [vmem:[%s278 + $0x40] sm:$0xff] %vm452, %v6229
      %6332 = vst.msk [vmem:[%s278 + $0x48] sm:$0xff] %vm452, %v6232
      %6333 = vst.msk [vmem:[%s278 + $0x50] sm:$0xff] %vm452, %v6237
      %6334 = vst.msk [vmem:[%s278 + $0x58] sm:$0xff] %vm452, %v6240
      %6335 = vst.msk [vmem:[%s278 + $0x60] sm:$0xff] %vm452, %v6245
      %6336 = vst.msk [vmem:[%s278 + $0x68] sm:$0xff] %vm452, %v6248
      %6337 = vst.msk [vmem:[%s278 + $0x70] sm:$0xff] %vm452, %v6253
      %6338 = vst.msk [vmem:[%s278 + $0x78] sm:$0xff] %vm452, %v6256
      %6339 = vst.msk [vmem:[%s278 + $0x80] sm:$0xff] %vm452, %v6261
      %6340 = vst.msk [vmem:[%s278 + $0x88] sm:$0xff] %vm452, %v6264
      %6341 = vst.msk [vmem:[%s278 + $0x90] sm:$0xff] %vm452, %v6269
      %6342 = vst.msk [vmem:[%s278 + $0x98] sm:$0xff] %vm452, %v6272
      %6343 = vst.msk [vmem:[%s278 + $0xa0] sm:$0xff] %vm452, %v6277
      %6344 = vst.msk [vmem:[%s278 + $0xa8] sm:$0xff] %vm452, %v6280
      %6345 = vst.msk [vmem:[%s278 + $0xb0] sm:$0xff] %vm452, %v6285
      %6346 = vst.msk [vmem:[%s278 + $0xb8] sm:$0xff] %vm452, %v6288
      %6347 = vst.msk [vmem:[%s278 + $0xc0] sm:$0xff] %vm452, %v6293
      %6348 = vst.msk [vmem:[%s278 + $0xc8] sm:$0xff] %vm452, %v6296
      %6349 = vst.msk [vmem:[%s278 + $0xd0] sm:$0xff] %vm452, %v6301
      %6350 = vst.msk [vmem:[%s278 + $0xd8] sm:$0xff] %vm452, %v6304
      %6351 = vst.msk [vmem:[%s278 + $0xe0] sm:$0xff] %vm452, %v6309
      %6352 = vst.msk [vmem:[%s278 + $0xe8] sm:$0xff] %vm452, %v6312
      %6353 = vst.msk [vmem:[%s278 + $0xf0] sm:$0xff] %vm452, %v6317
      %6354 = vst.msk [vmem:[%s278 + $0xf8] sm:$0xff] %vm452, %v6320
      %p6355 = scmp.lt.s32.totalorder %s18, 1
      %s6356 = scalar_select %p6355, %s18, 1
      %s6357 = smul.addr %s6356, 32
      %s6358 = smul.addr %s6357, 8
      %s6359 = scalar_lea.vmem %s7, %s6358
      // Predicated region
      $region49: #{mlp_forward.1} parent=47 // pred_check
        %p6360 = pneg %p188
      $region50: #{mlp_forward.1} parent=47 // pred_check_branch
        %6362 = sbr.rel (%p6360) target = $region52
      $region51: #{mlp_forward.1} parent=47 // pred_region
        _
      $region52: #{mlp_forward.1} parent=47 // pred_fallthru
        _
    $region48: #{mlp_forward.1} parent=5 // pred_fallthru
      _
    %p6363 = scmp.le.s32.totalorder 2, %s13
    // Predicated region
    $region53: #{mlp_forward.1} parent=5 // pred_check
      %p6364 = pneg %p6363
    $region54: #{mlp_forward.1} parent=5 // pred_check_branch
      %6366 = sbr.rel (%p6364) target = $region56
    $region55: #{mlp_forward.1} parent=5 // pred_region
      %s6367 = ssub.s32 %s13, 2
      // Predicated region
      $region57: #{mlp_forward.1} parent=55 // pred_check
        %p6368 = pneg %p194
      $region58: #{mlp_forward.1} parent=55 // pred_check_branch
        %6370 = sbr.rel (%p6368) target = $region60
      $region59: #{mlp_forward.1} parent=55 // pred_region
        %p6371 = scmp.lt.s32.totalorder %s19, 1
        %s6372 = scalar_select %p6371, %s19, 1
        %s6373 = smul.addr %s6372, 32
        %s6374 = smul.addr %s6373, 8
        %s6375 = scalar_lea.vmem %s7, %s6374
      $region60: #{mlp_forward.1} parent=55 // pred_fallthru
        _
    $region56: #{mlp_forward.1} parent=5 // pred_fallthru
      _
  $region6: #{mlp_forward.1} parent=0 // loop_footer
    %s17 = sadd.s32 1, %s13
  $region7: #{mlp_forward.1} parent=0 // loop_footer_branch
    %12 = sbr.rel target = $region3
  $region8: #{mlp_forward.1} parent=0 // loop_exit
    _

</llo_original>
